<compile_context>
chip_gen: v6e
topology: v6e:2x2x1
jax: 0.10.0
libtpu: 0.0.40
codegen_flags: <defaults>
</compile_context>

<pallas_src>
import math
import functools

import jax
import jax.numpy as jnp
from jax.experimental import pallas as pl
from jax.experimental.pallas import tpu as pltpu


MXU_DTYPE = jnp.bfloat16     # HBM/MXU dtype for activations & weights
LN_EPS = 1e-12               # matches reference LayerNorm(eps=1e-12)

# Matmul tile caps (used only when the true dim is larger; otherwise the full
# dim is used so small models are not padded to 128).
TM_MAX, TN_MAX, TK_MAX = 512, 512, 1024
# Attention tile caps.
TQ_MAX, TKV_MAX = 256, 512


def _round_up(x, m):
    return (x + m - 1) // m * m


def _detect_vmem_limit():
    """Generation-aware scoped-VMEM budget (~3/4 of physical, capped at 100MiB)."""
    cap = 64 * 1024 * 1024  # conservative default (v7x per-TensorCore VMEM)
    try:
        info = pltpu.get_tpu_info()
        for name in ("vmem_capacity_bytes", "vmem_size_bytes"):
            c = getattr(info, name, None)
            if c:
                cap = int(c)
                break
    except Exception:
        pass
    return min((cap * 3) // 4, 100 * 1024 * 1024)


VMEM_LIMIT = _detect_vmem_limit()


def _tile(dim, cap):
    """Full dim if it fits under the cap (no padding), else the cap."""
    return dim if dim <= cap else cap


# ----------------------------- tiled linear kernel ---------------------------

def _matmul_kernel(x_ref, w_ref, b_ref, o_ref, acc_ref, *, activation):
    @pl.when(pl.program_id(2) == 0)
    def _():
        acc_ref[...] = jnp.zeros_like(acc_ref)

    acc_ref[...] += jnp.dot(x_ref[...], w_ref[...],
                            preferred_element_type=jnp.float32)

    @pl.when(pl.program_id(2) == pl.num_programs(2) - 1)
    def _():
        y = acc_ref[...] + b_ref[...]
        if activation == "relu":
            y = jnp.maximum(y, 0.0)
        o_ref[...] = y.astype(o_ref.dtype)


def linear(x, w, b, activation=None, out_dtype=MXU_DTYPE):
    """(..., K) @ (K, N) + (N,) with optional fused ReLU; bf16 in, f32 acc."""
    lead = x.shape[:-1]
    K = x.shape[-1]
    N = w.shape[1]
    x2 = x.reshape(-1, K).astype(MXU_DTYPE)
    w = w.astype(MXU_DTYPE)
    M = x2.shape[0]

    TM, TN, TK = _tile(M, TM_MAX), _tile(N, TN_MAX), _tile(K, TK_MAX)
    Mp, Np, Kp = _round_up(M, TM), _round_up(N, TN), _round_up(K, TK)

    xp = jnp.pad(x2, ((0, Mp - M), (0, Kp - K))) if (Mp, Kp) != (M, K) else x2
    wp = jnp.pad(w, ((0, Kp - K), (0, Np - N))) if (Kp, Np) != (K, N) else w
    bp = (jnp.pad(b, (0, Np - N)) if Np != N else b).reshape(1, Np)

    grid = (Mp // TM, Np // TN, Kp // TK)
    cost = pl.CostEstimate(
        flops=2 * Mp * Np * Kp,
        transcendentals=0,
        bytes_accessed=2 * (Mp * Kp + Kp * Np)
        + jnp.dtype(out_dtype).itemsize * Mp * Np + 4 * Np,
    )

    out = pl.pallas_call(
        functools.partial(_matmul_kernel, activation=activation),
        out_shape=jax.ShapeDtypeStruct((Mp, Np), out_dtype),
        grid=grid,
        in_specs=[
            pl.BlockSpec((TM, TK), lambda i, j, k: (i, k)),
            pl.BlockSpec((TK, TN), lambda i, j, k: (k, j)),
            pl.BlockSpec((1, TN), lambda i, j, k: (0, j)),
        ],
        out_specs=pl.BlockSpec((TM, TN), lambda i, j, k: (i, j)),
        scratch_shapes=[pltpu.VMEM((TM, TN), jnp.float32)],
        compiler_params=pltpu.CompilerParams(
            dimension_semantics=("parallel", "parallel", "arbitrary"),
            vmem_limit_bytes=VMEM_LIMIT,
        ),
        cost_estimate=cost,
    )(xp, wp, bp)

    return out[:M, :N].reshape(*lead, N)


# ----------------- matmul with fused residual-add + LayerNorm ----------------

def _matmul_add_ln_kernel(x_ref, w_ref, b_ref, r_ref, g_ref, bt_ref,
                          o_ref, acc_ref):
    @pl.when(pl.program_id(1) == 0)
    def _():
        acc_ref[...] = jnp.zeros_like(acc_ref)

    acc_ref[...] += jnp.dot(x_ref[...], w_ref[...],
                            preferred_element_type=jnp.float32)

    @pl.when(pl.program_id(1) == pl.num_programs(1) - 1)
    def _():
        # LayerNorm(x @ w + b + residual), all in f32.
        y = acc_ref[...] + b_ref[...] + r_ref[...].astype(jnp.float32)
        mean = jnp.mean(y, axis=-1, keepdims=True)
        var = jnp.mean((y - mean) ** 2, axis=-1, keepdims=True)
        o_ref[...] = ((y - mean) * jax.lax.rsqrt(var + LN_EPS)
                      * g_ref[...] + bt_ref[...]).astype(o_ref.dtype)


def linear_add_layernorm(x, w, b, residual, gamma, beta, out_dtype=MXU_DTYPE):
    """LayerNorm(x @ w + b + residual): add+LN fused into the matmul epilogue.

    The full output row (N = d_model) lives in one tile so LN statistics are
    computed in-register; the (B*L, D) activation never round-trips HBM between
    the projection and the LayerNorm.
    """
    lead = x.shape[:-1]
    K = x.shape[-1]
    D = w.shape[1]
    x2 = x.reshape(-1, K).astype(MXU_DTYPE)
    r2 = residual.reshape(-1, D).astype(MXU_DTYPE)
    w = w.astype(MXU_DTYPE)
    M = x2.shape[0]

    TM, TK = _tile(M, TM_MAX), _tile(K, TK_MAX)
    Mp, Kp = _round_up(M, TM), _round_up(K, TK)

    if (Mp, Kp) != (M, K):
        x2 = jnp.pad(x2, ((0, Mp - M), (0, Kp - K)))
    if Mp != M:
        r2 = jnp.pad(r2, ((0, Mp - M), (0, 0)))
    wp = jnp.pad(w, ((0, Kp - K), (0, 0))) if Kp != K else w

    grid = (Mp // TM, Kp // TK)
    cost = pl.CostEstimate(
        flops=2 * Mp * D * Kp,
        transcendentals=0,
        bytes_accessed=2 * (Mp * Kp + Kp * D + Mp * D)
        + jnp.dtype(out_dtype).itemsize * Mp * D + 12 * D,
    )

    out = pl.pallas_call(
        _matmul_add_ln_kernel,
        out_shape=jax.ShapeDtypeStruct((Mp, D), out_dtype),
        grid=grid,
        in_specs=[
            pl.BlockSpec((TM, TK), lambda i, k: (i, k)),
            pl.BlockSpec((TK, D), lambda i, k: (k, 0)),
            pl.BlockSpec((1, D), lambda i, k: (0, 0)),
            pl.BlockSpec((TM, D), lambda i, k: (i, 0)),
            pl.BlockSpec((1, D), lambda i, k: (0, 0)),
            pl.BlockSpec((1, D), lambda i, k: (0, 0)),
        ],
        out_specs=pl.BlockSpec((TM, D), lambda i, k: (i, 0)),
        scratch_shapes=[pltpu.VMEM((TM, D), jnp.float32)],
        compiler_params=pltpu.CompilerParams(
            dimension_semantics=("parallel", "arbitrary"),
            vmem_limit_bytes=VMEM_LIMIT,
        ),
        cost_estimate=cost,
    )(x2, wp, b.reshape(1, D), r2, gamma.reshape(1, D), beta.reshape(1, D))

    return out[:M].reshape(*lead, D)


# --------------------- flash attention (online softmax) ----------------------

def _flash_kernel(q_ref, k_ref, v_ref, qv_ref, kv_ref, o_ref,
                  m_sc, l_sc, acc_sc, *, scale, causal, lk_real, lk_pad, tq, tk):
    ki = pl.program_id(3)

    @pl.when(ki == 0)
    def _():
        m_sc[...] = jnp.full_like(m_sc, -1e30)
        l_sc[...] = jnp.zeros_like(l_sc)
        acc_sc[...] = jnp.zeros_like(acc_sc)

    q = q_ref[0, 0]            # (TQ, Dh) bf16
    k = k_ref[0, 0]            # (TK, Dh) bf16
    v = v_ref[0, 0]            # (TK, Dh) bf16

    # scores: contract head dim of both operands (no explicit transpose).
    s = jax.lax.dot_general(q, k, (((1,), (1,)), ((), ())),
                            preferred_element_type=jnp.float32) * scale

    # Pad/causal mask rebuilt in-kernel from validity vectors + iota (no HBM mask).
    qv = qv_ref[0]             # (TQ, 1) f32: 1 keep / 0 pad-token-or-padded
    kv = kv_ref[0]             # (1, TK) f32
    keep = (qv * kv) > 0.0
    if causal:
        row = pl.program_id(2) * tq + jax.lax.broadcasted_iota(jnp.int32, (tq, tk), 0)
        col = ki * tk + jax.lax.broadcasted_iota(jnp.int32, (tq, tk), 1)
        keep = keep & (col <= row)
    s = jnp.where(keep, s, -10000.0)   # matches reference masked_fill(mask==0, -1e4)

    m_prev = m_sc[...]
    m_new = jnp.maximum(m_prev, jnp.max(s, axis=-1, keepdims=True))
    alpha = jnp.exp(m_prev - m_new)
    p = jnp.exp(s - m_new)
    if lk_pad != lk_real:
        # Structurally padded key columns contribute exactly zero.
        col = ki * tk + jax.lax.broadcasted_iota(jnp.int32, (tq, tk), 1)
        p = jnp.where(col < lk_real, p, 0.0)
    l_sc[...] = alpha * l_sc[...] + jnp.sum(p, axis=-1, keepdims=True)
    acc_sc[...] = alpha * acc_sc[...] + jnp.dot(p.astype(q.dtype), v,
                                                preferred_element_type=jnp.float32)
    m_sc[...] = m_new

    @pl.when(ki == pl.num_programs(3) - 1)
    def _():
        o_ref[0, 0] = (acc_sc[...] / l_sc[...]).astype(o_ref.dtype)


def flash_attention(q, k, v, q_valid, k_valid, causal):
    """q,k,v: (B,H,L,Dh) bf16; q_valid:(B,Lq) f32; k_valid:(B,Lk) f32."""
    B, H, Lq, Dh = q.shape
    Lk = k.shape[2]
    scale = 1.0 / math.sqrt(Dh)

    TQ = _tile(Lq, TQ_MAX)
    TK = _tile(Lk, TKV_MAX)
    Lqp, Lkp = _round_up(Lq, TQ), _round_up(Lk, TK)
    if Lqp != Lq:
        q = jnp.pad(q, ((0, 0), (0, 0), (0, Lqp - Lq), (0, 0)))
        q_valid = jnp.pad(q_valid, ((0, 0), (0, Lqp - Lq)))
    if Lkp != Lk:
        k = jnp.pad(k, ((0, 0), (0, 0), (0, Lkp - Lk), (0, 0)))
        v = jnp.pad(v, ((0, 0), (0, 0), (0, Lkp - Lk), (0, 0)))
        k_valid = jnp.pad(k_valid, ((0, 0), (0, Lkp - Lk)))

    qv3 = q_valid.reshape(B, Lqp, 1)
    kv3 = k_valid.reshape(B, 1, Lkp)

    grid = (B, H, Lqp // TQ, Lkp // TK)
    out = pl.pallas_call(
        functools.partial(_flash_kernel, scale=scale, causal=causal,
                          lk_real=Lk, lk_pad=Lkp, tq=TQ, tk=TK),
        out_shape=jax.ShapeDtypeStruct((B, H, Lqp, Dh), q.dtype),
        grid=grid,
        in_specs=[
            pl.BlockSpec((1, 1, TQ, Dh), lambda b, h, i, j: (b, h, i, 0)),
            pl.BlockSpec((1, 1, TK, Dh), lambda b, h, i, j: (b, h, j, 0)),
            pl.BlockSpec((1, 1, TK, Dh), lambda b, h, i, j: (b, h, j, 0)),
            pl.BlockSpec((1, TQ, 1), lambda b, h, i, j: (b, i, 0)),
            pl.BlockSpec((1, 1, TK), lambda b, h, i, j: (b, 0, j)),
        ],
        out_specs=pl.BlockSpec((1, 1, TQ, Dh), lambda b, h, i, j: (b, h, i, 0)),
        scratch_shapes=[
            pltpu.VMEM((TQ, 1), jnp.float32),    # running max
            pltpu.VMEM((TQ, 1), jnp.float32),    # running denom
            pltpu.VMEM((TQ, Dh), jnp.float32),   # running output
        ],
        compiler_params=pltpu.CompilerParams(
            dimension_semantics=("parallel", "parallel", "parallel", "arbitrary"),
            vmem_limit_bytes=VMEM_LIMIT,
        ),
    )(q, k, v, qv3, kv3)

    return out[:, :, :Lq, :]


# ----------------------------- model pieces ----------------------------------

def _split_heads(x, n_head):
    B, L, D = x.shape
    # TODO(synk): fold this transpose into the attention kernel by lane-packing
    # heads (present (Lq, H*Dh) slabs) instead of the (B,H,L,Dh) layout.
    return x.reshape(B, L, n_head, D // n_head).transpose(0, 2, 1, 3)


def _merge_heads(x):
    B, H, L, Dh = x.shape
    return x.transpose(0, 2, 1, 3).reshape(B, L, H * Dh)


def self_attention(p, x, valid, causal, n_head):
    """Returns concatenated per-head output (B, L, D) bf16 (pre w_o projection)."""
    qkv = linear(x, p["w_qkv"], p["b_qkv"])            # fused QKV projection
    q, k, v = jnp.split(qkv, 3, axis=-1)
    out = flash_attention(_split_heads(q, n_head), _split_heads(k, n_head),
                          _split_heads(v, n_head), valid, valid, causal)
    return _merge_heads(out)


def cross_attention(p, x, mem, q_valid, k_valid, n_head):
    q = linear(x, p["w_q"], p["b_q"])
    kv = linear(mem, p["w_kv"], p["b_kv"])              # fused K/V projection
    k, v = jnp.split(kv, 2, axis=-1)
    out = flash_attention(_split_heads(q, n_head), _split_heads(k, n_head),
                          _split_heads(v, n_head), q_valid, k_valid, False)
    return _merge_heads(out)


def encoder_layer(p, x, src_valid, n_head):
    # dropout is identity at inference
    attn = self_attention(p["attn"], x, src_valid, False, n_head)
    x = linear_add_layernorm(attn, p["attn"]["w_o"], p["attn"]["b_o"],
                             x, p["ln1_g"], p["ln1_b"])
    h = linear(x, p["ffn_w1"], p["ffn_b1"], activation="relu")
    x = linear_add_layernorm(h, p["ffn_w2"], p["ffn_b2"],
                             x, p["ln2_g"], p["ln2_b"])
    return x


def decoder_layer(p, dec, enc, trg_valid, src_valid, n_head):
    attn = self_attention(p["self_attn"], dec, trg_valid, True, n_head)
    x = linear_add_layernorm(attn, p["self_attn"]["w_o"], p["self_attn"]["b_o"],
                             dec, p["ln1_g"], p["ln1_b"])
    attn = cross_attention(p["cross_attn"], x, enc, trg_valid, src_valid, n_head)
    x = linear_add_layernorm(attn, p["cross_attn"]["w_o"], p["cross_attn"]["b_o"],
                             x, p["ln2_g"], p["ln2_b"])
    h = linear(x, p["ffn_w1"], p["ffn_b1"], activation="relu")
    x = linear_add_layernorm(h, p["ffn_w2"], p["ffn_b2"],
                             x, p["ln3_g"], p["ln3_b"])
    return x


def sinusoid_pos_encoding(max_len, d_model, base):
    pos = jnp.arange(max_len, dtype=jnp.float32)[:, None]
    i = jnp.arange(0, d_model, 2, dtype=jnp.float32)[None, :]
    angle = pos / jnp.power(jnp.float32(base), i / d_model)
    pe = jnp.zeros((max_len, d_model), jnp.float32)
    pe = pe.at[:, 0::2].set(jnp.sin(angle))
    pe = pe.at[:, 1::2].set(jnp.cos(angle))
    return pe


def transformer_embedding(emb_table, pos_enc, ids):
    # TokenEmbedding uses nn.Embedding(padding_idx=1); row 1 of the table is
    # zeroed at init to match.  Gather is XLA glue; dropout = identity (eval).
    tok = emb_table[ids]                                   # (B, L, D)
    x = tok + pos_enc[: ids.shape[1]][None, :, :]
    return x.astype(MXU_DTYPE)


def transformer_forward(params, src, trg, cfg):
    # Masks are represented as per-token validity vectors; the attention kernel
    # rebuilds make_pad_mask / no-peak semantics in-VMEM (no (B,1,Lq,Lk) HBM mask).
    src_valid = (src != cfg["src_pad_idx"]).astype(jnp.float32)   # (B, Ls)
    trg_valid = (trg != cfg["trg_pad_idx"]).astype(jnp.float32)   # (B, Lt)

    x_src = transformer_embedding(params["enc_emb"], params["pos_enc"], src)
    x_trg = transformer_embedding(params["dec_emb"], params["pos_enc"], trg)

    # Interleaved encoder/decoder stacking, exactly as in EncoderDecoder.forward
    for i in range(cfg["n_layers"]):
        x_src = encoder_layer(params["enc_layers"][i], x_src, src_valid, cfg["n_head"])
        x_trg = decoder_layer(params["dec_layers"][i], x_trg, x_src,
                              trg_valid, src_valid, cfg["n_head"])
    return linear(x_trg, params["out_w"], params["out_b"], out_dtype=jnp.float32)


# --------------------------- parameter init ----------------------------------

def _init_linear(key, fan_in, fan_out):
    k1, k2 = jax.random.split(key)
    bound = 1.0 / math.sqrt(fan_in)
    w = jax.random.uniform(k1, (fan_in, fan_out), jnp.float32, -bound, bound)
    b = jax.random.uniform(k2, (fan_out,), jnp.float32, -bound, bound)
    return w, b


def _init_attn(key, d_model, kind):
    """Pre-concatenate QKV / KV weights at init (hoisted out of the forward)."""
    ks = jax.random.split(key, 4)
    w_q, b_q = _init_linear(ks[0], d_model, d_model)
    w_k, b_k = _init_linear(ks[1], d_model, d_model)
    w_v, b_v = _init_linear(ks[2], d_model, d_model)
    w_o, b_o = _init_linear(ks[3], d_model, d_model)
    p = {"w_o": w_o.astype(MXU_DTYPE), "b_o": b_o}
    if kind == "self":
        p["w_qkv"] = jnp.concatenate([w_q, w_k, w_v], axis=1).astype(MXU_DTYPE)
        p["b_qkv"] = jnp.concatenate([b_q, b_k, b_v], axis=0)
    else:
        p["w_q"] = w_q.astype(MXU_DTYPE)
        p["b_q"] = b_q
        p["w_kv"] = jnp.concatenate([w_k, w_v], axis=1).astype(MXU_DTYPE)
        p["b_kv"] = jnp.concatenate([b_k, b_v], axis=0)
    return p


def _init_ffn(k1, k2, d_model, ffn_hidden):
    w1, b1 = _init_linear(k1, d_model, ffn_hidden)
    w2, b2 = _init_linear(k2, ffn_hidden, d_model)
    return {"ffn_w1": w1.astype(MXU_DTYPE), "ffn_b1": b1,
            "ffn_w2": w2.astype(MXU_DTYPE), "ffn_b2": b2}


def _init_enc_layer(key, d_model, ffn_hidden):
    k1, k2, k3 = jax.random.split(key, 3)
    p = {"attn": _init_attn(k1, d_model, "self")}
    p.update(_init_ffn(k2, k3, d_model, ffn_hidden))
    for name in ("ln1", "ln2"):
        p[f"{name}_g"] = jnp.ones((d_model,), jnp.float32)
        p[f"{name}_b"] = jnp.zeros((d_model,), jnp.float32)
    return p


def _init_dec_layer(key, d_model, ffn_hidden):
    k1, k2, k3, k4 = jax.random.split(key, 4)
    p = {"self_attn": _init_attn(k1, d_model, "self"),
         "cross_attn": _init_attn(k2, d_model, "cross")}
    p.update(_init_ffn(k3, k4, d_model, ffn_hidden))
    for name in ("ln1", "ln2", "ln3"):
        p[f"{name}_g"] = jnp.ones((d_model,), jnp.float32)
        p[f"{name}_b"] = jnp.zeros((d_model,), jnp.float32)
    return p


def init_params(key, cfg):
    keys = jax.random.split(key, 4 + 2 * cfg["n_layers"])
    enc_emb = 0.02 * jax.random.normal(keys[0], (cfg["enc_voc_size"], cfg["d_model"]), jnp.float32)
    dec_emb = 0.02 * jax.random.normal(keys[1], (cfg["dec_voc_size"], cfg["d_model"]), jnp.float32)
    # nn.Embedding(padding_idx=1): that row is zero-initialized.
    enc_emb = enc_emb.at[1].set(0.0)
    dec_emb = dec_emb.at[1].set(0.0)
    params = {
        "enc_emb": enc_emb,
        "dec_emb": dec_emb,
        "pos_enc": sinusoid_pos_encoding(cfg["max_len"], cfg["d_model"], cfg["k"]),
        "enc_layers": [],
        "dec_layers": [],
    }
    for i in range(cfg["n_layers"]):
        params["enc_layers"].append(_init_enc_layer(keys[2 + 2 * i], cfg["d_model"], cfg["ffn_hidden"]))
        params["dec_layers"].append(_init_dec_layer(keys[3 + 2 * i], cfg["d_model"], cfg["ffn_hidden"]))
    w, b = _init_linear(keys[-1], cfg["d_model"], cfg["dec_voc_size"])
    params["out_w"], params["out_b"] = w.astype(MXU_DTYPE), b
    return params


# --------------------------------- main ---------------------------------------

if __name__ == "__main__":
    cfg = dict(
        src_pad_idx=1, trg_pad_idx=1, trg_sos_idx=2,
        enc_voc_size=16, dec_voc_size=16,
        d_model=32, n_head=4, max_len=16, ffn_hidden=64,
        n_layers=2, drop_prob=0.1,   # dropout is identity at inference
        k=10000.0,                   # positional-encoding base
    )
    B, Ls, Lt = 2, 8, 8

    key = jax.random.PRNGKey(0)
    kp, ks, kt = jax.random.split(key, 3)
    params = init_params(kp, cfg)

    src = jax.random.randint(ks, (B, Ls), 2, cfg["enc_voc_size"], dtype=jnp.int32)
    trg = jax.random.randint(kt, (B, Lt), 2, cfg["dec_voc_size"], dtype=jnp.int32)
    # put some padding tokens in to exercise the pad masks
    src = src.at[1, -2:].set(cfg["src_pad_idx"])
    trg = trg.at[1, -3:].set(cfg["trg_pad_idx"])

    fwd = jax.jit(functools.partial(transformer_forward, cfg=cfg))
    out = fwd(params, src, trg)   # (B, Lt, dec_voc_size)
    jax.block_until_ready(out)
    assert out.shape == (B, Lt, cfg["dec_voc_size"])
    assert bool(jnp.all(jnp.isfinite(out)))
    print("KERNEL_OK")
</pallas_src>

<mosaic_0001>
module attributes {stable_mosaic.version = 11 : i64} {
  func.func @_matmul_kernel(%arg0: i32, %arg1: i32, %arg2: i32, %arg3: memref<16x32xbf16, #tpu.memory_space<vmem>>, %arg4: memref<32x96xbf16, #tpu.memory_space<vmem>>, %arg5: memref<1x96xf32, #tpu.memory_space<vmem>>, %arg6: memref<16x96xbf16, #tpu.memory_space<vmem>>, %arg7: memref<16x96xf32, #tpu.memory_space<vmem>>) attributes {dimension_semantics = [#tpu.dimension_semantics<parallel>, #tpu.dimension_semantics<parallel>, #tpu.dimension_semantics<arbitrary>], iteration_bounds = array<i64: 1, 1, 1>, scalar_prefetch = 0 : i64, scratch_operands = 1 : i64, tpu.core_type = #tpu.core_type<tc>, window_params = [{transform_indices = @transform_0, window_bounds = array<i64: 16, 32>}, {transform_indices = @transform_1, window_bounds = array<i64: 32, 96>}, {transform_indices = @transform_2, window_bounds = array<i64: 1, 96>}, {transform_indices = @transform_3, window_bounds = array<i64: 16, 96>}]} {
    %c0_i32 = arith.constant 0 : i32
    %0 = arith.cmpi eq, %arg2, %c0_i32 : i32
    %1 = arith.extui %0 : i1 to i32
    %c0_i32_0 = arith.constant 0 : i32
    %2 = arith.cmpi ne, %1, %c0_i32_0 : i32
    scf.if %2 {
      %cst_10 = arith.constant 0.000000e+00 : f32
      %12 = vector.broadcast %cst_10 : f32 to vector<16x96xf32>
      %c0_11 = arith.constant 0 : index
      %c0_12 = arith.constant 0 : index
      %13 = vector.load %arg7[%c0_11, %c0_12] : memref<16x96xf32, #tpu.memory_space<vmem>>, vector<16x96xf32>
      tpu.vector_store %arg7[%c0_11, %c0_12], %12 {strides = array<i32>} : memref<16x96xf32, #tpu.memory_space<vmem>>, vector<16x96xf32>,
    } else {
    }
    %c0 = arith.constant 0 : index
    %c0_1 = arith.constant 0 : index
    %3 = vector.load %arg7[%c0, %c0_1] : memref<16x96xf32, #tpu.memory_space<vmem>>, vector<16x96xf32>
    %c0_2 = arith.constant 0 : index
    %c0_3 = arith.constant 0 : index
    %4 = vector.load %arg3[%c0_2, %c0_3] : memref<16x32xbf16, #tpu.memory_space<vmem>>, vector<16x32xbf16>
    %c0_4 = arith.constant 0 : index
    %c0_5 = arith.constant 0 : index
    %5 = vector.load %arg4[%c0_4, %c0_5] : memref<32x96xbf16, #tpu.memory_space<vmem>>, vector<32x96xbf16>
    %cst = arith.constant dense<0.000000e+00> : vector<16x96xf32>
    %6 = tpu.matmul %4, %5, %cst {dimension_numbers = #tpu.dot_dimension_numbers<[1], [0], [0], [1], [0, 0, 1, 1], [], []>} : vector<16x32xbf16>, vector<32x96xbf16>, vector<16x96xf32> -> vector<16x96xf32>
    %7 = arith.addf %3, %6 : vector<16x96xf32>
    %c0_6 = arith.constant 0 : index
    %c0_7 = arith.constant 0 : index
    %8 = vector.load %arg7[%c0_6, %c0_7] : memref<16x96xf32, #tpu.memory_space<vmem>>, vector<16x96xf32>
    tpu.vector_store %arg7[%c0_6, %c0_7], %7 {strides = array<i32>} : memref<16x96xf32, #tpu.memory_space<vmem>>, vector<16x96xf32>,
    %c0_i32_8 = arith.constant 0 : i32
    %9 = arith.cmpi eq, %arg2, %c0_i32_8 : i32
    %10 = arith.extui %9 : i1 to i32
    %c0_i32_9 = arith.constant 0 : i32
    %11 = arith.cmpi ne, %10, %c0_i32_9 : i32
    scf.if %11 {
      %c0_10 = arith.constant 0 : index
      %c0_11 = arith.constant 0 : index
      %12 = vector.load %arg7[%c0_10, %c0_11] : memref<16x96xf32, #tpu.memory_space<vmem>>, vector<16x96xf32>
      %c0_12 = arith.constant 0 : index
      %c0_13 = arith.constant 0 : index
      %13 = vector.load %arg5[%c0_12, %c0_13] : memref<1x96xf32, #tpu.memory_space<vmem>>, vector<1x96xf32>
      %14 = vector.broadcast %13 : vector<1x96xf32> to vector<16x96xf32>
      %15 = arith.addf %12, %14 : vector<16x96xf32>
      %16 = arith.truncf %15 : vector<16x96xf32> to vector<16x96xbf16>
      %c0_14 = arith.constant 0 : index
      %c0_15 = arith.constant 0 : index
      %17 = vector.load %arg6[%c0_14, %c0_15] : memref<16x96xbf16, #tpu.memory_space<vmem>>, vector<16x96xbf16>
      tpu.vector_store %arg6[%c0_14, %c0_15], %16 {strides = array<i32>} : memref<16x96xbf16, #tpu.memory_space<vmem>>, vector<16x96xbf16>,
    } else {
    }
    return
  }
  func.func @transform_0(%arg0: i32, %arg1: i32, %arg2: i32) -> (i32, i32) {
    %c0_i32 = arith.constant 0 : i32
    return %arg0, %arg2 : i32, i32
  }
  func.func @transform_1(%arg0: i32, %arg1: i32, %arg2: i32) -> (i32, i32) {
    %c0_i32 = arith.constant 0 : i32
    return %arg2, %arg1 : i32, i32
  }
  func.func @transform_2(%arg0: i32, %arg1: i32, %arg2: i32) -> (i32, i32) {
    %c0_i32 = arith.constant 0 : i32
    %c0_i32_0 = arith.constant 0 : i32
    return %c0_i32, %arg1 : i32, i32
  }
  func.func @transform_3(%arg0: i32, %arg1: i32, %arg2: i32) -> (i32, i32) {
    %c0_i32 = arith.constant 0 : i32
    return %arg0, %arg1 : i32, i32
  }
}

module attributes {stable_mosaic.version = 11 : i64} {
  func.func @_flash_kernel(%arg0: i32, %arg1: i32, %arg2: i32, %arg3: i32, %arg4: memref<1x1x8x8xbf16, #tpu.memory_space<vmem>>, %arg5: memref<1x1x8x8xbf16, #tpu.memory_space<vmem>>, %arg6: memref<1x1x8x8xbf16, #tpu.memory_space<vmem>>, %arg7: memref<1x8x1xf32, #tpu.memory_space<vmem>>, %arg8: memref<1x1x8xf32, #tpu.memory_space<vmem>>, %arg9: memref<1x1x8x8xbf16, #tpu.memory_space<vmem>>, %arg10: memref<8x1xf32, #tpu.memory_space<vmem>>, %arg11: memref<8x1xf32, #tpu.memory_space<vmem>>, %arg12: memref<8x8xf32, #tpu.memory_space<vmem>>) attributes {dimension_semantics = [#tpu.dimension_semantics<parallel>, #tpu.dimension_semantics<parallel>, #tpu.dimension_semantics<parallel>, #tpu.dimension_semantics<arbitrary>], iteration_bounds = array<i64: 2, 4, 1, 1>, scalar_prefetch = 0 : i64, scratch_operands = 3 : i64, tpu.core_type = #tpu.core_type<tc>, window_params = [{transform_indices = @transform_0, window_bounds = array<i64: 1, 1, 8, 8>}, {transform_indices = @transform_1, window_bounds = array<i64: 1, 1, 8, 8>}, {transform_indices = @transform_2, window_bounds = array<i64: 1, 1, 8, 8>}, {transform_indices = @transform_3, window_bounds = array<i64: 1, 8, 1>}, {transform_indices = @transform_4, window_bounds = array<i64: 1, 1, 8>}, {transform_indices = @transform_5, window_bounds = array<i64: 1, 1, 8, 8>}]} {
    %c0_i32 = arith.constant 0 : i32
    %0 = arith.cmpi eq, %arg3, %c0_i32 : i32
    %1 = arith.extui %0 : i1 to i32
    %c0_i32_0 = arith.constant 0 : i32
    %2 = arith.cmpi ne, %1, %c0_i32_0 : i32
    scf.if %2 {
      %cst_39 = arith.constant -1.000000e+30 : f32
      %59 = vector.broadcast %cst_39 : f32 to vector<8x1xf32>
      %c0_40 = arith.constant 0 : index
      %c0_41 = arith.constant 0 : index
      %60 = vector.load %arg10[%c0_40, %c0_41] : memref<8x1xf32, #tpu.memory_space<vmem>>, vector<8x1xf32>
      tpu.vector_store %arg10[%c0_40, %c0_41], %59 {strides = array<i32>} : memref<8x1xf32, #tpu.memory_space<vmem>>, vector<8x1xf32>,
      %cst_42 = arith.constant 0.000000e+00 : f32
      %61 = vector.broadcast %cst_42 : f32 to vector<8x1xf32>
      %c0_43 = arith.constant 0 : index
      %c0_44 = arith.constant 0 : index
      %62 = vector.load %arg11[%c0_43, %c0_44] : memref<8x1xf32, #tpu.memory_space<vmem>>, vector<8x1xf32>
      tpu.vector_store %arg11[%c0_43, %c0_44], %61 {strides = array<i32>} : memref<8x1xf32, #tpu.memory_space<vmem>>, vector<8x1xf32>,
      %cst_45 = arith.constant 0.000000e+00 : f32
      %63 = vector.broadcast %cst_45 : f32 to vector<8x8xf32>
      %c0_46 = arith.constant 0 : index
      %c0_47 = arith.constant 0 : index
      %64 = vector.load %arg12[%c0_46, %c0_47] : memref<8x8xf32, #tpu.memory_space<vmem>>, vector<8x8xf32>
      tpu.vector_store %arg12[%c0_46, %c0_47], %63 {strides = array<i32>} : memref<8x8xf32, #tpu.memory_space<vmem>>, vector<8x8xf32>,
    } else {
    }
    %c0 = arith.constant 0 : index
    %c0_1 = arith.constant 0 : index
    %c0_2 = arith.constant 0 : index
    %c0_3 = arith.constant 0 : index
    %3 = vector.load %arg4[%c0, %c0_1, %c0_2, %c0_3] : memref<1x1x8x8xbf16, #tpu.memory_space<vmem>>, vector<1x1x8x8xbf16>
    %4 = vector.shape_cast %3 : vector<1x1x8x8xbf16> to vector<8x8xbf16>
    %c0_4 = arith.constant 0 : index
    %c0_5 = arith.constant 0 : index
    %c0_6 = arith.constant 0 : index
    %c0_7 = arith.constant 0 : index
    %5 = vector.load %arg5[%c0_4, %c0_5, %c0_6, %c0_7] : memref<1x1x8x8xbf16, #tpu.memory_space<vmem>>, vector<1x1x8x8xbf16>
    %6 = vector.shape_cast %5 : vector<1x1x8x8xbf16> to vector<8x8xbf16>
    %c0_8 = arith.constant 0 : index
    %c0_9 = arith.constant 0 : index
    %c0_10 = arith.constant 0 : index
    %c0_11 = arith.constant 0 : index
    %7 = vector.load %arg6[%c0_8, %c0_9, %c0_10, %c0_11] : memref<1x1x8x8xbf16, #tpu.memory_space<vmem>>, vector<1x1x8x8xbf16>
    %8 = vector.shape_cast %7 : vector<1x1x8x8xbf16> to vector<8x8xbf16>
    %cst = arith.constant dense<0.000000e+00> : vector<8x8xf32>
    %9 = tpu.matmul %4, %6, %cst {dimension_numbers = #tpu.dot_dimension_numbers<[1], [1], [0], [0], [0, 0, 1, 0], [], []>} : vector<8x8xbf16>, vector<8x8xbf16>, vector<8x8xf32> -> vector<8x8xf32>
    %cst_12 = arith.constant 0.353553385 : f32
    %10 = vector.broadcast %cst_12 : f32 to vector<8x8xf32>
    %11 = arith.mulf %9, %10 : vector<8x8xf32>
    %c0_13 = arith.constant 0 : index
    %c0_14 = arith.constant 0 : index
    %c0_15 = arith.constant 0 : index
    %12 = vector.load %arg7[%c0_13, %c0_14, %c0_15] : memref<1x8x1xf32, #tpu.memory_space<vmem>>, vector<1x8x1xf32>
    %13 = vector.shape_cast %12 : vector<1x8x1xf32> to vector<8x1xf32>
    %c0_16 = arith.constant 0 : index
    %c0_17 = arith.constant 0 : index
    %c0_18 = arith.constant 0 : index
    %14 = vector.load %arg8[%c0_16, %c0_17, %c0_18] : memref<1x1x8xf32, #tpu.memory_space<vmem>>, vector<1x1x8xf32>
    %15 = vector.shape_cast %14 : vector<1x1x8xf32> to vector<1x8xf32>
    %16 = vector.broadcast %13 : vector<8x1xf32> to vector<8x8xf32>
    %17 = vector.broadcast %15 : vector<1x8xf32> to vector<8x8xf32>
    %18 = arith.mulf %16, %17 : vector<8x8xf32>
    %cst_19 = arith.constant 0.000000e+00 : f32
    %19 = vector.broadcast %cst_19 : f32 to vector<8x8xf32>
    %20 = arith.cmpf ogt, %18, %19 : vector<8x8xf32>
    %c8_i32 = arith.constant 8 : i32
    %21 = arith.muli %arg2, %c8_i32 : i32
    %22 = tpu.iota {dimensions = array<i32: 0>} : vector<8x8xi32>
    %23 = vector.broadcast %21 : i32 to vector<8x8xi32>
    %24 = arith.addi %23, %22 : vector<8x8xi32>
    %c8_i32_20 = arith.constant 8 : i32
    %25 = arith.muli %arg3, %c8_i32_20 : i32
    %26 = tpu.iota {dimensions = array<i32: 1>} : vector<8x8xi32>
    %27 = vector.broadcast %25 : i32 to vector<8x8xi32>
    %28 = arith.addi %27, %26 : vector<8x8xi32>
    %29 = arith.cmpi sle, %28, %24 : vector<8x8xi32>
    %30 = arith.andi %20, %29 : vector<8x8xi1>
    %cst_21 = arith.constant -1.000000e+04 : f32
    %31 = vector.broadcast %cst_21 : f32 to vector<8x8xf32>
    %32 = arith.select %30, %11, %31 : vector<8x8xi1>, vector<8x8xf32>
    %c0_22 = arith.constant 0 : index
    %c0_23 = arith.constant 0 : index
    %33 = vector.load %arg10[%c0_22, %c0_23] : memref<8x1xf32, #tpu.memory_space<vmem>>, vector<8x1xf32>
    %cst_24 = arith.constant dense<0xFF800000> : vector<8xf32>
    %34 = vector.multi_reduction <maximumf>, %32, %cst_24 [1] : vector<8x8xf32> to vector<8xf32>
    %35 = vector.shape_cast %34 : vector<8xf32> to vector<8x1xf32>
    %36 = arith.maximumf %33, %35 : vector<8x1xf32>
    %37 = arith.subf %33, %36 : vector<8x1xf32>
    %38 = math.exp %37 : vector<8x1xf32>
    %39 = vector.broadcast %36 : vector<8x1xf32> to vector<8x8xf32>
    %40 = arith.subf %32, %39 : vector<8x8xf32>
    %41 = math.exp %40 : vector<8x8xf32>
    %c0_25 = arith.constant 0 : index
    %c0_26 = arith.constant 0 : index
    %42 = vector.load %arg11[%c0_25, %c0_26] : memref<8x1xf32, #tpu.memory_space<vmem>>, vector<8x1xf32>
    %43 = arith.mulf %38, %42 : vector<8x1xf32>
    %cst_27 = arith.constant dense<0.000000e+00> : vector<8xf32>
    %44 = vector.multi_reduction <add>, %41, %cst_27 [1] : vector<8x8xf32> to vector<8xf32>
    %45 = vector.shape_cast %44 : vector<8xf32> to vector<8x1xf32>
    %46 = arith.addf %43, %45 : vector<8x1xf32>
    %c0_28 = arith.constant 0 : index
    %c0_29 = arith.constant 0 : index
    %47 = vector.load %arg11[%c0_28, %c0_29] : memref<8x1xf32, #tpu.memory_space<vmem>>, vector<8x1xf32>
    tpu.vector_store %arg11[%c0_28, %c0_29], %46 {strides = array<i32>} : memref<8x1xf32, #tpu.memory_space<vmem>>, vector<8x1xf32>,
    %c0_30 = arith.constant 0 : index
    %c0_31 = arith.constant 0 : index
    %48 = vector.load %arg12[%c0_30, %c0_31] : memref<8x8xf32, #tpu.memory_space<vmem>>, vector<8x8xf32>
    %49 = vector.broadcast %38 : vector<8x1xf32> to vector<8x8xf32>
    %50 = arith.mulf %49, %48 : vector<8x8xf32>
    %51 = arith.truncf %41 : vector<8x8xf32> to vector<8x8xbf16>
    %cst_32 = arith.constant dense<0.000000e+00> : vector<8x8xf32>
    %52 = tpu.matmul %51, %8, %cst_32 {dimension_numbers = #tpu.dot_dimension_numbers<[1], [0], [0], [1], [0, 0, 1, 1], [], []>} : vector<8x8xbf16>, vector<8x8xbf16>, vector<8x8xf32> -> vector<8x8xf32>
    %53 = arith.addf %50, %52 : vector<8x8xf32>
    %c0_33 = arith.constant 0 : index
    %c0_34 = arith.constant 0 : index
    %54 = vector.load %arg12[%c0_33, %c0_34] : memref<8x8xf32, #tpu.memory_space<vmem>>, vector<8x8xf32>
    tpu.vector_store %arg12[%c0_33, %c0_34], %53 {strides = array<i32>} : memref<8x8xf32, #tpu.memory_space<vmem>>, vector<8x8xf32>,
    %c0_35 = arith.constant 0 : index
    %c0_36 = arith.constant 0 : index
    %55 = vector.load %arg10[%c0_35, %c0_36] : memref<8x1xf32, #tpu.memory_space<vmem>>, vector<8x1xf32>
    tpu.vector_store %arg10[%c0_35, %c0_36], %36 {strides = array<i32>} : memref<8x1xf32, #tpu.memory_space<vmem>>, vector<8x1xf32>,
    %c0_i32_37 = arith.constant 0 : i32
    %56 = arith.cmpi eq, %arg3, %c0_i32_37 : i32
    %57 = arith.extui %56 : i1 to i32
    %c0_i32_38 = arith.constant 0 : i32
    %58 = arith.cmpi ne, %57, %c0_i32_38 : i32
    scf.if %58 {
      %c0_39 = arith.constant 0 : index
      %c0_40 = arith.constant 0 : index
      %59 = vector.load %arg12[%c0_39, %c0_40] : memref<8x8xf32, #tpu.memory_space<vmem>>, vector<8x8xf32>
      %c0_41 = arith.constant 0 : index
      %c0_42 = arith.constant 0 : index
      %60 = vector.load %arg11[%c0_41, %c0_42] : memref<8x1xf32, #tpu.memory_space<vmem>>, vector<8x1xf32>
      %61 = vector.broadcast %60 : vector<8x1xf32> to vector<8x8xf32>
      %62 = arith.divf %59, %61 : vector<8x8xf32>
      %63 = arith.truncf %62 : vector<8x8xf32> to vector<8x8xbf16>
      %c0_43 = arith.constant 0 : index
      %c0_44 = arith.constant 0 : index
      %c0_45 = arith.constant 0 : index
      %c0_46 = arith.constant 0 : index
      %64 = vector.load %arg9[%c0_43, %c0_44, %c0_45, %c0_46] : memref<1x1x8x8xbf16, #tpu.memory_space<vmem>>, vector<1x1x8x8xbf16>
      %65 = vector.shape_cast %64 : vector<1x1x8x8xbf16> to vector<8x8xbf16>
      %66 = vector.shape_cast %63 : vector<8x8xbf16> to vector<1x1x8x8xbf16>
      tpu.vector_store %arg9[%c0_43, %c0_44, %c0_45, %c0_46], %66 {strides = array<i32>} : memref<1x1x8x8xbf16, #tpu.memory_space<vmem>>, vector<1x1x8x8xbf16>,
    } else {
    }
    return
  }
  func.func @transform_0(%arg0: i32, %arg1: i32, %arg2: i32, %arg3: i32) -> (i32, i32, i32, i32) {
    %c0_i32 = arith.constant 0 : i32
    %c0_i32_0 = arith.constant 0 : i32
    return %arg0, %arg1, %arg2, %c0_i32 : i32, i32, i32, i32
  }
  func.func @transform_1(%arg0: i32, %arg1: i32, %arg2: i32, %arg3: i32) -> (i32, i32, i32, i32) {
    %c0_i32 = arith.constant 0 : i32
    %c0_i32_0 = arith.constant 0 : i32
    return %arg0, %arg1, %arg3, %c0_i32 : i32, i32, i32, i32
  }
  func.func @transform_2(%arg0: i32, %arg1: i32, %arg2: i32, %arg3: i32) -> (i32, i32, i32, i32) {
    %c0_i32 = arith.constant 0 : i32
    %c0_i32_0 = arith.constant 0 : i32
    return %arg0, %arg1, %arg3, %c0_i32 : i32, i32, i32, i32
  }
  func.func @transform_3(%arg0: i32, %arg1: i32, %arg2: i32, %arg3: i32) -> (i32, i32, i32) {
    %c0_i32 = arith.constant 0 : i32
    %c0_i32_0 = arith.constant 0 : i32
    return %arg0, %arg2, %c0_i32 : i32, i32, i32
  }
  func.func @transform_4(%arg0: i32, %arg1: i32, %arg2: i32, %arg3: i32) -> (i32, i32, i32) {
    %c0_i32 = arith.constant 0 : i32
    %c0_i32_0 = arith.constant 0 : i32
    return %arg0, %c0_i32, %arg3 : i32, i32, i32
  }
  func.func @transform_5(%arg0: i32, %arg1: i32, %arg2: i32, %arg3: i32) -> (i32, i32, i32, i32) {
    %c0_i32 = arith.constant 0 : i32
    %c0_i32_0 = arith.constant 0 : i32
    return %arg0, %arg1, %arg2, %c0_i32 : i32, i32, i32, i32
  }
}

module attributes {stable_mosaic.version = 11 : i64} {
  func.func @_matmul_kernel(%arg0: i32, %arg1: i32, %arg2: i32, %arg3: memref<16x32xbf16, #tpu.memory_space<vmem>>, %arg4: memref<32x32xbf16, #tpu.memory_space<vmem>>, %arg5: memref<1x32xf32, #tpu.memory_space<vmem>>, %arg6: memref<16x32xbf16, #tpu.memory_space<vmem>>, %arg7: memref<16x32xf32, #tpu.memory_space<vmem>>) attributes {dimension_semantics = [#tpu.dimension_semantics<parallel>, #tpu.dimension_semantics<parallel>, #tpu.dimension_semantics<arbitrary>], iteration_bounds = array<i64: 1, 1, 1>, scalar_prefetch = 0 : i64, scratch_operands = 1 : i64, tpu.core_type = #tpu.core_type<tc>, window_params = [{transform_indices = @transform_0, window_bounds = array<i64: 16, 32>}, {transform_indices = @transform_1, window_bounds = array<i64: 32, 32>}, {transform_indices = @transform_2, window_bounds = array<i64: 1, 32>}, {transform_indices = @transform_3, window_bounds = array<i64: 16, 32>}]} {
    %c0_i32 = arith.constant 0 : i32
    %0 = arith.cmpi eq, %arg2, %c0_i32 : i32
    %1 = arith.extui %0 : i1 to i32
    %c0_i32_0 = arith.constant 0 : i32
    %2 = arith.cmpi ne, %1, %c0_i32_0 : i32
    scf.if %2 {
      %cst_10 = arith.constant 0.000000e+00 : f32
      %12 = vector.broadcast %cst_10 : f32 to vector<16x32xf32>
      %c0_11 = arith.constant 0 : index
      %c0_12 = arith.constant 0 : index
      %13 = vector.load %arg7[%c0_11, %c0_12] : memref<16x32xf32, #tpu.memory_space<vmem>>, vector<16x32xf32>
      tpu.vector_store %arg7[%c0_11, %c0_12], %12 {strides = array<i32>} : memref<16x32xf32, #tpu.memory_space<vmem>>, vector<16x32xf32>,
    } else {
    }
    %c0 = arith.constant 0 : index
    %c0_1 = arith.constant 0 : index
    %3 = vector.load %arg7[%c0, %c0_1] : memref<16x32xf32, #tpu.memory_space<vmem>>, vector<16x32xf32>
    %c0_2 = arith.constant 0 : index
    %c0_3 = arith.constant 0 : index
    %4 = vector.load %arg3[%c0_2, %c0_3] : memref<16x32xbf16, #tpu.memory_space<vmem>>, vector<16x32xbf16>
    %c0_4 = arith.constant 0 : index
    %c0_5 = arith.constant 0 : index
    %5 = vector.load %arg4[%c0_4, %c0_5] : memref<32x32xbf16, #tpu.memory_space<vmem>>, vector<32x32xbf16>
    %cst = arith.constant dense<0.000000e+00> : vector<16x32xf32>
    %6 = tpu.matmul %4, %5, %cst {dimension_numbers = #tpu.dot_dimension_numbers<[1], [0], [0], [1], [0, 0, 1, 1], [], []>} : vector<16x32xbf16>, vector<32x32xbf16>, vector<16x32xf32> -> vector<16x32xf32>
    %7 = arith.addf %3, %6 : vector<16x32xf32>
    %c0_6 = arith.constant 0 : index
    %c0_7 = arith.constant 0 : index
    %8 = vector.load %arg7[%c0_6, %c0_7] : memref<16x32xf32, #tpu.memory_space<vmem>>, vector<16x32xf32>
    tpu.vector_store %arg7[%c0_6, %c0_7], %7 {strides = array<i32>} : memref<16x32xf32, #tpu.memory_space<vmem>>, vector<16x32xf32>,
    %c0_i32_8 = arith.constant 0 : i32
    %9 = arith.cmpi eq, %arg2, %c0_i32_8 : i32
    %10 = arith.extui %9 : i1 to i32
    %c0_i32_9 = arith.constant 0 : i32
    %11 = arith.cmpi ne, %10, %c0_i32_9 : i32
    scf.if %11 {
      %c0_10 = arith.constant 0 : index
      %c0_11 = arith.constant 0 : index
      %12 = vector.load %arg7[%c0_10, %c0_11] : memref<16x32xf32, #tpu.memory_space<vmem>>, vector<16x32xf32>
      %c0_12 = arith.constant 0 : index
      %c0_13 = arith.constant 0 : index
      %13 = vector.load %arg5[%c0_12, %c0_13] : memref<1x32xf32, #tpu.memory_space<vmem>>, vector<1x32xf32>
      %14 = vector.broadcast %13 : vector<1x32xf32> to vector<16x32xf32>
      %15 = arith.addf %12, %14 : vector<16x32xf32>
      %16 = arith.truncf %15 : vector<16x32xf32> to vector<16x32xbf16>
      %c0_14 = arith.constant 0 : index
      %c0_15 = arith.constant 0 : index
      %17 = vector.load %arg6[%c0_14, %c0_15] : memref<16x32xbf16, #tpu.memory_space<vmem>>, vector<16x32xbf16>
      tpu.vector_store %arg6[%c0_14, %c0_15], %16 {strides = array<i32>} : memref<16x32xbf16, #tpu.memory_space<vmem>>, vector<16x32xbf16>,
    } else {
    }
    return
  }
  func.func @transform_0(%arg0: i32, %arg1: i32, %arg2: i32) -> (i32, i32) {
    %c0_i32 = arith.constant 0 : i32
    return %arg0, %arg2 : i32, i32
  }
  func.func @transform_1(%arg0: i32, %arg1: i32, %arg2: i32) -> (i32, i32) {
    %c0_i32 = arith.constant 0 : i32
    return %arg2, %arg1 : i32, i32
  }
  func.func @transform_2(%arg0: i32, %arg1: i32, %arg2: i32) -> (i32, i32) {
    %c0_i32 = arith.constant 0 : i32
    %c0_i32_0 = arith.constant 0 : i32
    return %c0_i32, %arg1 : i32, i32
  }
  func.func @transform_3(%arg0: i32, %arg1: i32, %arg2: i32) -> (i32, i32) {
    %c0_i32 = arith.constant 0 : i32
    return %arg0, %arg1 : i32, i32
  }
}

module attributes {stable_mosaic.version = 11 : i64} {
  func.func @_matmul_add_ln_kernel(%arg0: i32, %arg1: i32, %arg2: memref<16x32xbf16, #tpu.memory_space<vmem>>, %arg3: memref<32x32xbf16, #tpu.memory_space<vmem>>, %arg4: memref<1x32xf32, #tpu.memory_space<vmem>>, %arg5: memref<16x32xbf16, #tpu.memory_space<vmem>>, %arg6: memref<1x32xf32, #tpu.memory_space<vmem>>, %arg7: memref<1x32xf32, #tpu.memory_space<vmem>>, %arg8: memref<16x32xbf16, #tpu.memory_space<vmem>>, %arg9: memref<16x32xf32, #tpu.memory_space<vmem>>) attributes {dimension_semantics = [#tpu.dimension_semantics<parallel>, #tpu.dimension_semantics<arbitrary>], iteration_bounds = array<i64: 1, 1>, scalar_prefetch = 0 : i64, scratch_operands = 1 : i64, tpu.core_type = #tpu.core_type<tc>, window_params = [{transform_indices = @transform_0, window_bounds = array<i64: 16, 32>}, {transform_indices = @transform_1, window_bounds = array<i64: 32, 32>}, {pipeline_mode = #tpu.pipeline_mode<synchronous>, transform_indices = @transform_2, window_bounds = array<i64: 1, 32>}, {transform_indices = @transform_3, window_bounds = array<i64: 16, 32>}, {pipeline_mode = #tpu.pipeline_mode<synchronous>, transform_indices = @transform_4, window_bounds = array<i64: 1, 32>}, {pipeline_mode = #tpu.pipeline_mode<synchronous>, transform_indices = @transform_5, window_bounds = array<i64: 1, 32>}, {transform_indices = @transform_6, window_bounds = array<i64: 16, 32>}]} {
    %c0_i32 = arith.constant 0 : i32
    %0 = arith.cmpi eq, %arg1, %c0_i32 : i32
    %1 = arith.extui %0 : i1 to i32
    %c0_i32_0 = arith.constant 0 : i32
    %2 = arith.cmpi ne, %1, %c0_i32_0 : i32
    scf.if %2 {
      %cst_10 = arith.constant 0.000000e+00 : f32
      %12 = vector.broadcast %cst_10 : f32 to vector<16x32xf32>
      %c0_11 = arith.constant 0 : index
      %c0_12 = arith.constant 0 : index
      %13 = vector.load %arg9[%c0_11, %c0_12] : memref<16x32xf32, #tpu.memory_space<vmem>>, vector<16x32xf32>
      tpu.vector_store %arg9[%c0_11, %c0_12], %12 {strides = array<i32>} : memref<16x32xf32, #tpu.memory_space<vmem>>, vector<16x32xf32>,
    } else {
    }
    %c0 = arith.constant 0 : index
    %c0_1 = arith.constant 0 : index
    %3 = vector.load %arg9[%c0, %c0_1] : memref<16x32xf32, #tpu.memory_space<vmem>>, vector<16x32xf32>
    %c0_2 = arith.constant 0 : index
    %c0_3 = arith.constant 0 : index
    %4 = vector.load %arg2[%c0_2, %c0_3] : memref<16x32xbf16, #tpu.memory_space<vmem>>, vector<16x32xbf16>
    %c0_4 = arith.constant 0 : index
    %c0_5 = arith.constant 0 : index
    %5 = vector.load %arg3[%c0_4, %c0_5] : memref<32x32xbf16, #tpu.memory_space<vmem>>, vector<32x32xbf16>
    %cst = arith.constant dense<0.000000e+00> : vector<16x32xf32>
    %6 = tpu.matmul %4, %5, %cst {dimension_numbers = #tpu.dot_dimension_numbers<[1], [0], [0], [1], [0, 0, 1, 1], [], []>} : vector<16x32xbf16>, vector<32x32xbf16>, vector<16x32xf32> -> vector<16x32xf32>
    %7 = arith.addf %3, %6 : vector<16x32xf32>
    %c0_6 = arith.constant 0 : index
    %c0_7 = arith.constant 0 : index
    %8 = vector.load %arg9[%c0_6, %c0_7] : memref<16x32xf32, #tpu.memory_space<vmem>>, vector<16x32xf32>
    tpu.vector_store %arg9[%c0_6, %c0_7], %7 {strides = array<i32>} : memref<16x32xf32, #tpu.memory_space<vmem>>, vector<16x32xf32>,
    %c0_i32_8 = arith.constant 0 : i32
    %9 = arith.cmpi eq, %arg1, %c0_i32_8 : i32
    %10 = arith.extui %9 : i1 to i32
    %c0_i32_9 = arith.constant 0 : i32
    %11 = arith.cmpi ne, %10, %c0_i32_9 : i32
    scf.if %11 {
      %c0_10 = arith.constant 0 : index
      %c0_11 = arith.constant 0 : index
      %12 = vector.load %arg9[%c0_10, %c0_11] : memref<16x32xf32, #tpu.memory_space<vmem>>, vector<16x32xf32>
      %c0_12 = arith.constant 0 : index
      %c0_13 = arith.constant 0 : index
      %13 = vector.load %arg4[%c0_12, %c0_13] : memref<1x32xf32, #tpu.memory_space<vmem>>, vector<1x32xf32>
      %14 = vector.broadcast %13 : vector<1x32xf32> to vector<16x32xf32>
      %15 = arith.addf %12, %14 : vector<16x32xf32>
      %c0_14 = arith.constant 0 : index
      %c0_15 = arith.constant 0 : index
      %16 = vector.load %arg5[%c0_14, %c0_15] : memref<16x32xbf16, #tpu.memory_space<vmem>>, vector<16x32xbf16>
      %17 = arith.extf %16 : vector<16x32xbf16> to vector<16x32xf32>
      %18 = arith.addf %15, %17 : vector<16x32xf32>
      %cst_16 = arith.constant dense<0.000000e+00> : vector<16xf32>
      %19 = vector.multi_reduction <add>, %18, %cst_16 [1] : vector<16x32xf32> to vector<16xf32>
      %20 = vector.shape_cast %19 : vector<16xf32> to vector<16x1xf32>
      %cst_17 = arith.constant 3.200000e+01 : f32
      %21 = vector.broadcast %cst_17 : f32 to vector<16x1xf32>
      %22 = arith.divf %20, %21 : vector<16x1xf32>
      %23 = vector.broadcast %22 : vector<16x1xf32> to vector<16x32xf32>
      %24 = arith.subf %18, %23 : vector<16x32xf32>
      %25 = arith.mulf %24, %24 : vector<16x32xf32>
      %cst_18 = arith.constant dense<0.000000e+00> : vector<16xf32>
      %26 = vector.multi_reduction <add>, %25, %cst_18 [1] : vector<16x32xf32> to vector<16xf32>
      %27 = vector.shape_cast %26 : vector<16xf32> to vector<16x1xf32>
      %cst_19 = arith.constant 3.200000e+01 : f32
      %28 = vector.broadcast %cst_19 : f32 to vector<16x1xf32>
      %29 = arith.divf %27, %28 : vector<16x1xf32>
      %30 = vector.broadcast %22 : vector<16x1xf32> to vector<16x32xf32>
      %31 = arith.subf %18, %30 : vector<16x32xf32>
      %cst_20 = arith.constant 9.99999996E-13 : f32
      %32 = vector.broadcast %cst_20 : f32 to vector<16x1xf32>
      %33 = arith.addf %29, %32 : vector<16x1xf32>
      %34 = math.rsqrt %33 : vector<16x1xf32>
      %35 = vector.broadcast %34 : vector<16x1xf32> to vector<16x32xf32>
      %36 = arith.mulf %31, %35 : vector<16x32xf32>
      %c0_21 = arith.constant 0 : index
      %c0_22 = arith.constant 0 : index
      %37 = vector.load %arg6[%c0_21, %c0_22] : memref<1x32xf32, #tpu.memory_space<vmem>>, vector<1x32xf32>
      %38 = vector.broadcast %37 : vector<1x32xf32> to vector<16x32xf32>
      %39 = arith.mulf %36, %38 : vector<16x32xf32>
      %c0_23 = arith.constant 0 : index
      %c0_24 = arith.constant 0 : index
      %40 = vector.load %arg7[%c0_23, %c0_24] : memref<1x32xf32, #tpu.memory_space<vmem>>, vector<1x32xf32>
      %41 = vector.broadcast %40 : vector<1x32xf32> to vector<16x32xf32>
      %42 = arith.addf %39, %41 : vector<16x32xf32>
      %43 = arith.truncf %42 : vector<16x32xf32> to vector<16x32xbf16>
      %c0_25 = arith.constant 0 : index
      %c0_26 = arith.constant 0 : index
      %44 = vector.load %arg8[%c0_25, %c0_26] : memref<16x32xbf16, #tpu.memory_space<vmem>>, vector<16x32xbf16>
      tpu.vector_store %arg8[%c0_25, %c0_26], %43 {strides = array<i32>} : memref<16x32xbf16, #tpu.memory_space<vmem>>, vector<16x32xbf16>,
    } else {
    }
    return
  }
  func.func @transform_0(%arg0: i32, %arg1: i32) -> (i32, i32) {
    %c0_i32 = arith.constant 0 : i32
    return %arg0, %arg1 : i32, i32
  }
  func.func @transform_1(%arg0: i32, %arg1: i32) -> (i32, i32) {
    %c0_i32 = arith.constant 0 : i32
    %c0_i32_0 = arith.constant 0 : i32
    return %arg1, %c0_i32 : i32, i32
  }
  func.func @transform_2(%arg0: i32, %arg1: i32) -> (i32, i32) {
    %c0_i32 = arith.constant 0 : i32
    %c0_i32_0 = arith.constant 0 : i32
    %c0_i32_1 = arith.constant 0 : i32
    return %c0_i32, %c0_i32_0 : i32, i32
  }
  func.func @transform_3(%arg0: i32, %arg1: i32) -> (i32, i32) {
    %c0_i32 = arith.constant 0 : i32
    %c0_i32_0 = arith.constant 0 : i32
    return %arg0, %c0_i32 : i32, i32
  }
  func.func @transform_4(%arg0: i32, %arg1: i32) -> (i32, i32) {
    %c0_i32 = arith.constant 0 : i32
    %c0_i32_0 = arith.constant 0 : i32
    %c0_i32_1 = arith.constant 0 : i32
    return %c0_i32, %c0_i32_0 : i32, i32
  }
  func.func @transform_5(%arg0: i32, %arg1: i32) -> (i32, i32) {
    %c0_i32 = arith.constant 0 : i32
    %c0_i32_0 = arith.constant 0 : i32
    %c0_i32_1 = arith.constant 0 : i32
    return %c0_i32, %c0_i32_0 : i32, i32
  }
  func.func @transform_6(%arg0: i32, %arg1: i32) -> (i32, i32) {
    %c0_i32 = arith.constant 0 : i32
    %c0_i32_0 = arith.constant 0 : i32
    return %arg0, %c0_i32 : i32, i32
  }
}

module attributes {stable_mosaic.version = 11 : i64} {
  func.func @_matmul_kernel(%arg0: i32, %arg1: i32, %arg2: i32, %arg3: memref<16x32xbf16, #tpu.memory_space<vmem>>, %arg4: memref<32x64xbf16, #tpu.memory_space<vmem>>, %arg5: memref<1x64xf32, #tpu.memory_space<vmem>>, %arg6: memref<16x64xbf16, #tpu.memory_space<vmem>>, %arg7: memref<16x64xf32, #tpu.memory_space<vmem>>) attributes {dimension_semantics = [#tpu.dimension_semantics<parallel>, #tpu.dimension_semantics<parallel>, #tpu.dimension_semantics<arbitrary>], iteration_bounds = array<i64: 1, 1, 1>, scalar_prefetch = 0 : i64, scratch_operands = 1 : i64, tpu.core_type = #tpu.core_type<tc>, window_params = [{transform_indices = @transform_0, window_bounds = array<i64: 16, 32>}, {transform_indices = @transform_1, window_bounds = array<i64: 32, 64>}, {transform_indices = @transform_2, window_bounds = array<i64: 1, 64>}, {transform_indices = @transform_3, window_bounds = array<i64: 16, 64>}]} {
    %c0_i32 = arith.constant 0 : i32
    %0 = arith.cmpi eq, %arg2, %c0_i32 : i32
    %1 = arith.extui %0 : i1 to i32
    %c0_i32_0 = arith.constant 0 : i32
    %2 = arith.cmpi ne, %1, %c0_i32_0 : i32
    scf.if %2 {
      %cst_10 = arith.constant 0.000000e+00 : f32
      %12 = vector.broadcast %cst_10 : f32 to vector<16x64xf32>
      %c0_11 = arith.constant 0 : index
      %c0_12 = arith.constant 0 : index
      %13 = vector.load %arg7[%c0_11, %c0_12] : memref<16x64xf32, #tpu.memory_space<vmem>>, vector<16x64xf32>
      tpu.vector_store %arg7[%c0_11, %c0_12], %12 {strides = array<i32>} : memref<16x64xf32, #tpu.memory_space<vmem>>, vector<16x64xf32>,
    } else {
    }
    %c0 = arith.constant 0 : index
    %c0_1 = arith.constant 0 : index
    %3 = vector.load %arg7[%c0, %c0_1] : memref<16x64xf32, #tpu.memory_space<vmem>>, vector<16x64xf32>
    %c0_2 = arith.constant 0 : index
    %c0_3 = arith.constant 0 : index
    %4 = vector.load %arg3[%c0_2, %c0_3] : memref<16x32xbf16, #tpu.memory_space<vmem>>, vector<16x32xbf16>
    %c0_4 = arith.constant 0 : index
    %c0_5 = arith.constant 0 : index
    %5 = vector.load %arg4[%c0_4, %c0_5] : memref<32x64xbf16, #tpu.memory_space<vmem>>, vector<32x64xbf16>
    %cst = arith.constant dense<0.000000e+00> : vector<16x64xf32>
    %6 = tpu.matmul %4, %5, %cst {dimension_numbers = #tpu.dot_dimension_numbers<[1], [0], [0], [1], [0, 0, 1, 1], [], []>} : vector<16x32xbf16>, vector<32x64xbf16>, vector<16x64xf32> -> vector<16x64xf32>
    %7 = arith.addf %3, %6 : vector<16x64xf32>
    %c0_6 = arith.constant 0 : index
    %c0_7 = arith.constant 0 : index
    %8 = vector.load %arg7[%c0_6, %c0_7] : memref<16x64xf32, #tpu.memory_space<vmem>>, vector<16x64xf32>
    tpu.vector_store %arg7[%c0_6, %c0_7], %7 {strides = array<i32>} : memref<16x64xf32, #tpu.memory_space<vmem>>, vector<16x64xf32>,
    %c0_i32_8 = arith.constant 0 : i32
    %9 = arith.cmpi eq, %arg2, %c0_i32_8 : i32
    %10 = arith.extui %9 : i1 to i32
    %c0_i32_9 = arith.constant 0 : i32
    %11 = arith.cmpi ne, %10, %c0_i32_9 : i32
    scf.if %11 {
      %c0_10 = arith.constant 0 : index
      %c0_11 = arith.constant 0 : index
      %12 = vector.load %arg7[%c0_10, %c0_11] : memref<16x64xf32, #tpu.memory_space<vmem>>, vector<16x64xf32>
      %c0_12 = arith.constant 0 : index
      %c0_13 = arith.constant 0 : index
      %13 = vector.load %arg5[%c0_12, %c0_13] : memref<1x64xf32, #tpu.memory_space<vmem>>, vector<1x64xf32>
      %14 = vector.broadcast %13 : vector<1x64xf32> to vector<16x64xf32>
      %15 = arith.addf %12, %14 : vector<16x64xf32>
      %cst_14 = arith.constant 0.000000e+00 : f32
      %16 = vector.broadcast %cst_14 : f32 to vector<16x64xf32>
      %17 = arith.maximumf %15, %16 : vector<16x64xf32>
      %18 = arith.truncf %17 : vector<16x64xf32> to vector<16x64xbf16>
      %c0_15 = arith.constant 0 : index
      %c0_16 = arith.constant 0 : index
      %19 = vector.load %arg6[%c0_15, %c0_16] : memref<16x64xbf16, #tpu.memory_space<vmem>>, vector<16x64xbf16>
      tpu.vector_store %arg6[%c0_15, %c0_16], %18 {strides = array<i32>} : memref<16x64xbf16, #tpu.memory_space<vmem>>, vector<16x64xbf16>,
    } else {
    }
    return
  }
  func.func @transform_0(%arg0: i32, %arg1: i32, %arg2: i32) -> (i32, i32) {
    %c0_i32 = arith.constant 0 : i32
    return %arg0, %arg2 : i32, i32
  }
  func.func @transform_1(%arg0: i32, %arg1: i32, %arg2: i32) -> (i32, i32) {
    %c0_i32 = arith.constant 0 : i32
    return %arg2, %arg1 : i32, i32
  }
  func.func @transform_2(%arg0: i32, %arg1: i32, %arg2: i32) -> (i32, i32) {
    %c0_i32 = arith.constant 0 : i32
    %c0_i32_0 = arith.constant 0 : i32
    return %c0_i32, %arg1 : i32, i32
  }
  func.func @transform_3(%arg0: i32, %arg1: i32, %arg2: i32) -> (i32, i32) {
    %c0_i32 = arith.constant 0 : i32
    return %arg0, %arg1 : i32, i32
  }
}

module attributes {stable_mosaic.version = 11 : i64} {
  func.func @_matmul_add_ln_kernel(%arg0: i32, %arg1: i32, %arg2: memref<16x64xbf16, #tpu.memory_space<vmem>>, %arg3: memref<64x32xbf16, #tpu.memory_space<vmem>>, %arg4: memref<1x32xf32, #tpu.memory_space<vmem>>, %arg5: memref<16x32xbf16, #tpu.memory_space<vmem>>, %arg6: memref<1x32xf32, #tpu.memory_space<vmem>>, %arg7: memref<1x32xf32, #tpu.memory_space<vmem>>, %arg8: memref<16x32xbf16, #tpu.memory_space<vmem>>, %arg9: memref<16x32xf32, #tpu.memory_space<vmem>>) attributes {dimension_semantics = [#tpu.dimension_semantics<parallel>, #tpu.dimension_semantics<arbitrary>], iteration_bounds = array<i64: 1, 1>, scalar_prefetch = 0 : i64, scratch_operands = 1 : i64, tpu.core_type = #tpu.core_type<tc>, window_params = [{transform_indices = @transform_0, window_bounds = array<i64: 16, 64>}, {transform_indices = @transform_1, window_bounds = array<i64: 64, 32>}, {pipeline_mode = #tpu.pipeline_mode<synchronous>, transform_indices = @transform_2, window_bounds = array<i64: 1, 32>}, {transform_indices = @transform_3, window_bounds = array<i64: 16, 32>}, {pipeline_mode = #tpu.pipeline_mode<synchronous>, transform_indices = @transform_4, window_bounds = array<i64: 1, 32>}, {pipeline_mode = #tpu.pipeline_mode<synchronous>, transform_indices = @transform_5, window_bounds = array<i64: 1, 32>}, {transform_indices = @transform_6, window_bounds = array<i64: 16, 32>}]} {
    %c0_i32 = arith.constant 0 : i32
    %0 = arith.cmpi eq, %arg1, %c0_i32 : i32
    %1 = arith.extui %0 : i1 to i32
    %c0_i32_0 = arith.constant 0 : i32
    %2 = arith.cmpi ne, %1, %c0_i32_0 : i32
    scf.if %2 {
      %cst_10 = arith.constant 0.000000e+00 : f32
      %12 = vector.broadcast %cst_10 : f32 to vector<16x32xf32>
      %c0_11 = arith.constant 0 : index
      %c0_12 = arith.constant 0 : index
      %13 = vector.load %arg9[%c0_11, %c0_12] : memref<16x32xf32, #tpu.memory_space<vmem>>, vector<16x32xf32>
      tpu.vector_store %arg9[%c0_11, %c0_12], %12 {strides = array<i32>} : memref<16x32xf32, #tpu.memory_space<vmem>>, vector<16x32xf32>,
    } else {
    }
    %c0 = arith.constant 0 : index
    %c0_1 = arith.constant 0 : index
    %3 = vector.load %arg9[%c0, %c0_1] : memref<16x32xf32, #tpu.memory_space<vmem>>, vector<16x32xf32>
    %c0_2 = arith.constant 0 : index
    %c0_3 = arith.constant 0 : index
    %4 = vector.load %arg2[%c0_2, %c0_3] : memref<16x64xbf16, #tpu.memory_space<vmem>>, vector<16x64xbf16>
    %c0_4 = arith.constant 0 : index
    %c0_5 = arith.constant 0 : index
    %5 = vector.load %arg3[%c0_4, %c0_5] : memref<64x32xbf16, #tpu.memory_space<vmem>>, vector<64x32xbf16>
    %cst = arith.constant dense<0.000000e+00> : vector<16x32xf32>
    %6 = tpu.matmul %4, %5, %cst {dimension_numbers = #tpu.dot_dimension_numbers<[1], [0], [0], [1], [0, 0, 1, 1], [], []>} : vector<16x64xbf16>, vector<64x32xbf16>, vector<16x32xf32> -> vector<16x32xf32>
    %7 = arith.addf %3, %6 : vector<16x32xf32>
    %c0_6 = arith.constant 0 : index
    %c0_7 = arith.constant 0 : index
    %8 = vector.load %arg9[%c0_6, %c0_7] : memref<16x32xf32, #tpu.memory_space<vmem>>, vector<16x32xf32>
    tpu.vector_store %arg9[%c0_6, %c0_7], %7 {strides = array<i32>} : memref<16x32xf32, #tpu.memory_space<vmem>>, vector<16x32xf32>,
    %c0_i32_8 = arith.constant 0 : i32
    %9 = arith.cmpi eq, %arg1, %c0_i32_8 : i32
    %10 = arith.extui %9 : i1 to i32
    %c0_i32_9 = arith.constant 0 : i32
    %11 = arith.cmpi ne, %10, %c0_i32_9 : i32
    scf.if %11 {
      %c0_10 = arith.constant 0 : index
      %c0_11 = arith.constant 0 : index
      %12 = vector.load %arg9[%c0_10, %c0_11] : memref<16x32xf32, #tpu.memory_space<vmem>>, vector<16x32xf32>
      %c0_12 = arith.constant 0 : index
      %c0_13 = arith.constant 0 : index
      %13 = vector.load %arg4[%c0_12, %c0_13] : memref<1x32xf32, #tpu.memory_space<vmem>>, vector<1x32xf32>
      %14 = vector.broadcast %13 : vector<1x32xf32> to vector<16x32xf32>
      %15 = arith.addf %12, %14 : vector<16x32xf32>
      %c0_14 = arith.constant 0 : index
      %c0_15 = arith.constant 0 : index
      %16 = vector.load %arg5[%c0_14, %c0_15] : memref<16x32xbf16, #tpu.memory_space<vmem>>, vector<16x32xbf16>
      %17 = arith.extf %16 : vector<16x32xbf16> to vector<16x32xf32>
      %18 = arith.addf %15, %17 : vector<16x32xf32>
      %cst_16 = arith.constant dense<0.000000e+00> : vector<16xf32>
      %19 = vector.multi_reduction <add>, %18, %cst_16 [1] : vector<16x32xf32> to vector<16xf32>
      %20 = vector.shape_cast %19 : vector<16xf32> to vector<16x1xf32>
      %cst_17 = arith.constant 3.200000e+01 : f32
      %21 = vector.broadcast %cst_17 : f32 to vector<16x1xf32>
      %22 = arith.divf %20, %21 : vector<16x1xf32>
      %23 = vector.broadcast %22 : vector<16x1xf32> to vector<16x32xf32>
      %24 = arith.subf %18, %23 : vector<16x32xf32>
      %25 = arith.mulf %24, %24 : vector<16x32xf32>
      %cst_18 = arith.constant dense<0.000000e+00> : vector<16xf32>
      %26 = vector.multi_reduction <add>, %25, %cst_18 [1] : vector<16x32xf32> to vector<16xf32>
      %27 = vector.shape_cast %26 : vector<16xf32> to vector<16x1xf32>
      %cst_19 = arith.constant 3.200000e+01 : f32
      %28 = vector.broadcast %cst_19 : f32 to vector<16x1xf32>
      %29 = arith.divf %27, %28 : vector<16x1xf32>
      %30 = vector.broadcast %22 : vector<16x1xf32> to vector<16x32xf32>
      %31 = arith.subf %18, %30 : vector<16x32xf32>
      %cst_20 = arith.constant 9.99999996E-13 : f32
      %32 = vector.broadcast %cst_20 : f32 to vector<16x1xf32>
      %33 = arith.addf %29, %32 : vector<16x1xf32>
      %34 = math.rsqrt %33 : vector<16x1xf32>
      %35 = vector.broadcast %34 : vector<16x1xf32> to vector<16x32xf32>
      %36 = arith.mulf %31, %35 : vector<16x32xf32>
      %c0_21 = arith.constant 0 : index
      %c0_22 = arith.constant 0 : index
      %37 = vector.load %arg6[%c0_21, %c0_22] : memref<1x32xf32, #tpu.memory_space<vmem>>, vector<1x32xf32>
      %38 = vector.broadcast %37 : vector<1x32xf32> to vector<16x32xf32>
      %39 = arith.mulf %36, %38 : vector<16x32xf32>
      %c0_23 = arith.constant 0 : index
      %c0_24 = arith.constant 0 : index
      %40 = vector.load %arg7[%c0_23, %c0_24] : memref<1x32xf32, #tpu.memory_space<vmem>>, vector<1x32xf32>
      %41 = vector.broadcast %40 : vector<1x32xf32> to vector<16x32xf32>
      %42 = arith.addf %39, %41 : vector<16x32xf32>
      %43 = arith.truncf %42 : vector<16x32xf32> to vector<16x32xbf16>
      %c0_25 = arith.constant 0 : index
      %c0_26 = arith.constant 0 : index
      %44 = vector.load %arg8[%c0_25, %c0_26] : memref<16x32xbf16, #tpu.memory_space<vmem>>, vector<16x32xbf16>
      tpu.vector_store %arg8[%c0_25, %c0_26], %43 {strides = array<i32>} : memref<16x32xbf16, #tpu.memory_space<vmem>>, vector<16x32xbf16>,
    } else {
    }
    return
  }
  func.func @transform_0(%arg0: i32, %arg1: i32) -> (i32, i32) {
    %c0_i32 = arith.constant 0 : i32
    return %arg0, %arg1 : i32, i32
  }
  func.func @transform_1(%arg0: i32, %arg1: i32) -> (i32, i32) {
    %c0_i32 = arith.constant 0 : i32
    %c0_i32_0 = arith.constant 0 : i32
    return %arg1, %c0_i32 : i32, i32
  }
  func.func @transform_2(%arg0: i32, %arg1: i32) -> (i32, i32) {
    %c0_i32 = arith.constant 0 : i32
    %c0_i32_0 = arith.constant 0 : i32
    %c0_i32_1 = arith.constant 0 : i32
    return %c0_i32, %c0_i32_0 : i32, i32
  }
  func.func @transform_3(%arg0: i32, %arg1: i32) -> (i32, i32) {
    %c0_i32 = arith.constant 0 : i32
    %c0_i32_0 = arith.constant 0 : i32
    return %arg0, %c0_i32 : i32, i32
  }
  func.func @transform_4(%arg0: i32, %arg1: i32) -> (i32, i32) {
    %c0_i32 = arith.constant 0 : i32
    %c0_i32_0 = arith.constant 0 : i32
    %c0_i32_1 = arith.constant 0 : i32
    return %c0_i32, %c0_i32_0 : i32, i32
  }
  func.func @transform_5(%arg0: i32, %arg1: i32) -> (i32, i32) {
    %c0_i32 = arith.constant 0 : i32
    %c0_i32_0 = arith.constant 0 : i32
    %c0_i32_1 = arith.constant 0 : i32
    return %c0_i32, %c0_i32_0 : i32, i32
  }
  func.func @transform_6(%arg0: i32, %arg1: i32) -> (i32, i32) {
    %c0_i32 = arith.constant 0 : i32
    %c0_i32_0 = arith.constant 0 : i32
    return %arg0, %c0_i32 : i32, i32
  }
}

module attributes {stable_mosaic.version = 11 : i64} {
  func.func @_flash_kernel(%arg0: i32, %arg1: i32, %arg2: i32, %arg3: i32, %arg4: memref<1x1x8x8xbf16, #tpu.memory_space<vmem>>, %arg5: memref<1x1x8x8xbf16, #tpu.memory_space<vmem>>, %arg6: memref<1x1x8x8xbf16, #tpu.memory_space<vmem>>, %arg7: memref<1x8x1xf32, #tpu.memory_space<vmem>>, %arg8: memref<1x1x8xf32, #tpu.memory_space<vmem>>, %arg9: memref<1x1x8x8xbf16, #tpu.memory_space<vmem>>, %arg10: memref<8x1xf32, #tpu.memory_space<vmem>>, %arg11: memref<8x1xf32, #tpu.memory_space<vmem>>, %arg12: memref<8x8xf32, #tpu.memory_space<vmem>>) attributes {dimension_semantics = [#tpu.dimension_semantics<parallel>, #tpu.dimension_semantics<parallel>, #tpu.dimension_semantics<parallel>, #tpu.dimension_semantics<arbitrary>], iteration_bounds = array<i64: 2, 4, 1, 1>, scalar_prefetch = 0 : i64, scratch_operands = 3 : i64, tpu.core_type = #tpu.core_type<tc>, window_params = [{transform_indices = @transform_0, window_bounds = array<i64: 1, 1, 8, 8>}, {transform_indices = @transform_1, window_bounds = array<i64: 1, 1, 8, 8>}, {transform_indices = @transform_2, window_bounds = array<i64: 1, 1, 8, 8>}, {transform_indices = @transform_3, window_bounds = array<i64: 1, 8, 1>}, {transform_indices = @transform_4, window_bounds = array<i64: 1, 1, 8>}, {transform_indices = @transform_5, window_bounds = array<i64: 1, 1, 8, 8>}]} {
    %c0_i32 = arith.constant 0 : i32
    %0 = arith.cmpi eq, %arg3, %c0_i32 : i32
    %1 = arith.extui %0 : i1 to i32
    %c0_i32_0 = arith.constant 0 : i32
    %2 = arith.cmpi ne, %1, %c0_i32_0 : i32
    scf.if %2 {
      %cst_38 = arith.constant -1.000000e+30 : f32
      %49 = vector.broadcast %cst_38 : f32 to vector<8x1xf32>
      %c0_39 = arith.constant 0 : index
      %c0_40 = arith.constant 0 : index
      %50 = vector.load %arg10[%c0_39, %c0_40] : memref<8x1xf32, #tpu.memory_space<vmem>>, vector<8x1xf32>
      tpu.vector_store %arg10[%c0_39, %c0_40], %49 {strides = array<i32>} : memref<8x1xf32, #tpu.memory_space<vmem>>, vector<8x1xf32>,
      %cst_41 = arith.constant 0.000000e+00 : f32
      %51 = vector.broadcast %cst_41 : f32 to vector<8x1xf32>
      %c0_42 = arith.constant 0 : index
      %c0_43 = arith.constant 0 : index
      %52 = vector.load %arg11[%c0_42, %c0_43] : memref<8x1xf32, #tpu.memory_space<vmem>>, vector<8x1xf32>
      tpu.vector_store %arg11[%c0_42, %c0_43], %51 {strides = array<i32>} : memref<8x1xf32, #tpu.memory_space<vmem>>, vector<8x1xf32>,
      %cst_44 = arith.constant 0.000000e+00 : f32
      %53 = vector.broadcast %cst_44 : f32 to vector<8x8xf32>
      %c0_45 = arith.constant 0 : index
      %c0_46 = arith.constant 0 : index
      %54 = vector.load %arg12[%c0_45, %c0_46] : memref<8x8xf32, #tpu.memory_space<vmem>>, vector<8x8xf32>
      tpu.vector_store %arg12[%c0_45, %c0_46], %53 {strides = array<i32>} : memref<8x8xf32, #tpu.memory_space<vmem>>, vector<8x8xf32>,
    } else {
    }
    %c0 = arith.constant 0 : index
    %c0_1 = arith.constant 0 : index
    %c0_2 = arith.constant 0 : index
    %c0_3 = arith.constant 0 : index
    %3 = vector.load %arg4[%c0, %c0_1, %c0_2, %c0_3] : memref<1x1x8x8xbf16, #tpu.memory_space<vmem>>, vector<1x1x8x8xbf16>
    %4 = vector.shape_cast %3 : vector<1x1x8x8xbf16> to vector<8x8xbf16>
    %c0_4 = arith.constant 0 : index
    %c0_5 = arith.constant 0 : index
    %c0_6 = arith.constant 0 : index
    %c0_7 = arith.constant 0 : index
    %5 = vector.load %arg5[%c0_4, %c0_5, %c0_6, %c0_7] : memref<1x1x8x8xbf16, #tpu.memory_space<vmem>>, vector<1x1x8x8xbf16>
    %6 = vector.shape_cast %5 : vector<1x1x8x8xbf16> to vector<8x8xbf16>
    %c0_8 = arith.constant 0 : index
    %c0_9 = arith.constant 0 : index
    %c0_10 = arith.constant 0 : index
    %c0_11 = arith.constant 0 : index
    %7 = vector.load %arg6[%c0_8, %c0_9, %c0_10, %c0_11] : memref<1x1x8x8xbf16, #tpu.memory_space<vmem>>, vector<1x1x8x8xbf16>
    %8 = vector.shape_cast %7 : vector<1x1x8x8xbf16> to vector<8x8xbf16>
    %cst = arith.constant dense<0.000000e+00> : vector<8x8xf32>
    %9 = tpu.matmul %4, %6, %cst {dimension_numbers = #tpu.dot_dimension_numbers<[1], [1], [0], [0], [0, 0, 1, 0], [], []>} : vector<8x8xbf16>, vector<8x8xbf16>, vector<8x8xf32> -> vector<8x8xf32>
    %cst_12 = arith.constant 0.353553385 : f32
    %10 = vector.broadcast %cst_12 : f32 to vector<8x8xf32>
    %11 = arith.mulf %9, %10 : vector<8x8xf32>
    %c0_13 = arith.constant 0 : index
    %c0_14 = arith.constant 0 : index
    %c0_15 = arith.constant 0 : index
    %12 = vector.load %arg7[%c0_13, %c0_14, %c0_15] : memref<1x8x1xf32, #tpu.memory_space<vmem>>, vector<1x8x1xf32>
    %13 = vector.shape_cast %12 : vector<1x8x1xf32> to vector<8x1xf32>
    %c0_16 = arith.constant 0 : index
    %c0_17 = arith.constant 0 : index
    %c0_18 = arith.constant 0 : index
    %14 = vector.load %arg8[%c0_16, %c0_17, %c0_18] : memref<1x1x8xf32, #tpu.memory_space<vmem>>, vector<1x1x8xf32>
    %15 = vector.shape_cast %14 : vector<1x1x8xf32> to vector<1x8xf32>
    %16 = vector.broadcast %13 : vector<8x1xf32> to vector<8x8xf32>
    %17 = vector.broadcast %15 : vector<1x8xf32> to vector<8x8xf32>
    %18 = arith.mulf %16, %17 : vector<8x8xf32>
    %cst_19 = arith.constant 0.000000e+00 : f32
    %19 = vector.broadcast %cst_19 : f32 to vector<8x8xf32>
    %20 = arith.cmpf ogt, %18, %19 : vector<8x8xf32>
    %cst_20 = arith.constant -1.000000e+04 : f32
    %21 = vector.broadcast %cst_20 : f32 to vector<8x8xf32>
    %22 = arith.select %20, %11, %21 : vector<8x8xi1>, vector<8x8xf32>
    %c0_21 = arith.constant 0 : index
    %c0_22 = arith.constant 0 : index
    %23 = vector.load %arg10[%c0_21, %c0_22] : memref<8x1xf32, #tpu.memory_space<vmem>>, vector<8x1xf32>
    %cst_23 = arith.constant dense<0xFF800000> : vector<8xf32>
    %24 = vector.multi_reduction <maximumf>, %22, %cst_23 [1] : vector<8x8xf32> to vector<8xf32>
    %25 = vector.shape_cast %24 : vector<8xf32> to vector<8x1xf32>
    %26 = arith.maximumf %23, %25 : vector<8x1xf32>
    %27 = arith.subf %23, %26 : vector<8x1xf32>
    %28 = math.exp %27 : vector<8x1xf32>
    %29 = vector.broadcast %26 : vector<8x1xf32> to vector<8x8xf32>
    %30 = arith.subf %22, %29 : vector<8x8xf32>
    %31 = math.exp %30 : vector<8x8xf32>
    %c0_24 = arith.constant 0 : index
    %c0_25 = arith.constant 0 : index
    %32 = vector.load %arg11[%c0_24, %c0_25] : memref<8x1xf32, #tpu.memory_space<vmem>>, vector<8x1xf32>
    %33 = arith.mulf %28, %32 : vector<8x1xf32>
    %cst_26 = arith.constant dense<0.000000e+00> : vector<8xf32>
    %34 = vector.multi_reduction <add>, %31, %cst_26 [1] : vector<8x8xf32> to vector<8xf32>
    %35 = vector.shape_cast %34 : vector<8xf32> to vector<8x1xf32>
    %36 = arith.addf %33, %35 : vector<8x1xf32>
    %c0_27 = arith.constant 0 : index
    %c0_28 = arith.constant 0 : index
    %37 = vector.load %arg11[%c0_27, %c0_28] : memref<8x1xf32, #tpu.memory_space<vmem>>, vector<8x1xf32>
    tpu.vector_store %arg11[%c0_27, %c0_28], %36 {strides = array<i32>} : memref<8x1xf32, #tpu.memory_space<vmem>>, vector<8x1xf32>,
    %c0_29 = arith.constant 0 : index
    %c0_30 = arith.constant 0 : index
    %38 = vector.load %arg12[%c0_29, %c0_30] : memref<8x8xf32, #tpu.memory_space<vmem>>, vector<8x8xf32>
    %39 = vector.broadcast %28 : vector<8x1xf32> to vector<8x8xf32>
    %40 = arith.mulf %39, %38 : vector<8x8xf32>
    %41 = arith.truncf %31 : vector<8x8xf32> to vector<8x8xbf16>
    %cst_31 = arith.constant dense<0.000000e+00> : vector<8x8xf32>
    %42 = tpu.matmul %41, %8, %cst_31 {dimension_numbers = #tpu.dot_dimension_numbers<[1], [0], [0], [1], [0, 0, 1, 1], [], []>} : vector<8x8xbf16>, vector<8x8xbf16>, vector<8x8xf32> -> vector<8x8xf32>
    %43 = arith.addf %40, %42 : vector<8x8xf32>
    %c0_32 = arith.constant 0 : index
    %c0_33 = arith.constant 0 : index
    %44 = vector.load %arg12[%c0_32, %c0_33] : memref<8x8xf32, #tpu.memory_space<vmem>>, vector<8x8xf32>
    tpu.vector_store %arg12[%c0_32, %c0_33], %43 {strides = array<i32>} : memref<8x8xf32, #tpu.memory_space<vmem>>, vector<8x8xf32>,
    %c0_34 = arith.constant 0 : index
    %c0_35 = arith.constant 0 : index
    %45 = vector.load %arg10[%c0_34, %c0_35] : memref<8x1xf32, #tpu.memory_space<vmem>>, vector<8x1xf32>
    tpu.vector_store %arg10[%c0_34, %c0_35], %26 {strides = array<i32>} : memref<8x1xf32, #tpu.memory_space<vmem>>, vector<8x1xf32>,
    %c0_i32_36 = arith.constant 0 : i32
    %46 = arith.cmpi eq, %arg3, %c0_i32_36 : i32
    %47 = arith.extui %46 : i1 to i32
    %c0_i32_37 = arith.constant 0 : i32
    %48 = arith.cmpi ne, %47, %c0_i32_37 : i32
    scf.if %48 {
      %c0_38 = arith.constant 0 : index
      %c0_39 = arith.constant 0 : index
      %49 = vector.load %arg12[%c0_38, %c0_39] : memref<8x8xf32, #tpu.memory_space<vmem>>, vector<8x8xf32>
      %c0_40 = arith.constant 0 : index
      %c0_41 = arith.constant 0 : index
      %50 = vector.load %arg11[%c0_40, %c0_41] : memref<8x1xf32, #tpu.memory_space<vmem>>, vector<8x1xf32>
      %51 = vector.broadcast %50 : vector<8x1xf32> to vector<8x8xf32>
      %52 = arith.divf %49, %51 : vector<8x8xf32>
      %53 = arith.truncf %52 : vector<8x8xf32> to vector<8x8xbf16>
      %c0_42 = arith.constant 0 : index
      %c0_43 = arith.constant 0 : index
      %c0_44 = arith.constant 0 : index
      %c0_45 = arith.constant 0 : index
      %54 = vector.load %arg9[%c0_42, %c0_43, %c0_44, %c0_45] : memref<1x1x8x8xbf16, #tpu.memory_space<vmem>>, vector<1x1x8x8xbf16>
      %55 = vector.shape_cast %54 : vector<1x1x8x8xbf16> to vector<8x8xbf16>
      %56 = vector.shape_cast %53 : vector<8x8xbf16> to vector<1x1x8x8xbf16>
      tpu.vector_store %arg9[%c0_42, %c0_43, %c0_44, %c0_45], %56 {strides = array<i32>} : memref<1x1x8x8xbf16, #tpu.memory_space<vmem>>, vector<1x1x8x8xbf16>,
    } else {
    }
    return
  }
  func.func @transform_0(%arg0: i32, %arg1: i32, %arg2: i32, %arg3: i32) -> (i32, i32, i32, i32) {
    %c0_i32 = arith.constant 0 : i32
    %c0_i32_0 = arith.constant 0 : i32
    return %arg0, %arg1, %arg2, %c0_i32 : i32, i32, i32, i32
  }
  func.func @transform_1(%arg0: i32, %arg1: i32, %arg2: i32, %arg3: i32) -> (i32, i32, i32, i32) {
    %c0_i32 = arith.constant 0 : i32
    %c0_i32_0 = arith.constant 0 : i32
    return %arg0, %arg1, %arg3, %c0_i32 : i32, i32, i32, i32
  }
  func.func @transform_2(%arg0: i32, %arg1: i32, %arg2: i32, %arg3: i32) -> (i32, i32, i32, i32) {
    %c0_i32 = arith.constant 0 : i32
    %c0_i32_0 = arith.constant 0 : i32
    return %arg0, %arg1, %arg3, %c0_i32 : i32, i32, i32, i32
  }
  func.func @transform_3(%arg0: i32, %arg1: i32, %arg2: i32, %arg3: i32) -> (i32, i32, i32) {
    %c0_i32 = arith.constant 0 : i32
    %c0_i32_0 = arith.constant 0 : i32
    return %arg0, %arg2, %c0_i32 : i32, i32, i32
  }
  func.func @transform_4(%arg0: i32, %arg1: i32, %arg2: i32, %arg3: i32) -> (i32, i32, i32) {
    %c0_i32 = arith.constant 0 : i32
    %c0_i32_0 = arith.constant 0 : i32
    return %arg0, %c0_i32, %arg3 : i32, i32, i32
  }
  func.func @transform_5(%arg0: i32, %arg1: i32, %arg2: i32, %arg3: i32) -> (i32, i32, i32, i32) {
    %c0_i32 = arith.constant 0 : i32
    %c0_i32_0 = arith.constant 0 : i32
    return %arg0, %arg1, %arg2, %c0_i32 : i32, i32, i32, i32
  }
}

module attributes {stable_mosaic.version = 11 : i64} {
  func.func @_matmul_kernel(%arg0: i32, %arg1: i32, %arg2: i32, %arg3: memref<16x32xbf16, #tpu.memory_space<vmem>>, %arg4: memref<32x64xbf16, #tpu.memory_space<vmem>>, %arg5: memref<1x64xf32, #tpu.memory_space<vmem>>, %arg6: memref<16x64xbf16, #tpu.memory_space<vmem>>, %arg7: memref<16x64xf32, #tpu.memory_space<vmem>>) attributes {dimension_semantics = [#tpu.dimension_semantics<parallel>, #tpu.dimension_semantics<parallel>, #tpu.dimension_semantics<arbitrary>], iteration_bounds = array<i64: 1, 1, 1>, scalar_prefetch = 0 : i64, scratch_operands = 1 : i64, tpu.core_type = #tpu.core_type<tc>, window_params = [{transform_indices = @transform_0, window_bounds = array<i64: 16, 32>}, {transform_indices = @transform_1, window_bounds = array<i64: 32, 64>}, {transform_indices = @transform_2, window_bounds = array<i64: 1, 64>}, {transform_indices = @transform_3, window_bounds = array<i64: 16, 64>}]} {
    %c0_i32 = arith.constant 0 : i32
    %0 = arith.cmpi eq, %arg2, %c0_i32 : i32
    %1 = arith.extui %0 : i1 to i32
    %c0_i32_0 = arith.constant 0 : i32
    %2 = arith.cmpi ne, %1, %c0_i32_0 : i32
    scf.if %2 {
      %cst_10 = arith.constant 0.000000e+00 : f32
      %12 = vector.broadcast %cst_10 : f32 to vector<16x64xf32>
      %c0_11 = arith.constant 0 : index
      %c0_12 = arith.constant 0 : index
      %13 = vector.load %arg7[%c0_11, %c0_12] : memref<16x64xf32, #tpu.memory_space<vmem>>, vector<16x64xf32>
      tpu.vector_store %arg7[%c0_11, %c0_12], %12 {strides = array<i32>} : memref<16x64xf32, #tpu.memory_space<vmem>>, vector<16x64xf32>,
    } else {
    }
    %c0 = arith.constant 0 : index
    %c0_1 = arith.constant 0 : index
    %3 = vector.load %arg7[%c0, %c0_1] : memref<16x64xf32, #tpu.memory_space<vmem>>, vector<16x64xf32>
    %c0_2 = arith.constant 0 : index
    %c0_3 = arith.constant 0 : index
    %4 = vector.load %arg3[%c0_2, %c0_3] : memref<16x32xbf16, #tpu.memory_space<vmem>>, vector<16x32xbf16>
    %c0_4 = arith.constant 0 : index
    %c0_5 = arith.constant 0 : index
    %5 = vector.load %arg4[%c0_4, %c0_5] : memref<32x64xbf16, #tpu.memory_space<vmem>>, vector<32x64xbf16>
    %cst = arith.constant dense<0.000000e+00> : vector<16x64xf32>
    %6 = tpu.matmul %4, %5, %cst {dimension_numbers = #tpu.dot_dimension_numbers<[1], [0], [0], [1], [0, 0, 1, 1], [], []>} : vector<16x32xbf16>, vector<32x64xbf16>, vector<16x64xf32> -> vector<16x64xf32>
    %7 = arith.addf %3, %6 : vector<16x64xf32>
    %c0_6 = arith.constant 0 : index
    %c0_7 = arith.constant 0 : index
    %8 = vector.load %arg7[%c0_6, %c0_7] : memref<16x64xf32, #tpu.memory_space<vmem>>, vector<16x64xf32>
    tpu.vector_store %arg7[%c0_6, %c0_7], %7 {strides = array<i32>} : memref<16x64xf32, #tpu.memory_space<vmem>>, vector<16x64xf32>,
    %c0_i32_8 = arith.constant 0 : i32
    %9 = arith.cmpi eq, %arg2, %c0_i32_8 : i32
    %10 = arith.extui %9 : i1 to i32
    %c0_i32_9 = arith.constant 0 : i32
    %11 = arith.cmpi ne, %10, %c0_i32_9 : i32
    scf.if %11 {
      %c0_10 = arith.constant 0 : index
      %c0_11 = arith.constant 0 : index
      %12 = vector.load %arg7[%c0_10, %c0_11] : memref<16x64xf32, #tpu.memory_space<vmem>>, vector<16x64xf32>
      %c0_12 = arith.constant 0 : index
      %c0_13 = arith.constant 0 : index
      %13 = vector.load %arg5[%c0_12, %c0_13] : memref<1x64xf32, #tpu.memory_space<vmem>>, vector<1x64xf32>
      %14 = vector.broadcast %13 : vector<1x64xf32> to vector<16x64xf32>
      %15 = arith.addf %12, %14 : vector<16x64xf32>
      %16 = arith.truncf %15 : vector<16x64xf32> to vector<16x64xbf16>
      %c0_14 = arith.constant 0 : index
      %c0_15 = arith.constant 0 : index
      %17 = vector.load %arg6[%c0_14, %c0_15] : memref<16x64xbf16, #tpu.memory_space<vmem>>, vector<16x64xbf16>
      tpu.vector_store %arg6[%c0_14, %c0_15], %16 {strides = array<i32>} : memref<16x64xbf16, #tpu.memory_space<vmem>>, vector<16x64xbf16>,
    } else {
    }
    return
  }
  func.func @transform_0(%arg0: i32, %arg1: i32, %arg2: i32) -> (i32, i32) {
    %c0_i32 = arith.constant 0 : i32
    return %arg0, %arg2 : i32, i32
  }
  func.func @transform_1(%arg0: i32, %arg1: i32, %arg2: i32) -> (i32, i32) {
    %c0_i32 = arith.constant 0 : i32
    return %arg2, %arg1 : i32, i32
  }
  func.func @transform_2(%arg0: i32, %arg1: i32, %arg2: i32) -> (i32, i32) {
    %c0_i32 = arith.constant 0 : i32
    %c0_i32_0 = arith.constant 0 : i32
    return %c0_i32, %arg1 : i32, i32
  }
  func.func @transform_3(%arg0: i32, %arg1: i32, %arg2: i32) -> (i32, i32) {
    %c0_i32 = arith.constant 0 : i32
    return %arg0, %arg1 : i32, i32
  }
}

module attributes {stable_mosaic.version = 11 : i64} {
  func.func @_matmul_kernel(%arg0: i32, %arg1: i32, %arg2: i32, %arg3: memref<16x32xbf16, #tpu.memory_space<vmem>>, %arg4: memref<32x16xbf16, #tpu.memory_space<vmem>>, %arg5: memref<1x16xf32, #tpu.memory_space<vmem>>, %arg6: memref<16x16xf32, #tpu.memory_space<vmem>>, %arg7: memref<16x16xf32, #tpu.memory_space<vmem>>) attributes {dimension_semantics = [#tpu.dimension_semantics<parallel>, #tpu.dimension_semantics<parallel>, #tpu.dimension_semantics<arbitrary>], iteration_bounds = array<i64: 1, 1, 1>, scalar_prefetch = 0 : i64, scratch_operands = 1 : i64, tpu.core_type = #tpu.core_type<tc>, window_params = [{transform_indices = @transform_0, window_bounds = array<i64: 16, 32>}, {transform_indices = @transform_1, window_bounds = array<i64: 32, 16>}, {transform_indices = @transform_2, window_bounds = array<i64: 1, 16>}, {transform_indices = @transform_3, window_bounds = array<i64: 16, 16>}]} {
    %c0_i32 = arith.constant 0 : i32
    %0 = arith.cmpi eq, %arg2, %c0_i32 : i32
    %1 = arith.extui %0 : i1 to i32
    %c0_i32_0 = arith.constant 0 : i32
    %2 = arith.cmpi ne, %1, %c0_i32_0 : i32
    scf.if %2 {
      %cst_10 = arith.constant 0.000000e+00 : f32
      %12 = vector.broadcast %cst_10 : f32 to vector<16x16xf32>
      %c0_11 = arith.constant 0 : index
      %c0_12 = arith.constant 0 : index
      %13 = vector.load %arg7[%c0_11, %c0_12] : memref<16x16xf32, #tpu.memory_space<vmem>>, vector<16x16xf32>
      tpu.vector_store %arg7[%c0_11, %c0_12], %12 {strides = array<i32>} : memref<16x16xf32, #tpu.memory_space<vmem>>, vector<16x16xf32>,
    } else {
    }
    %c0 = arith.constant 0 : index
    %c0_1 = arith.constant 0 : index
    %3 = vector.load %arg7[%c0, %c0_1] : memref<16x16xf32, #tpu.memory_space<vmem>>, vector<16x16xf32>
    %c0_2 = arith.constant 0 : index
    %c0_3 = arith.constant 0 : index
    %4 = vector.load %arg3[%c0_2, %c0_3] : memref<16x32xbf16, #tpu.memory_space<vmem>>, vector<16x32xbf16>
    %c0_4 = arith.constant 0 : index
    %c0_5 = arith.constant 0 : index
    %5 = vector.load %arg4[%c0_4, %c0_5] : memref<32x16xbf16, #tpu.memory_space<vmem>>, vector<32x16xbf16>
    %cst = arith.constant dense<0.000000e+00> : vector<16x16xf32>
    %6 = tpu.matmul %4, %5, %cst {dimension_numbers = #tpu.dot_dimension_numbers<[1], [0], [0], [1], [0, 0, 1, 1], [], []>} : vector<16x32xbf16>, vector<32x16xbf16>, vector<16x16xf32> -> vector<16x16xf32>
    %7 = arith.addf %3, %6 : vector<16x16xf32>
    %c0_6 = arith.constant 0 : index
    %c0_7 = arith.constant 0 : index
    %8 = vector.load %arg7[%c0_6, %c0_7] : memref<16x16xf32, #tpu.memory_space<vmem>>, vector<16x16xf32>
    tpu.vector_store %arg7[%c0_6, %c0_7], %7 {strides = array<i32>} : memref<16x16xf32, #tpu.memory_space<vmem>>, vector<16x16xf32>,
    %c0_i32_8 = arith.constant 0 : i32
    %9 = arith.cmpi eq, %arg2, %c0_i32_8 : i32
    %10 = arith.extui %9 : i1 to i32
    %c0_i32_9 = arith.constant 0 : i32
    %11 = arith.cmpi ne, %10, %c0_i32_9 : i32
    scf.if %11 {
      %c0_10 = arith.constant 0 : index
      %c0_11 = arith.constant 0 : index
      %12 = vector.load %arg7[%c0_10, %c0_11] : memref<16x16xf32, #tpu.memory_space<vmem>>, vector<16x16xf32>
      %c0_12 = arith.constant 0 : index
      %c0_13 = arith.constant 0 : index
      %13 = vector.load %arg5[%c0_12, %c0_13] : memref<1x16xf32, #tpu.memory_space<vmem>>, vector<1x16xf32>
      %14 = vector.broadcast %13 : vector<1x16xf32> to vector<16x16xf32>
      %15 = arith.addf %12, %14 : vector<16x16xf32>
      %c0_14 = arith.constant 0 : index
      %c0_15 = arith.constant 0 : index
      %16 = vector.load %arg6[%c0_14, %c0_15] : memref<16x16xf32, #tpu.memory_space<vmem>>, vector<16x16xf32>
      tpu.vector_store %arg6[%c0_14, %c0_15], %15 {strides = array<i32>} : memref<16x16xf32, #tpu.memory_space<vmem>>, vector<16x16xf32>,
    } else {
    }
    return
  }
  func.func @transform_0(%arg0: i32, %arg1: i32, %arg2: i32) -> (i32, i32) {
    %c0_i32 = arith.constant 0 : i32
    return %arg0, %arg2 : i32, i32
  }
  func.func @transform_1(%arg0: i32, %arg1: i32, %arg2: i32) -> (i32, i32) {
    %c0_i32 = arith.constant 0 : i32
    return %arg2, %arg1 : i32, i32
  }
  func.func @transform_2(%arg0: i32, %arg1: i32, %arg2: i32) -> (i32, i32) {
    %c0_i32 = arith.constant 0 : i32
    %c0_i32_0 = arith.constant 0 : i32
    return %c0_i32, %arg1 : i32, i32
  }
  func.func @transform_3(%arg0: i32, %arg1: i32, %arg2: i32) -> (i32, i32) {
    %c0_i32 = arith.constant 0 : i32
    return %arg0, %arg1 : i32, i32
  }
}

</mosaic_0001>

<llo_original>
// kernel: transformer_forward.34
$region0: #{transformer_forward.34}
  #allocation0 [shape = 'u32[]', space=smem, size = 0x4, offset = 0x4, fixed_abs, tag = 'smem constant byte address 0x4 - core index']
  #allocation1 [shape = 'u32[144,128]{1,0:T(1,128)}', space=vmem, size = 0x12000, scoped, tag = 'internal scratch']
  #allocation2 [shape = 'f32[16,96]{1,0:T(8,128)}', space=vmem, size = 0x2000, scoped, tag = 'scratch operand']
  %s0 = inlined_call_operand.vmem [shape: bf16[16,32], index: 0, kind: input, shape index: {}]
  %s1 = inlined_call_operand.vmem [shape: bf16[32,96], index: 1, kind: input, shape index: {}]
  %s2 = inlined_call_operand.vmem [shape: f32[1,96], index: 2, kind: input, shape index: {}]
  %s3 = inlined_call_operand.vmem [shape: bf16[16,96], index: 3, kind: output, shape index: {}]
  %s4 = sld [smem:[#allocation0]]
  $region30: #{transformer_forward.34} parent=0
    _
  %s6 = ssub.s32 1, %s4
  %s7 = scalar_select 0, %s6, %s4
  // Predicated region
  $region2: #{transformer_forward.34} parent=0 // pred_check
    _
  $region3: #{transformer_forward.34} parent=0 // pred_check_branch
    %9 = sbr.rel (0) target = $region5
  $region4: #{transformer_forward.34} parent=0 // pred_region
    _
  $region5: #{transformer_forward.34} parent=0 // pred_fallthru
    _
  // Predicated region
  $region6: #{transformer_forward.34} parent=0 // pred_check
    _
  $region7: #{transformer_forward.34} parent=0 // pred_check_branch
    %11 = sbr.rel (0) target = $region9
  $region8: #{transformer_forward.34} parent=0 // pred_region
    _
  $region9: #{transformer_forward.34} parent=0 // pred_fallthru
    _
  // Predicated region
  $region10: #{transformer_forward.34} parent=0 // pred_check
    _
  $region11: #{transformer_forward.34} parent=0 // pred_check_branch
    %13 = sbr.rel (0) target = $region13
  $region12: #{transformer_forward.34} parent=0 // pred_region
    _
  $region13: #{transformer_forward.34} parent=0 // pred_fallthru
    _
  %p15 = scmp.eq.s32.totalorder 0, 0
  // Predicated region
  $region14: #{transformer_forward.34} parent=0 // pred_check
    %p16 = pneg %p15
  $region15: #{transformer_forward.34} parent=0 // pred_check_branch
    %18 = sbr.rel (%p16) target = $region17
  $region16: #{transformer_forward.34} parent=0 // pred_region
    %vm19 = vcmask 785408
    %20 = vst.msk [vmem:[#allocation2] sm:$0xff] %vm19, 0.0
    %21 = vst.msk [vmem:[#allocation2 + $0x8] sm:$0xff] %vm19, 0.0
  $region17: #{transformer_forward.34} parent=0 // pred_fallthru
    _
  %v22 = vld [vmem:[#allocation2] sm:$0xff]
  %v23 = vld [vmem:[#allocation2 + $0x8] sm:$0xff]
  %v24 = vld [vmem:[%s0] sm:$0xf]
  %v25 = vld [vmem:[%s0 + $0x4] sm:$0xf]
  %v26 = vld [vmem:[%s1] sm:$0xf]
  %v27 = vld [vmem:[%s1 + $0x4] sm:$0xf]
  %v28 = vld [vmem:[%s1 + $0x8] sm:$0xf]
  %v29 = vld [vmem:[%s1 + $0xc] sm:$0xf]
  %v32 = vunpack.c.l.b16 %v24
  %v33 = vunpack.c.l.b16 %v25
  %v34 = vpack.c.b16 %v33, %v32
  %v39 = vunpack.c.l.b16 %v26
  %v40 = vunpack.c.l.b16 %v27
  %v41 = vunpack.c.l.b16 %v28
  %v42 = vunpack.c.l.b16 %v29
  %v43 = vpack.c.b16 %v40, %v39
  %v44 = vpack.c.b16 %v42, %v41
  %vm47 = vcmask 261120
  %v49 = vsel %vm47, %v34, 0
  %51 = vmatprep.subr.bf16.mxu0 0
  %52 = vmatpush1.bf16.msra.mxu0 0
  %53 = vmatprep.subr.bf16.mxu0 0
  %54 = vmatpush1.bf16.msra.mxu0 0
  %55 = vmatprep.subr.bf16.mxu0 0
  %56 = vmatpush1.bf16.msra.mxu0 0
  %57 = vmatprep.subr.bf16.mxu0 0
  %58 = vmatpush1.bf16.msra.mxu0 0
  %59 = vmatprep.subr.bf16.mxu0 0
  %60 = vmatpush1.bf16.msra.mxu0 0
  %61 = vmatprep.subr.bf16.mxu0 0
  %62 = vmatpush1.bf16.msra.mxu0 0
  %63 = vmatprep.subr.bf16.mxu0 0
  %64 = vmatpush1.bf16.msra.mxu0 %v44
  %65 = vmatprep.subr.bf16.mxu0 0
  %66 = vmatpush1.bf16.msra.mxu0 %v43
  %67 = vmatprep.subr.bf16.mxu0 0
  %68 = vmatpush2.bf16.msra.mxu0 0
  %69 = vmatprep.subr.bf16.mxu0 0
  %70 = vmatpush2.bf16.msra.mxu0 0
  %71 = vmatprep.subr.bf16.mxu0 0
  %72 = vmatpush2.bf16.msra.mxu0 0
  %73 = vmatprep.subr.bf16.mxu0 0
  %74 = vmatpush2.bf16.msra.mxu0 0
  %75 = vmatprep.subr.bf16.mxu0 0
  %76 = vmatpush2.bf16.msra.mxu0 0
  %77 = vmatprep.subr.bf16.mxu0 0
  %78 = vmatpush2.bf16.msra.mxu0 0
  %79 = vmatprep.subr.bf16.mxu0 0
  %80 = vmatpush2.bf16.msra.mxu0 0
  %81 = vmatprep.subr.bf16.mxu0 0
  %82 = vmatpush2.bf16.msra.mxu0 0
  %83 = vmatprep.mubr.bf16.mxu0 0
  %84 = vmatmul.mubr.bf16.gmra.mxu0 %v49
  %v85 = vpop.f32.mrf.mxu0
  %v86 = vadd.f32 0.0, %v85
  %v87 = vpop.f32.mrf.mxu0
  %v88 = vpop.f32.mrf.mxu0
  %v89 = vadd.f32 0.0, %v88
  %v90 = vpop.f32.mrf.mxu0
  %91 = vdwg.mxu0
  %v92 = vadd.f32 %v22, %v86
  %v93 = vadd.f32 %v23, %v89
  %vm94 = vcmask 785408
  %95 = vst.msk [vmem:[#allocation2] sm:$0xff] %vm94, %v92
  %96 = vst.msk [vmem:[#allocation2 + $0x8] sm:$0xff] %vm94, %v93
  // Predicated region
  $region18: #{transformer_forward.34} parent=0 // pred_check
    %p97 = pneg %p15
  $region19: #{transformer_forward.34} parent=0 // pred_check_branch
    %99 = sbr.rel (%p97) target = $region21
  $region20: #{transformer_forward.34} parent=0 // pred_region
    %v100 = vld [vmem:[#allocation2] sm:$0xff]
    %v101 = vld [vmem:[#allocation2 + $0x8] sm:$0xff]
    %v102 = vld [vmem:[%s2] sm:$0x1]
    %v104 = vlaneseq
    %v105 = vshrl.u32 %v104, 7
    %v106 = vsub.s32 0, %v105
    %v107 = vrot.slane %v102, %v106
    %v109 = vadd.f32 %v100, %v107
    %v110 = vadd.f32 %v101, %v107
    %v111 = vpack.c.bf16 %v110, %v109
    %v113 = vunpack.c.l.b16 %v111
    %v114 = vunpack.c.h.b16 %v111
    %v115 = vpack.c.b16 %v113, %v113
    %v116 = vpack.c.b16 %v114, %v114
    %vm119 = vcmask 781312
    %120 = vst.msk [vmem:[%s3] sm:$0xf] %vm119, %v115
    %121 = vst.msk [vmem:[%s3 + $0x4] sm:$0xf] %vm119, %v116
  $region21: #{transformer_forward.34} parent=0 // pred_fallthru
    _
  // Predicated region
  $region22: #{transformer_forward.34} parent=0 // pred_check
    _
  $region23: #{transformer_forward.34} parent=0 // pred_check_branch
    %123 = sbr.rel (0) target = $region25
  $region24: #{transformer_forward.34} parent=0 // pred_region
    _
  $region25: #{transformer_forward.34} parent=0 // pred_fallthru
    _
  // Predicated region
  $region26: #{transformer_forward.34} parent=0 // pred_check
    _
  $region27: #{transformer_forward.34} parent=0 // pred_check_branch
    %125 = sbr.rel (0) target = $region29
  $region28: #{transformer_forward.34} parent=0 // pred_region
    _
  $region29: #{transformer_forward.34} parent=0 // pred_fallthru
    _

// kernel: transformer_forward.37
$region0: #{transformer_forward.37}
  #allocation0 [shape = 'u32[]', space=smem, size = 0x4, offset = 0x4, fixed_abs, tag = 'smem constant byte address 0x4 - core index']
  #allocation1 [shape = 'u32[144,128]{1,0:T(1,128)}', space=vmem, size = 0x12000, scoped, tag = 'internal scratch']
  #allocation2 [shape = 'f32[16,32]{1,0:T(8,128)}', space=vmem, size = 0x2000, scoped, tag = 'scratch operand']
  %s0 = inlined_call_operand.vmem [shape: bf16[16,32], index: 0, kind: input, shape index: {}]
  %s1 = inlined_call_operand.vmem [shape: bf16[32,32], index: 1, kind: input, shape index: {}]
  %s2 = inlined_call_operand.vmem [shape: f32[1,32], index: 2, kind: input, shape index: {}]
  %s3 = inlined_call_operand.vmem [shape: bf16[16,32], index: 3, kind: output, shape index: {}]
  %s4 = sld [smem:[#allocation0]]
  $region30: #{transformer_forward.37} parent=0
    _
  %s6 = ssub.s32 1, %s4
  %s7 = scalar_select 0, %s6, %s4
  // Predicated region
  $region2: #{transformer_forward.37} parent=0 // pred_check
    _
  $region3: #{transformer_forward.37} parent=0 // pred_check_branch
    %9 = sbr.rel (0) target = $region5
  $region4: #{transformer_forward.37} parent=0 // pred_region
    _
  $region5: #{transformer_forward.37} parent=0 // pred_fallthru
    _
  // Predicated region
  $region6: #{transformer_forward.37} parent=0 // pred_check
    _
  $region7: #{transformer_forward.37} parent=0 // pred_check_branch
    %11 = sbr.rel (0) target = $region9
  $region8: #{transformer_forward.37} parent=0 // pred_region
    _
  $region9: #{transformer_forward.37} parent=0 // pred_fallthru
    _
  // Predicated region
  $region10: #{transformer_forward.37} parent=0 // pred_check
    _
  $region11: #{transformer_forward.37} parent=0 // pred_check_branch
    %13 = sbr.rel (0) target = $region13
  $region12: #{transformer_forward.37} parent=0 // pred_region
    _
  $region13: #{transformer_forward.37} parent=0 // pred_fallthru
    _
  %p15 = scmp.eq.s32.totalorder 0, 0
  // Predicated region
  $region14: #{transformer_forward.37} parent=0 // pred_check
    %p16 = pneg %p15
  $region15: #{transformer_forward.37} parent=0 // pred_check_branch
    %18 = sbr.rel (%p16) target = $region17
  $region16: #{transformer_forward.37} parent=0 // pred_region
    %vm19 = vcmask 261120
    %20 = vst.msk [vmem:[#allocation2] sm:$0xff] %vm19, 0.0
    %21 = vst.msk [vmem:[#allocation2 + $0x8] sm:$0xff] %vm19, 0.0
  $region17: #{transformer_forward.37} parent=0 // pred_fallthru
    _
  %v22 = vld [vmem:[#allocation2] sm:$0xff]
  %v23 = vld [vmem:[#allocation2 + $0x8] sm:$0xff]
  %v24 = vld [vmem:[%s0] sm:$0xf]
  %v25 = vld [vmem:[%s0 + $0x4] sm:$0xf]
  %v26 = vld [vmem:[%s1] sm:$0xf]
  %v27 = vld [vmem:[%s1 + $0x4] sm:$0xf]
  %v28 = vld [vmem:[%s1 + $0x8] sm:$0xf]
  %v29 = vld [vmem:[%s1 + $0xc] sm:$0xf]
  %v32 = vunpack.c.l.b16 %v24
  %v33 = vunpack.c.l.b16 %v25
  %v34 = vpack.c.b16 %v33, %v32
  %v39 = vunpack.c.l.b16 %v26
  %v40 = vunpack.c.l.b16 %v27
  %v41 = vunpack.c.l.b16 %v28
  %v42 = vunpack.c.l.b16 %v29
  %v43 = vpack.c.b16 %v40, %v39
  %v44 = vpack.c.b16 %v42, %v41
  %vm47 = vcmask 261120
  %v49 = vsel %vm47, %v34, 0
  %51 = vmatprep.subr.bf16.mxu0 0
  %52 = vmatpush1.bf16.msra.mxu0 0
  %53 = vmatprep.subr.bf16.mxu0 0
  %54 = vmatpush1.bf16.msra.mxu0 0
  %55 = vmatprep.subr.bf16.mxu0 0
  %56 = vmatpush1.bf16.msra.mxu0 0
  %57 = vmatprep.subr.bf16.mxu0 0
  %58 = vmatpush1.bf16.msra.mxu0 0
  %59 = vmatprep.subr.bf16.mxu0 0
  %60 = vmatpush1.bf16.msra.mxu0 0
  %61 = vmatprep.subr.bf16.mxu0 0
  %62 = vmatpush1.bf16.msra.mxu0 0
  %63 = vmatprep.subr.bf16.mxu0 0
  %64 = vmatpush1.bf16.msra.mxu0 %v44
  %65 = vmatprep.subr.bf16.mxu0 0
  %66 = vmatpush1.bf16.msra.mxu0 %v43
  %67 = vmatprep.subr.bf16.mxu0 0
  %68 = vmatpush2.bf16.msra.mxu0 0
  %69 = vmatprep.subr.bf16.mxu0 0
  %70 = vmatpush2.bf16.msra.mxu0 0
  %71 = vmatprep.subr.bf16.mxu0 0
  %72 = vmatpush2.bf16.msra.mxu0 0
  %73 = vmatprep.subr.bf16.mxu0 0
  %74 = vmatpush2.bf16.msra.mxu0 0
  %75 = vmatprep.subr.bf16.mxu0 0
  %76 = vmatpush2.bf16.msra.mxu0 0
  %77 = vmatprep.subr.bf16.mxu0 0
  %78 = vmatpush2.bf16.msra.mxu0 0
  %79 = vmatprep.subr.bf16.mxu0 0
  %80 = vmatpush2.bf16.msra.mxu0 0
  %81 = vmatprep.subr.bf16.mxu0 0
  %82 = vmatpush2.bf16.msra.mxu0 0
  %83 = vmatprep.mubr.bf16.mxu0 0
  %84 = vmatmul.mubr.bf16.gmra.mxu0 %v49
  %v85 = vpop.f32.mrf.mxu0
  %v86 = vadd.f32 0.0, %v85
  %v87 = vpop.f32.mrf.mxu0
  %v88 = vpop.f32.mrf.mxu0
  %v89 = vadd.f32 0.0, %v88
  %v90 = vpop.f32.mrf.mxu0
  %91 = vdwg.mxu0
  %v92 = vadd.f32 %v22, %v86
  %v93 = vadd.f32 %v23, %v89
  %94 = vst.msk [vmem:[#allocation2] sm:$0xff] %vm47, %v92
  %95 = vst.msk [vmem:[#allocation2 + $0x8] sm:$0xff] %vm47, %v93
  // Predicated region
  $region18: #{transformer_forward.37} parent=0 // pred_check
    %p96 = pneg %p15
  $region19: #{transformer_forward.37} parent=0 // pred_check_branch
    %98 = sbr.rel (%p96) target = $region21
  $region20: #{transformer_forward.37} parent=0 // pred_region
    %v99 = vld [vmem:[#allocation2] sm:$0xff]
    %v100 = vld [vmem:[#allocation2 + $0x8] sm:$0xff]
    %v101 = vld [vmem:[%s2] sm:$0x1]
    %v103 = vlaneseq
    %v104 = vshrl.u32 %v103, 7
    %v105 = vsub.s32 0, %v104
    %v106 = vrot.slane %v101, %v105
    %v108 = vadd.f32 %v99, %v106
    %v109 = vadd.f32 %v100, %v106
    %v110 = vpack.c.bf16 %v109, %v108
    %v112 = vunpack.c.l.b16 %v110
    %v113 = vunpack.c.h.b16 %v110
    %v114 = vpack.c.b16 %v112, %v112
    %v115 = vpack.c.b16 %v113, %v113
    %vm118 = vcmask 257024
    %119 = vst.msk [vmem:[%s3] sm:$0xf] %vm118, %v114
    %120 = vst.msk [vmem:[%s3 + $0x4] sm:$0xf] %vm118, %v115
  $region21: #{transformer_forward.37} parent=0 // pred_fallthru
    _
  // Predicated region
  $region22: #{transformer_forward.37} parent=0 // pred_check
    _
  $region23: #{transformer_forward.37} parent=0 // pred_check_branch
    %122 = sbr.rel (0) target = $region25
  $region24: #{transformer_forward.37} parent=0 // pred_region
    _
  $region25: #{transformer_forward.37} parent=0 // pred_fallthru
    _
  // Predicated region
  $region26: #{transformer_forward.37} parent=0 // pred_check
    _
  $region27: #{transformer_forward.37} parent=0 // pred_check_branch
    %124 = sbr.rel (0) target = $region29
  $region28: #{transformer_forward.37} parent=0 // pred_region
    _
  $region29: #{transformer_forward.37} parent=0 // pred_fallthru
    _

// kernel: transformer_forward.36
$region0: #{transformer_forward.36}
  #allocation0 [shape = 'u32[]', space=smem, size = 0x4, offset = 0x4, fixed_abs, tag = 'smem constant byte address 0x4 - core index']
  #allocation1 [shape = 'u32[144,128]{1,0:T(1,128)}', space=vmem, size = 0x12000, scoped, tag = 'internal scratch']
  #allocation2 [shape = 'f32[16,32]{1,0:T(8,128)}', space=vmem, size = 0x2000, scoped, tag = 'scratch operand']
  %s0 = inlined_call_operand.vmem [shape: bf16[16,32], index: 0, kind: input, shape index: {}]
  %s1 = inlined_call_operand.vmem [shape: bf16[32,32], index: 1, kind: input, shape index: {}]
  %s2 = inlined_call_operand.vmem [shape: f32[1,32], index: 2, kind: input, shape index: {}]
  %s3 = inlined_call_operand.vmem [shape: bf16[16,32], index: 3, kind: input, shape index: {}]
  %s4 = inlined_call_operand.vmem [shape: f32[1,32], index: 4, kind: input, shape index: {}]
  %s5 = inlined_call_operand.vmem [shape: f32[1,32], index: 5, kind: input, shape index: {}]
  %s6 = inlined_call_operand.vmem [shape: bf16[16,32], index: 6, kind: output, shape index: {}]
  %s7 = sld [smem:[#allocation0]]
  $region42: #{transformer_forward.36} parent=0
    _
  %s9 = ssub.s32 1, %s7
  %s10 = scalar_select 0, %s9, %s7
  // Predicated region
  $region2: #{transformer_forward.36} parent=0 // pred_check
    _
  $region3: #{transformer_forward.36} parent=0 // pred_check_branch
    %12 = sbr.rel (0) target = $region5
  $region4: #{transformer_forward.36} parent=0 // pred_region
    _
  $region5: #{transformer_forward.36} parent=0 // pred_fallthru
    _
  // Predicated region
  $region6: #{transformer_forward.36} parent=0 // pred_check
    _
  $region7: #{transformer_forward.36} parent=0 // pred_check_branch
    %14 = sbr.rel (0) target = $region9
  $region8: #{transformer_forward.36} parent=0 // pred_region
    _
  $region9: #{transformer_forward.36} parent=0 // pred_fallthru
    _
  // Predicated region
  $region10: #{transformer_forward.36} parent=0 // pred_check
    _
  $region11: #{transformer_forward.36} parent=0 // pred_check_branch
    %16 = sbr.rel (0) target = $region13
  $region12: #{transformer_forward.36} parent=0 // pred_region
    _
  $region13: #{transformer_forward.36} parent=0 // pred_fallthru
    _
  // Predicated region
  $region14: #{transformer_forward.36} parent=0 // pred_check
    _
  $region15: #{transformer_forward.36} parent=0 // pred_check_branch
    %18 = sbr.rel (0) target = $region17
  $region16: #{transformer_forward.36} parent=0 // pred_region
    _
  $region17: #{transformer_forward.36} parent=0 // pred_fallthru
    _
  // Predicated region
  $region18: #{transformer_forward.36} parent=0 // pred_check
    _
  $region19: #{transformer_forward.36} parent=0 // pred_check_branch
    %20 = sbr.rel (0) target = $region21
  $region20: #{transformer_forward.36} parent=0 // pred_region
    _
  $region21: #{transformer_forward.36} parent=0 // pred_fallthru
    _
  // Predicated region
  $region22: #{transformer_forward.36} parent=0 // pred_check
    _
  $region23: #{transformer_forward.36} parent=0 // pred_check_branch
    %22 = sbr.rel (0) target = $region25
  $region24: #{transformer_forward.36} parent=0 // pred_region
    _
  $region25: #{transformer_forward.36} parent=0 // pred_fallthru
    _
  %p24 = scmp.eq.s32.totalorder 0, 0
  // Predicated region
  $region26: #{transformer_forward.36} parent=0 // pred_check
    %p25 = pneg %p24
  $region27: #{transformer_forward.36} parent=0 // pred_check_branch
    %27 = sbr.rel (%p25) target = $region29
  $region28: #{transformer_forward.36} parent=0 // pred_region
    %vm28 = vcmask 261120
    %29 = vst.msk [vmem:[#allocation2] sm:$0xff] %vm28, 0.0
    %30 = vst.msk [vmem:[#allocation2 + $0x8] sm:$0xff] %vm28, 0.0
  $region29: #{transformer_forward.36} parent=0 // pred_fallthru
    _
  %v31 = vld [vmem:[#allocation2] sm:$0xff]
  %v32 = vld [vmem:[#allocation2 + $0x8] sm:$0xff]
  %v33 = vld [vmem:[%s0] sm:$0xf]
  %v34 = vld [vmem:[%s0 + $0x4] sm:$0xf]
  %v35 = vld [vmem:[%s1] sm:$0xf]
  %v36 = vld [vmem:[%s1 + $0x4] sm:$0xf]
  %v37 = vld [vmem:[%s1 + $0x8] sm:$0xf]
  %v38 = vld [vmem:[%s1 + $0xc] sm:$0xf]
  %v41 = vunpack.c.l.b16 %v33
  %v42 = vunpack.c.l.b16 %v34
  %v43 = vpack.c.b16 %v42, %v41
  %v48 = vunpack.c.l.b16 %v35
  %v49 = vunpack.c.l.b16 %v36
  %v50 = vunpack.c.l.b16 %v37
  %v51 = vunpack.c.l.b16 %v38
  %v52 = vpack.c.b16 %v49, %v48
  %v53 = vpack.c.b16 %v51, %v50
  %vm56 = vcmask 261120
  %v58 = vsel %vm56, %v43, 0
  %60 = vmatprep.subr.bf16.mxu0 0
  %61 = vmatpush1.bf16.msra.mxu0 0
  %62 = vmatprep.subr.bf16.mxu0 0
  %63 = vmatpush1.bf16.msra.mxu0 0
  %64 = vmatprep.subr.bf16.mxu0 0
  %65 = vmatpush1.bf16.msra.mxu0 0
  %66 = vmatprep.subr.bf16.mxu0 0
  %67 = vmatpush1.bf16.msra.mxu0 0
  %68 = vmatprep.subr.bf16.mxu0 0
  %69 = vmatpush1.bf16.msra.mxu0 0
  %70 = vmatprep.subr.bf16.mxu0 0
  %71 = vmatpush1.bf16.msra.mxu0 0
  %72 = vmatprep.subr.bf16.mxu0 0
  %73 = vmatpush1.bf16.msra.mxu0 %v53
  %74 = vmatprep.subr.bf16.mxu0 0
  %75 = vmatpush1.bf16.msra.mxu0 %v52
  %76 = vmatprep.subr.bf16.mxu0 0
  %77 = vmatpush2.bf16.msra.mxu0 0
  %78 = vmatprep.subr.bf16.mxu0 0
  %79 = vmatpush2.bf16.msra.mxu0 0
  %80 = vmatprep.subr.bf16.mxu0 0
  %81 = vmatpush2.bf16.msra.mxu0 0
  %82 = vmatprep.subr.bf16.mxu0 0
  %83 = vmatpush2.bf16.msra.mxu0 0
  %84 = vmatprep.subr.bf16.mxu0 0
  %85 = vmatpush2.bf16.msra.mxu0 0
  %86 = vmatprep.subr.bf16.mxu0 0
  %87 = vmatpush2.bf16.msra.mxu0 0
  %88 = vmatprep.subr.bf16.mxu0 0
  %89 = vmatpush2.bf16.msra.mxu0 0
  %90 = vmatprep.subr.bf16.mxu0 0
  %91 = vmatpush2.bf16.msra.mxu0 0
  %92 = vmatprep.mubr.bf16.mxu0 0
  %93 = vmatmul.mubr.bf16.gmra.mxu0 %v58
  %v94 = vpop.f32.mrf.mxu0
  %v95 = vadd.f32 0.0, %v94
  %v96 = vpop.f32.mrf.mxu0
  %v97 = vpop.f32.mrf.mxu0
  %v98 = vadd.f32 0.0, %v97
  %v99 = vpop.f32.mrf.mxu0
  %100 = vdwg.mxu0
  %v101 = vadd.f32 %v31, %v95
  %v102 = vadd.f32 %v32, %v98
  %103 = vst.msk [vmem:[#allocation2] sm:$0xff] %vm56, %v101
  %104 = vst.msk [vmem:[#allocation2 + $0x8] sm:$0xff] %vm56, %v102
  // Predicated region
  $region30: #{transformer_forward.36} parent=0 // pred_check
    %p105 = pneg %p24
  $region31: #{transformer_forward.36} parent=0 // pred_check_branch
    %107 = sbr.rel (%p105) target = $region33
  $region32: #{transformer_forward.36} parent=0 // pred_region
    %v108 = vld [vmem:[#allocation2] sm:$0xff]
    %v109 = vld [vmem:[#allocation2 + $0x8] sm:$0xff]
    %v110 = vld [vmem:[%s2] sm:$0x1]
    %v112 = vlaneseq
    %v113 = vshrl.u32 %v112, 7
    %v114 = vsub.s32 0, %v113
    %v115 = vrot.slane %v110, %v114
    %v117 = vadd.f32 %v108, %v115
    %v118 = vadd.f32 %v109, %v115
    %v119 = vld [vmem:[%s3] sm:$0xf]
    %v120 = vld [vmem:[%s3 + $0x4] sm:$0xf]
    %v121 = vunpack.c.l.bf16 %v119
    %v122 = vunpack.c.l.bf16 %v120
    %v123 = vadd.f32 %v117, %v121
    %v124 = vadd.f32 %v118, %v122
    %v125 = vsel %vm56, %v123, 0.0
    %126 = vadd.xlane.f32.xlu0 %v125
    %v127 = vpop.xlane.xlu0 %126
    %v128 = vsel %vm56, %v124, 0.0
    %129 = vadd.xlane.f32.xlu0 %v128
    %v130 = vpop.xlane.xlu0 %129
    %v131 = vrcp.pop 32.0
    %v132 = vmul.f32 %v127, %v131
    %v133 = vmul.f32 %v130, %v131
    %v134 = vsub.f32 %v123, %v132
    %v135 = vsub.f32 %v124, %v133
    %v136 = vmul.f32 %v134, %v134
    %v137 = vmul.f32 %v135, %v135
    %v138 = vsel %vm56, %v136, 0.0
    %139 = vadd.xlane.f32.xlu0 %v138
    %v140 = vpop.xlane.xlu0 %139
    %v141 = vsel %vm56, %v137, 0.0
    %142 = vadd.xlane.f32.xlu0 %v141
    %v143 = vpop.xlane.xlu0 %142
    %v144 = vmul.f32 %v140, %v131
    %v145 = vmul.f32 %v143, %v131
    %v146 = vadd.f32 %v144, 1e-12
    %v147 = vadd.f32 %v145, 1e-12
    %v148 = vrsqrt.pop %v146
    %v149 = vrsqrt.pop %v147
    %v150 = vmul.f32 %v134, %v148
    %v151 = vmul.f32 %v135, %v149
    %v152 = vld [vmem:[%s4] sm:$0x1]
    %v154 = vlaneseq
    %v155 = vshrl.u32 %v154, 7
    %v156 = vsub.s32 0, %v155
    %v157 = vrot.slane %v152, %v156
    %v159 = vmul.f32 %v150, %v157
    %v160 = vmul.f32 %v151, %v157
    %v161 = vld [vmem:[%s5] sm:$0x1]
    %v163 = vlaneseq
    %v164 = vshrl.u32 %v163, 7
    %v165 = vsub.s32 0, %v164
    %v166 = vrot.slane %v161, %v165
    %v168 = vadd.f32 %v159, %v166
    %v169 = vadd.f32 %v160, %v166
    %v170 = vpack.c.bf16 %v169, %v168
    %v172 = vunpack.c.l.b16 %v170
    %v173 = vunpack.c.h.b16 %v170
    %v174 = vpack.c.b16 %v172, %v172
    %v175 = vpack.c.b16 %v173, %v173
    %vm178 = vcmask 257024
    %179 = vst.msk [vmem:[%s6] sm:$0xf] %vm178, %v174
    %180 = vst.msk [vmem:[%s6 + $0x4] sm:$0xf] %vm178, %v175
  $region33: #{transformer_forward.36} parent=0 // pred_fallthru
    _
  // Predicated region
  $region34: #{transformer_forward.36} parent=0 // pred_check
    _
  $region35: #{transformer_forward.36} parent=0 // pred_check_branch
    %182 = sbr.rel (0) target = $region37
  $region36: #{transformer_forward.36} parent=0 // pred_region
    _
  $region37: #{transformer_forward.36} parent=0 // pred_fallthru
    _
  // Predicated region
  $region38: #{transformer_forward.36} parent=0 // pred_check
    _
  $region39: #{transformer_forward.36} parent=0 // pred_check_branch
    %184 = sbr.rel (0) target = $region41
  $region40: #{transformer_forward.36} parent=0 // pred_region
    _
  $region41: #{transformer_forward.36} parent=0 // pred_fallthru
    _

// kernel: transformer_forward.35
$region0: #{transformer_forward.35}
  #allocation0 [shape = 'u32[]', space=smem, size = 0x4, offset = 0x4, fixed_abs, tag = 'smem constant byte address 0x4 - core index']
  #allocation1 [shape = 'u32[144,128]{1,0:T(1,128)}', space=vmem, size = 0x12000, scoped, tag = 'internal scratch']
  #allocation2 [shape = 'f32[8,1]{1,0:T(8,128)}', space=vmem, size = 0x1000, scoped, tag = 'scratch operand']
  #allocation3 [shape = 'f32[8,1]{1,0:T(8,128)}', space=vmem, size = 0x1000, scoped, tag = 'scratch operand']
  #allocation4 [shape = 'f32[8,8]{1,0:T(8,128)}', space=vmem, size = 0x1000, scoped, tag = 'scratch operand']
  %s0 = inlined_call_operand.vmem [shape: bf16[2,4,8,8], index: 0, kind: input, shape index: {}]
  %s1 = inlined_call_operand.vmem [shape: bf16[2,4,8,8], index: 1, kind: input, shape index: {}]
  %s2 = inlined_call_operand.vmem [shape: bf16[2,4,8,8], index: 2, kind: input, shape index: {}]
  %s3 = inlined_call_operand.vmem [shape: f32[2,8,1], index: 3, kind: input, shape index: {}]
  %s4 = inlined_call_operand.vmem [shape: f32[2,1,8], index: 4, kind: input, shape index: {}]
  %s5 = inlined_call_operand.vmem [shape: bf16[2,4,8,8], index: 5, kind: output, shape index: {}]
  %s6 = sld [smem:[#allocation0]]
  $region61: #{transformer_forward.35} parent=0
    _
  %s8 = ssub.s32 1, %s6
  %s9 = scalar_select 0, %s8, %s6
  loop: start=0, step=1, limit=10
  $region2: #{transformer_forward.35} parent=0 // loop_pre_header
    _
  $region3: #{transformer_forward.35} parent=0 // loop_header
    %s11 = sphi 0, %s15
    %p12 = scmp.ge.s32.totalorder %s11, 10
    %s18 = sphi 0, %s44
    %s19 = sphi 0, %s40
    %s20 = sphi 0, %s36
    %s21 = sphi 0, %s32
    %s22 = sphi 0, %s18
    %s23 = sphi 0, %s19
    %s24 = sphi 0, %s20
    %s25 = sphi 0, %s21
    %s26 = sphi 0, %s22
    %s27 = sphi 0, %s23
    %s28 = sphi 0, %s24
    %s29 = sphi 0, %s25
    %s51 = sphi 0, %s53
    %s54 = sphi 0, %s51
    %s55 = sphi 0, %s54
    %s71 = sphi 0, %s55
    %s81 = sphi 0, %s83
    %s84 = sphi 0, %s81
    %s85 = sphi 0, %s84
    %s101 = sphi 0, %s85
    %s111 = sphi 0, %s113
    %s114 = sphi 0, %s111
    %s115 = sphi 0, %s114
    %s131 = sphi 0, %s115
    %s139 = sphi 0, %s141
    %s142 = sphi 0, %s139
    %s143 = sphi 0, %s142
    %s159 = sphi 0, %s143
    %s167 = sphi 0, %s169
    %s170 = sphi 0, %s167
    %s171 = sphi 0, %s170
    %s187 = sphi 0, %s171
    %s197 = sphi 0, %s199
    %s200 = sphi 0, %s197
    %s201 = sphi 0, %s200
    %s217 = sphi 0, %s201
  $region4: #{transformer_forward.35} parent=0 // loop_header_branch
    %14 = sbr.rel (%p12) target = $region8
  $region5: #{transformer_forward.35} parent=0 // loop_body
    %s16 = ssub.s32 %s11, 1
    %s17 = ssub.s32 %s11, 2
    %s30 = sadd.s32 1, %s21
    %p31 = scmp.ge.s32.totalorder %s30, 1
    %s32 = scalar_select %p31, 0, %s30
    %s33 = sadd.s32 1, %s20
    %s34 = scalar_select %p31, %s33, %s20
    %p35 = scmp.ge.s32.totalorder %s34, 1
    %s36 = scalar_select %p35, 0, %s34
    %s37 = sadd.s32 1, %s19
    %s38 = scalar_select %p35, %s37, %s19
    %p39 = scmp.ge.s32.totalorder %s38, 4
    %s40 = scalar_select %p39, 0, %s38
    %s41 = sadd.s32 1, %s18
    %s42 = scalar_select %p39, %s41, %s18
    %p43 = scmp.ge.s32.totalorder %s42, 2
    %s44 = scalar_select %p43, 0, %s42
    %s45 = ssub.s32 %s18, %s44
    %s46 = ssub.s32 %s19, %s40
    %s47 = sor.u32 %s45, %s46
    %s48 = ssub.s32 %s20, %s36
    %s49 = sor.u32 %s47, %s48
    %p50 = scmp.eq.s32.totalorder %s49, 0
    %s52 = sadd.s32 %s51, 1
    %s53 = scalar_select %p50, %s51, %s52
    %p56 = pneg %p50
    %p57 = scmp.eq.s32.totalorder %s11, 7
    %p58 = por %p56, %p57
    %p59 = scmp.ne.s32.totalorder %s51, %s54
    %p60 = scmp.eq.s32.totalorder %s11, 0
    %p61 = por %p59, %p60
    %p62 = scmp.ne.s32.totalorder %s51, %s54
    %p63 = scmp.eq.s32.totalorder %s16, 7
    %p64 = por %p62, %p63
    %p65 = scmp.ne.s32.totalorder %s54, %s55
    %p66 = scmp.eq.s32.totalorder %s16, 0
    %p67 = por %p65, %p66
    %p68 = scmp.ne.s32.totalorder %s54, %s55
    %p69 = scmp.eq.s32.totalorder %s17, 7
    %p70 = por %p68, %p69
    %p72 = scmp.ne.s32.totalorder %s55, %s71
    %p73 = scmp.eq.s32.totalorder %s17, 0
    %p74 = por %p72, %p73
    %s75 = ssub.s32 %s18, %s44
    %s76 = ssub.s32 %s19, %s40
    %s77 = sor.u32 %s75, %s76
    %s78 = ssub.s32 %s21, %s32
    %s79 = sor.u32 %s77, %s78
    %p80 = scmp.eq.s32.totalorder %s79, 0
    %s82 = sadd.s32 %s81, 1
    %s83 = scalar_select %p80, %s81, %s82
    %p86 = pneg %p80
    %p87 = scmp.eq.s32.totalorder %s11, 7
    %p88 = por %p86, %p87
    %p89 = scmp.ne.s32.totalorder %s81, %s84
    %p90 = scmp.eq.s32.totalorder %s11, 0
    %p91 = por %p89, %p90
    %p92 = scmp.ne.s32.totalorder %s81, %s84
    %p93 = scmp.eq.s32.totalorder %s16, 7
    %p94 = por %p92, %p93
    %p95 = scmp.ne.s32.totalorder %s84, %s85
    %p96 = scmp.eq.s32.totalorder %s16, 0
    %p97 = por %p95, %p96
    %p98 = scmp.ne.s32.totalorder %s84, %s85
    %p99 = scmp.eq.s32.totalorder %s17, 7
    %p100 = por %p98, %p99
    %p102 = scmp.ne.s32.totalorder %s85, %s101
    %p103 = scmp.eq.s32.totalorder %s17, 0
    %p104 = por %p102, %p103
    %s105 = ssub.s32 %s18, %s44
    %s106 = ssub.s32 %s19, %s40
    %s107 = sor.u32 %s105, %s106
    %s108 = ssub.s32 %s21, %s32
    %s109 = sor.u32 %s107, %s108
    %p110 = scmp.eq.s32.totalorder %s109, 0
    %s112 = sadd.s32 %s111, 1
    %s113 = scalar_select %p110, %s111, %s112
    %p116 = pneg %p110
    %p117 = scmp.eq.s32.totalorder %s11, 7
    %p118 = por %p116, %p117
    %p119 = scmp.ne.s32.totalorder %s111, %s114
    %p120 = scmp.eq.s32.totalorder %s11, 0
    %p121 = por %p119, %p120
    %p122 = scmp.ne.s32.totalorder %s111, %s114
    %p123 = scmp.eq.s32.totalorder %s16, 7
    %p124 = por %p122, %p123
    %p125 = scmp.ne.s32.totalorder %s114, %s115
    %p126 = scmp.eq.s32.totalorder %s16, 0
    %p127 = por %p125, %p126
    %p128 = scmp.ne.s32.totalorder %s114, %s115
    %p129 = scmp.eq.s32.totalorder %s17, 7
    %p130 = por %p128, %p129
    %p132 = scmp.ne.s32.totalorder %s115, %s131
    %p133 = scmp.eq.s32.totalorder %s17, 0
    %p134 = por %p132, %p133
    %s135 = ssub.s32 %s18, %s44
    %s136 = ssub.s32 %s20, %s36
    %s137 = sor.u32 %s135, %s136
    %p138 = scmp.eq.s32.totalorder %s137, 0
    %s140 = sadd.s32 %s139, 1
    %s141 = scalar_select %p138, %s139, %s140
    %p144 = pneg %p138
    %p145 = scmp.eq.s32.totalorder %s11, 7
    %p146 = por %p144, %p145
    %p147 = scmp.ne.s32.totalorder %s139, %s142
    %p148 = scmp.eq.s32.totalorder %s11, 0
    %p149 = por %p147, %p148
    %p150 = scmp.ne.s32.totalorder %s139, %s142
    %p151 = scmp.eq.s32.totalorder %s16, 7
    %p152 = por %p150, %p151
    %p153 = scmp.ne.s32.totalorder %s142, %s143
    %p154 = scmp.eq.s32.totalorder %s16, 0
    %p155 = por %p153, %p154
    %p156 = scmp.ne.s32.totalorder %s142, %s143
    %p157 = scmp.eq.s32.totalorder %s17, 7
    %p158 = por %p156, %p157
    %p160 = scmp.ne.s32.totalorder %s143, %s159
    %p161 = scmp.eq.s32.totalorder %s17, 0
    %p162 = por %p160, %p161
    %s163 = ssub.s32 %s18, %s44
    %s164 = ssub.s32 %s21, %s32
    %s165 = sor.u32 %s163, %s164
    %p166 = scmp.eq.s32.totalorder %s165, 0
    %s168 = sadd.s32 %s167, 1
    %s169 = scalar_select %p166, %s167, %s168
    %p172 = pneg %p166
    %p173 = scmp.eq.s32.totalorder %s11, 7
    %p174 = por %p172, %p173
    %p175 = scmp.ne.s32.totalorder %s167, %s170
    %p176 = scmp.eq.s32.totalorder %s11, 0
    %p177 = por %p175, %p176
    %p178 = scmp.ne.s32.totalorder %s167, %s170
    %p179 = scmp.eq.s32.totalorder %s16, 7
    %p180 = por %p178, %p179
    %p181 = scmp.ne.s32.totalorder %s170, %s171
    %p182 = scmp.eq.s32.totalorder %s16, 0
    %p183 = por %p181, %p182
    %p184 = scmp.ne.s32.totalorder %s170, %s171
    %p185 = scmp.eq.s32.totalorder %s17, 7
    %p186 = por %p184, %p185
    %p188 = scmp.ne.s32.totalorder %s171, %s187
    %p189 = scmp.eq.s32.totalorder %s17, 0
    %p190 = por %p188, %p189
    %s191 = ssub.s32 %s18, %s44
    %s192 = ssub.s32 %s19, %s40
    %s193 = sor.u32 %s191, %s192
    %s194 = ssub.s32 %s20, %s36
    %s195 = sor.u32 %s193, %s194
    %p196 = scmp.eq.s32.totalorder %s195, 0
    %s198 = sadd.s32 %s197, 1
    %s199 = scalar_select %p196, %s197, %s198
    %p202 = pneg %p196
    %p203 = scmp.eq.s32.totalorder %s11, 7
    %p204 = por %p202, %p203
    %p205 = scmp.ne.s32.totalorder %s197, %s200
    %p206 = scmp.eq.s32.totalorder %s11, 0
    %p207 = por %p205, %p206
    %p208 = scmp.ne.s32.totalorder %s197, %s200
    %p209 = scmp.eq.s32.totalorder %s16, 7
    %p210 = por %p208, %p209
    %p211 = scmp.ne.s32.totalorder %s200, %s201
    %p212 = scmp.eq.s32.totalorder %s16, 0
    %p213 = por %p211, %p212
    %p214 = scmp.ne.s32.totalorder %s200, %s201
    %p215 = scmp.eq.s32.totalorder %s17, 7
    %p216 = por %p214, %p215
    %p218 = scmp.ne.s32.totalorder %s201, %s217
    %p219 = scmp.eq.s32.totalorder %s17, 0
    %p220 = por %p218, %p219
    %p221 = scmp.le.s32.totalorder 1, %s11
    %p222 = scmp.lt.s32.totalorder %s11, 9
    %p223 = pnand %p221, %p222
    %p224 = pneg %p223
    // Predicated region
    $region9: #{transformer_forward.35} parent=5 // pred_check
      _
    $region10: #{transformer_forward.35} parent=5 // pred_check_branch
      %226 = sbr.rel (%p223) target = $region12
    $region11: #{transformer_forward.35} parent=5 // pred_region
      %s227 = ssub.s32 %s11, 1
    $region12: #{transformer_forward.35} parent=5 // pred_fallthru
      _
    %p228 = scmp.lt.s32.totalorder %s11, 8
    // Predicated region
    $region13: #{transformer_forward.35} parent=5 // pred_check
      %p229 = pneg %p228
    $region14: #{transformer_forward.35} parent=5 // pred_check_branch
      %231 = sbr.rel (%p229) target = $region16
    $region15: #{transformer_forward.35} parent=5 // pred_region
      // Predicated region
      $region17: #{transformer_forward.35} parent=15 // pred_check
        %p232 = pneg %p61
      $region18: #{transformer_forward.35} parent=15 // pred_check_branch
        %234 = sbr.rel (%p232) target = $region20
      $region19: #{transformer_forward.35} parent=15 // pred_region
        %p235 = scmp.lt.s32.totalorder %s18, 1
        %s236 = scalar_select %p235, %s18, 1
        %p237 = scmp.lt.s32.totalorder %s19, 3
        %s238 = scalar_select %p237, %s19, 3
        %p239 = scmp.lt.s32.totalorder %s20, 0
        %s240 = scalar_select %p239, %s20, 0
        %s241 = sadd.s32 %s240, %s238
        %s242 = smul.addr %s236, 4
        %s243 = sadd.s32 %s241, %s242
        %s244 = smul.addr %s243, 4
        %s245 = scalar_lea.vmem %s0, %s244
      $region20: #{transformer_forward.35} parent=15 // pred_fallthru
        _
      // Predicated region
      $region21: #{transformer_forward.35} parent=15 // pred_check
        %p246 = pneg %p91
      $region22: #{transformer_forward.35} parent=15 // pred_check_branch
        %248 = sbr.rel (%p246) target = $region24
      $region23: #{transformer_forward.35} parent=15 // pred_region
        %p249 = scmp.lt.s32.totalorder %s18, 1
        %s250 = scalar_select %p249, %s18, 1
        %p251 = scmp.lt.s32.totalorder %s19, 3
        %s252 = scalar_select %p251, %s19, 3
        %p253 = scmp.lt.s32.totalorder %s21, 0
        %s254 = scalar_select %p253, %s21, 0
        %s255 = sadd.s32 %s254, %s252
        %s256 = smul.addr %s250, 4
        %s257 = sadd.s32 %s255, %s256
        %s258 = smul.addr %s257, 4
        %s259 = scalar_lea.vmem %s1, %s258
      $region24: #{transformer_forward.35} parent=15 // pred_fallthru
        _
      // Predicated region
      $region25: #{transformer_forward.35} parent=15 // pred_check
        %p260 = pneg %p121
      $region26: #{transformer_forward.35} parent=15 // pred_check_branch
        %262 = sbr.rel (%p260) target = $region28
      $region27: #{transformer_forward.35} parent=15 // pred_region
        %p263 = scmp.lt.s32.totalorder %s18, 1
        %s264 = scalar_select %p263, %s18, 1
        %p265 = scmp.lt.s32.totalorder %s19, 3
        %s266 = scalar_select %p265, %s19, 3
        %p267 = scmp.lt.s32.totalorder %s21, 0
        %s268 = scalar_select %p267, %s21, 0
        %s269 = sadd.s32 %s268, %s266
        %s270 = smul.addr %s264, 4
        %s271 = sadd.s32 %s269, %s270
        %s272 = smul.addr %s271, 4
        %s273 = scalar_lea.vmem %s2, %s272
      $region28: #{transformer_forward.35} parent=15 // pred_fallthru
        _
      // Predicated region
      $region29: #{transformer_forward.35} parent=15 // pred_check
        %p274 = pneg %p149
      $region30: #{transformer_forward.35} parent=15 // pred_check_branch
        %276 = sbr.rel (%p274) target = $region32
      $region31: #{transformer_forward.35} parent=15 // pred_region
        %p277 = scmp.lt.s32.totalorder %s18, 1
        %s278 = scalar_select %p277, %s18, 1
        %p279 = scmp.lt.s32.totalorder %s20, 0
        %s280 = scalar_select %p279, %s20, 0
        %s281 = sadd.s32 %s280, %s278
        %s282 = smul.addr %s281, 8
        %s283 = scalar_lea.vmem %s3, %s282
      $region32: #{transformer_forward.35} parent=15 // pred_fallthru
        _
      // Predicated region
      $region33: #{transformer_forward.35} parent=15 // pred_check
        %p284 = pneg %p177
      $region34: #{transformer_forward.35} parent=15 // pred_check_branch
        %286 = sbr.rel (%p284) target = $region36
      $region35: #{transformer_forward.35} parent=15 // pred_region
        %p287 = scmp.lt.s32.totalorder %s18, 1
        %s288 = scalar_select %p287, %s18, 1
        %p289 = scmp.lt.s32.totalorder %s21, 0
        %s290 = scalar_select %p289, %s21, 0
        %s291 = sadd.s32 %s290, %s288
        %s292 = scalar_lea.vmem %s4, %s291
      $region36: #{transformer_forward.35} parent=15 // pred_fallthru
        _
    $region16: #{transformer_forward.35} parent=5 // pred_fallthru
      _
    %p293 = scmp.le.s32.totalorder 1, %s11
    %p294 = scmp.lt.s32.totalorder %s11, 9
    %p295 = pnand %p293, %p294
    %p296 = pneg %p295
    // Predicated region
    $region37: #{transformer_forward.35} parent=5 // pred_check
      _
    $region38: #{transformer_forward.35} parent=5 // pred_check_branch
      %298 = sbr.rel (%p295) target = $region40
    $region39: #{transformer_forward.35} parent=5 // pred_region
      %s299 = ssub.s32 %s11, 1
      %p300 = scmp.lt.s32.totalorder %s22, 1
      %s301 = scalar_select %p300, %s22, 1
      %p302 = scmp.lt.s32.totalorder %s23, 3
      %s303 = scalar_select %p302, %s23, 3
      %p304 = scmp.lt.s32.totalorder %s24, 0
      %s305 = scalar_select %p304, %s24, 0
      %s306 = sadd.s32 %s305, %s303
      %s307 = smul.addr %s301, 4
      %s308 = sadd.s32 %s306, %s307
      %s309 = smul.addr %s308, 4
      %s310 = scalar_lea.vmem %s0, %s309
      %p311 = pneg %p67
      %p312 = pneg %p64
      %p313 = scmp.lt.s32.totalorder %s22, 1
      %s314 = scalar_select %p313, %s22, 1
      %p315 = scmp.lt.s32.totalorder %s23, 3
      %s316 = scalar_select %p315, %s23, 3
      %p317 = scmp.lt.s32.totalorder %s25, 0
      %s318 = scalar_select %p317, %s25, 0
      %s319 = sadd.s32 %s318, %s316
      %s320 = smul.addr %s314, 4
      %s321 = sadd.s32 %s319, %s320
      %s322 = smul.addr %s321, 4
      %s323 = scalar_lea.vmem %s1, %s322
      %p324 = pneg %p97
      %p325 = pneg %p94
      %p326 = scmp.lt.s32.totalorder %s22, 1
      %s327 = scalar_select %p326, %s22, 1
      %p328 = scmp.lt.s32.totalorder %s23, 3
      %s329 = scalar_select %p328, %s23, 3
      %p330 = scmp.lt.s32.totalorder %s25, 0
      %s331 = scalar_select %p330, %s25, 0
      %s332 = sadd.s32 %s331, %s329
      %s333 = smul.addr %s327, 4
      %s334 = sadd.s32 %s332, %s333
      %s335 = smul.addr %s334, 4
      %s336 = scalar_lea.vmem %s2, %s335
      %p337 = pneg %p127
      %p338 = pneg %p124
      %p339 = scmp.lt.s32.totalorder %s22, 1
      %s340 = scalar_select %p339, %s22, 1
      %p341 = scmp.lt.s32.totalorder %s24, 0
      %s342 = scalar_select %p341, %s24, 0
      %s343 = sadd.s32 %s342, %s340
      %s344 = smul.addr %s343, 8
      %s345 = scalar_lea.vmem %s3, %s344
      %p346 = pneg %p155
      %p347 = pneg %p152
      %p348 = scmp.lt.s32.totalorder %s22, 1
      %s349 = scalar_select %p348, %s22, 1
      %p350 = scmp.lt.s32.totalorder %s25, 0
      %s351 = scalar_select %p350, %s25, 0
      %s352 = sadd.s32 %s351, %s349
      %s353 = scalar_lea.vmem %s4, %s352
      %p354 = pneg %p183
      %p355 = pneg %p180
      %p356 = pneg %p213
      %p357 = pneg %p210
      %p358 = scmp.lt.s32.totalorder %s22, 1
      %s359 = scalar_select %p358, %s22, 1
      %p360 = scmp.lt.s32.totalorder %s23, 3
      %s361 = scalar_select %p360, %s23, 3
      %p362 = scmp.lt.s32.totalorder %s24, 0
      %s363 = scalar_select %p362, %s24, 0
      %s364 = sadd.s32 %s363, %s361
      %s365 = smul.addr %s359, 4
      %s366 = sadd.s32 %s364, %s365
      %s367 = smul.addr %s366, 4
      %s368 = scalar_lea.vmem %s5, %s367
      %p369 = scmp.lt.s32.totalorder %s22, 1
      %s370 = scalar_select %p369, %s22, 1
      %p371 = scmp.lt.s32.totalorder %s23, 3
      %s372 = scalar_select %p371, %s23, 3
      %p373 = scmp.lt.s32.totalorder %s24, 0
      %s374 = scalar_select %p373, %s24, 0
      %s375 = sadd.s32 %s374, %s372
      %s376 = smul.addr %s370, 4
      %s377 = sadd.s32 %s375, %s376
      %s378 = smul.addr %s377, 4
      %s379 = scalar_lea.vmem %s0, %s378
      %p380 = scmp.lt.s32.totalorder %s22, 1
      %s381 = scalar_select %p380, %s22, 1
      %p382 = scmp.lt.s32.totalorder %s23, 3
      %s383 = scalar_select %p382, %s23, 3
      %p384 = scmp.lt.s32.totalorder %s25, 0
      %s385 = scalar_select %p384, %s25, 0
      %s386 = sadd.s32 %s385, %s383
      %s387 = smul.addr %s381, 4
      %s388 = sadd.s32 %s386, %s387
      %s389 = smul.addr %s388, 4
      %s390 = scalar_lea.vmem %s1, %s389
      %p391 = scmp.lt.s32.totalorder %s22, 1
      %s392 = scalar_select %p391, %s22, 1
      %p393 = scmp.lt.s32.totalorder %s23, 3
      %s394 = scalar_select %p393, %s23, 3
      %p395 = scmp.lt.s32.totalorder %s25, 0
      %s396 = scalar_select %p395, %s25, 0
      %s397 = sadd.s32 %s396, %s394
      %s398 = smul.addr %s392, 4
      %s399 = sadd.s32 %s397, %s398
      %s400 = smul.addr %s399, 4
      %s401 = scalar_lea.vmem %s2, %s400
      %p402 = scmp.lt.s32.totalorder %s22, 1
      %s403 = scalar_select %p402, %s22, 1
      %p404 = scmp.lt.s32.totalorder %s24, 0
      %s405 = scalar_select %p404, %s24, 0
      %s406 = sadd.s32 %s405, %s403
      %s407 = smul.addr %s406, 8
      %s408 = scalar_lea.vmem %s3, %s407
      %p409 = scmp.lt.s32.totalorder %s22, 1
      %s410 = scalar_select %p409, %s22, 1
      %p411 = scmp.lt.s32.totalorder %s25, 0
      %s412 = scalar_select %p411, %s25, 0
      %s413 = sadd.s32 %s412, %s410
      %s414 = scalar_lea.vmem %s4, %s413
      %p415 = scmp.lt.s32.totalorder %s22, 1
      %s416 = scalar_select %p415, %s22, 1
      %p417 = scmp.lt.s32.totalorder %s23, 3
      %s418 = scalar_select %p417, %s23, 3
      %p419 = scmp.lt.s32.totalorder %s24, 0
      %s420 = scalar_select %p419, %s24, 0
      %s421 = sadd.s32 %s420, %s418
      %s422 = smul.addr %s416, 4
      %s423 = sadd.s32 %s421, %s422
      %s424 = smul.addr %s423, 4
      %s425 = scalar_lea.vmem %s5, %s424
      %p427 = scmp.eq.s32.totalorder %s25, 0
      // Predicated region
      $region41: #{transformer_forward.35} parent=39 // pred_check
        %p428 = pneg %p427
      $region42: #{transformer_forward.35} parent=39 // pred_check_branch
        %430 = sbr.rel (%p428) target = $region44
      $region43: #{transformer_forward.35} parent=39 // pred_region
        %vm431 = vcmask 7168
        %432 = vst.msk [vmem:[#allocation2] sm:$0xff] %vm431, -1e+30
        %433 = vst.msk [vmem:[#allocation3] sm:$0xff] %vm431, 0.0
        %vm434 = vcmask 64512
        %435 = vst.msk [vmem:[#allocation4] sm:$0xff] %vm434, 0.0
      $region44: #{transformer_forward.35} parent=39 // pred_fallthru
        _
      %v436 = vld [vmem:[%s379] sm:$0xf]
      %v437 = vld [vmem:[%s390] sm:$0xf]
      %v438 = vld [vmem:[%s401] sm:$0xf]
      %vm439 = vcmask 64512
      %v441 = vsel %vm439, %v436, 0
      %v444 = vsel %vm439, %v437, 0
      %446 = vmatprep.subr.bf16.mxu0 0
      %447 = vmatpush1.bf16.xpose.msra.mxu0 0
      %448 = vmatprep.subr.bf16.mxu0 0
      %449 = vmatpush1.bf16.xpose.msra.mxu0 0
      %450 = vmatprep.subr.bf16.mxu0 0
      %451 = vmatpush1.bf16.xpose.msra.mxu0 0
      %452 = vmatprep.subr.bf16.mxu0 0
      %453 = vmatpush1.bf16.xpose.msra.mxu0 0
      %454 = vmatprep.subr.bf16.mxu0 0
      %455 = vmatpush1.bf16.xpose.msra.mxu0 0
      %456 = vmatprep.subr.bf16.mxu0 0
      %457 = vmatpush1.bf16.xpose.msra.mxu0 0
      %458 = vmatprep.subr.bf16.mxu0 0
      %459 = vmatpush1.bf16.xpose.msra.mxu0 0
      %460 = vmatprep.subr.bf16.mxu0 0
      %461 = vmatpush1.bf16.xpose.msra.mxu0 %v444
      %462 = vmatprep.subr.bf16.mxu0 0
      %463 = vmatpush2.bf16.xpose.msra.mxu0 0
      %464 = vmatprep.subr.bf16.mxu0 0
      %465 = vmatpush2.bf16.xpose.msra.mxu0 0
      %466 = vmatprep.subr.bf16.mxu0 0
      %467 = vmatpush2.bf16.xpose.msra.mxu0 0
      %468 = vmatprep.subr.bf16.mxu0 0
      %469 = vmatpush2.bf16.xpose.msra.mxu0 0
      %470 = vmatprep.subr.bf16.mxu0 0
      %471 = vmatpush2.bf16.xpose.msra.mxu0 0
      %472 = vmatprep.subr.bf16.mxu0 0
      %473 = vmatpush2.bf16.xpose.msra.mxu0 0
      %474 = vmatprep.subr.bf16.mxu0 0
      %475 = vmatpush2.bf16.xpose.msra.mxu0 0
      %476 = vmatprep.subr.bf16.mxu0 0
      %477 = vmatpush2.bf16.xpose.msra.mxu0 0
      %478 = vmatprep.mubr.bf16.mxu0 0
      %479 = vmatmul.mubr.bf16.gmra.mxu0 %v441
      %v480 = vpop.f32.mrf.mxu0
      %v481 = vadd.f32 0.0, %v480
      %v482 = vpop.f32.mrf.mxu0
      %v483 = vpop.f32.mrf.mxu0
      %v484 = vpop.f32.mrf.mxu0
      %485 = vdwg.mxu0
      %v486 = vmul.f32 %v481, 0.35355338
      %v487 = vld [vmem:[%s408] sm:$0xff]
      %v488 = vld [vmem:[%s414] sm:$0x1]
      %490 = vset.pattern.permute.xlu0 0
      %491 = vperm.xlu0 %490, %v487
      %v492 = vpop.permute.xlu0 %491
      %v495 = vlaneseq
      %v496 = vshrl.u32 %v495, 7
      %v497 = vsub.s32 0, %v496
      %v498 = vrot.slane %v488, %v497
      %v500 = vmul.f32 %v492, %v498
      %vm501 = vcmp.gt.f32.partialorder %v500, 0.0
      %s502 = smul.u32 %s24, 8
      %v503 = vlaneseq
      %v504 = vshrl.u32 %v503, 7
      %v505 = vstv %s502
      %v506 = vadd.s32 %v505, %v504
      %s507 = smul.u32 %s25, 8
      %v508 = vlaneseq
      %v509 = vand.u32 %v508, 127
      %v510 = vstv %s507
      %v511 = vadd.s32 %v510, %v509
      %vm512 = vcmp.le.s32.totalorder %v511, %v506
      %vm513 = vmand %vm501, %vm512
      %v514 = vsel %vm513, %v486, -10000.0
      %v515 = vld [vmem:[#allocation2] sm:$0xff]
      %v516 = vsel %vm439, %v514, -inf
      %517 = vmax.xlane.f32.xlu0 %v516
      %v518 = vpop.xlane.xlu0 %517
      %v519 = vmax.f32 %v515, %v518
      %v520 = vsub.f32 %v515, %v519
      %v521 = vmul.f32 %v520, 1.442695
      %v522 = vpow.pop %v521
      %524 = vset.pattern.permute.xlu0 0
      %525 = vperm.xlu0 %524, %v519
      %v526 = vpop.permute.xlu0 %525
      %v528 = vsub.f32 %v514, %v526
      %v529 = vmul.f32 %v528, 1.442695
      %v530 = vpow.pop %v529
      %v531 = vld [vmem:[#allocation3] sm:$0xff]
      %v532 = vmul.f32 %v522, %v531
      %v533 = vsel %vm439, %v530, 0.0
      %534 = vadd.xlane.f32.xlu0 %v533
      %v535 = vpop.xlane.xlu0 %534
      %v536 = vadd.f32 %v532, %v535
      %vm537 = vcmask 7168
      %538 = vst.msk [vmem:[#allocation3] sm:$0xff] %vm537, %v536
      %v539 = vld [vmem:[#allocation4] sm:$0xff]
      %541 = vset.pattern.permute.xlu0 0
      %542 = vperm.xlu0 %541, %v522
      %v543 = vpop.permute.xlu0 %542
      %v545 = vmul.f32 %v543, %v539
      %v546 = vpack.c.bf16 %v530, %v530
      %v548 = vsel %vm439, %v546, 0
      %vm550 = vcmask 1043456
      %v552 = vsel %vm550, %v438, 0
      %554 = vmatprep.subr.bf16.mxu0 0
      %555 = vmatpush1.bf16.msra.mxu0 0
      %556 = vmatprep.subr.bf16.mxu0 0
      %557 = vmatpush1.bf16.msra.mxu0 0
      %558 = vmatprep.subr.bf16.mxu0 0
      %559 = vmatpush1.bf16.msra.mxu0 0
      %560 = vmatprep.subr.bf16.mxu0 0
      %561 = vmatpush1.bf16.msra.mxu0 0
      %562 = vmatprep.subr.bf16.mxu0 0
      %563 = vmatpush1.bf16.msra.mxu0 0
      %564 = vmatprep.subr.bf16.mxu0 0
      %565 = vmatpush1.bf16.msra.mxu0 0
      %566 = vmatprep.subr.bf16.mxu0 0
      %567 = vmatpush1.bf16.msra.mxu0 0
      %568 = vmatprep.subr.bf16.mxu0 0
      %569 = vmatpush1.bf16.msra.mxu0 %v552
      %570 = vmatprep.subr.bf16.mxu0 0
      %571 = vmatpush2.bf16.msra.mxu0 0
      %572 = vmatprep.subr.bf16.mxu0 0
      %573 = vmatpush2.bf16.msra.mxu0 0
      %574 = vmatprep.subr.bf16.mxu0 0
      %575 = vmatpush2.bf16.msra.mxu0 0
      %576 = vmatprep.subr.bf16.mxu0 0
      %577 = vmatpush2.bf16.msra.mxu0 0
      %578 = vmatprep.subr.bf16.mxu0 0
      %579 = vmatpush2.bf16.msra.mxu0 0
      %580 = vmatprep.subr.bf16.mxu0 0
      %581 = vmatpush2.bf16.msra.mxu0 0
      %582 = vmatprep.subr.bf16.mxu0 0
      %583 = vmatpush2.bf16.msra.mxu0 0
      %584 = vmatprep.subr.bf16.mxu0 0
      %585 = vmatpush2.bf16.msra.mxu0 0
      %586 = vmatprep.mubr.bf16.mxu0 0
      %587 = vmatmul.mubr.bf16.gmra.mxu0 %v548
      %v588 = vpop.f32.mrf.mxu0
      %v589 = vadd.f32 0.0, %v588
      %v590 = vpop.f32.mrf.mxu0
      %v591 = vpop.f32.mrf.mxu0
      %v592 = vpop.f32.mrf.mxu0
      %593 = vdwg.mxu0
      %v594 = vadd.f32 %v545, %v589
      %595 = vst.msk [vmem:[#allocation4] sm:$0xff] %vm439, %v594
      %596 = vst.msk [vmem:[#allocation2] sm:$0xff] %vm537, %v519
      // Predicated region
      $region45: #{transformer_forward.35} parent=39 // pred_check
        %p597 = pneg %p427
      $region46: #{transformer_forward.35} parent=39 // pred_check_branch
        %599 = sbr.rel (%p597) target = $region48
      $region47: #{transformer_forward.35} parent=39 // pred_region
        %v600 = vld [vmem:[#allocation4] sm:$0xff]
        %v601 = vld [vmem:[#allocation3] sm:$0xff]
        %603 = vset.pattern.permute.xlu0 0
        %604 = vperm.xlu0 %603, %v601
        %v605 = vpop.permute.xlu0 %604
        %v607 = vrcp.pop %v605
        %v608 = vmul.f32 %v600, %v607
        %v609 = vpack.c.bf16 %v608, %v608
        %vm610 = vcmask 60416
        %611 = vst.msk [vmem:[%s425] sm:$0xf] %vm610, %v609
      $region48: #{transformer_forward.35} parent=39 // pred_fallthru
        _
      %p612 = scmp.lt.s32.totalorder %s22, 1
      %s613 = scalar_select %p612, %s22, 1
      %p614 = scmp.lt.s32.totalorder %s23, 3
      %s615 = scalar_select %p614, %s23, 3
      %p616 = scmp.lt.s32.totalorder %s24, 0
      %s617 = scalar_select %p616, %s24, 0
      %s618 = sadd.s32 %s617, %s615
      %s619 = smul.addr %s613, 4
      %s620 = sadd.s32 %s618, %s619
      %s621 = smul.addr %s620, 4
      %s622 = scalar_lea.vmem %s5, %s621
      // Predicated region
      $region49: #{transformer_forward.35} parent=39 // pred_check
        %p623 = pneg %p210
      $region50: #{transformer_forward.35} parent=39 // pred_check_branch
        %625 = sbr.rel (%p623) target = $region52
      $region51: #{transformer_forward.35} parent=39 // pred_region
        _
      $region52: #{transformer_forward.35} parent=39 // pred_fallthru
        _
    $region40: #{transformer_forward.35} parent=5 // pred_fallthru
      _
    %p626 = scmp.le.s32.totalorder 2, %s11
    // Predicated region
    $region53: #{transformer_forward.35} parent=5 // pred_check
      %p627 = pneg %p626
    $region54: #{transformer_forward.35} parent=5 // pred_check_branch
      %629 = sbr.rel (%p627) target = $region56
    $region55: #{transformer_forward.35} parent=5 // pred_region
      %s630 = ssub.s32 %s11, 2
      // Predicated region
      $region57: #{transformer_forward.35} parent=55 // pred_check
        %p631 = pneg %p216
      $region58: #{transformer_forward.35} parent=55 // pred_check_branch
        %633 = sbr.rel (%p631) target = $region60
      $region59: #{transformer_forward.35} parent=55 // pred_region
        %p634 = scmp.lt.s32.totalorder %s26, 1
        %s635 = scalar_select %p634, %s26, 1
        %p636 = scmp.lt.s32.totalorder %s27, 3
        %s637 = scalar_select %p636, %s27, 3
        %p638 = scmp.lt.s32.totalorder %s28, 0
        %s639 = scalar_select %p638, %s28, 0
        %s640 = sadd.s32 %s639, %s637
        %s641 = smul.addr %s635, 4
        %s642 = sadd.s32 %s640, %s641
        %s643 = smul.addr %s642, 4
        %s644 = scalar_lea.vmem %s5, %s643
      $region60: #{transformer_forward.35} parent=55 // pred_fallthru
        _
    $region56: #{transformer_forward.35} parent=5 // pred_fallthru
      _
  $region6: #{transformer_forward.35} parent=0 // loop_footer
    %s15 = sadd.s32 1, %s11
  $region7: #{transformer_forward.35} parent=0 // loop_footer_branch
    %10 = sbr.rel target = $region3
  $region8: #{transformer_forward.35} parent=0 // loop_exit
    _

// kernel: transformer_forward.32
$region0: #{transformer_forward.32}
  #allocation0 [shape = 'u32[]', space=smem, size = 0x4, offset = 0x4, fixed_abs, tag = 'smem constant byte address 0x4 - core index']
  #allocation1 [shape = 'u32[144,128]{1,0:T(1,128)}', space=vmem, size = 0x12000, scoped, tag = 'internal scratch']
  #allocation2 [shape = 'f32[16,64]{1,0:T(8,128)}', space=vmem, size = 0x2000, scoped, tag = 'scratch operand']
  %s0 = inlined_call_operand.vmem [shape: bf16[16,32], index: 0, kind: input, shape index: {}]
  %s1 = inlined_call_operand.vmem [shape: bf16[32,64], index: 1, kind: input, shape index: {}]
  %s2 = inlined_call_operand.vmem [shape: f32[1,64], index: 2, kind: input, shape index: {}]
  %s3 = inlined_call_operand.vmem [shape: bf16[16,64], index: 3, kind: output, shape index: {}]
  %s4 = sld [smem:[#allocation0]]
  $region30: #{transformer_forward.32} parent=0
    _
  %s6 = ssub.s32 1, %s4
  %s7 = scalar_select 0, %s6, %s4
  // Predicated region
  $region2: #{transformer_forward.32} parent=0 // pred_check
    _
  $region3: #{transformer_forward.32} parent=0 // pred_check_branch
    %9 = sbr.rel (0) target = $region5
  $region4: #{transformer_forward.32} parent=0 // pred_region
    _
  $region5: #{transformer_forward.32} parent=0 // pred_fallthru
    _
  // Predicated region
  $region6: #{transformer_forward.32} parent=0 // pred_check
    _
  $region7: #{transformer_forward.32} parent=0 // pred_check_branch
    %11 = sbr.rel (0) target = $region9
  $region8: #{transformer_forward.32} parent=0 // pred_region
    _
  $region9: #{transformer_forward.32} parent=0 // pred_fallthru
    _
  // Predicated region
  $region10: #{transformer_forward.32} parent=0 // pred_check
    _
  $region11: #{transformer_forward.32} parent=0 // pred_check_branch
    %13 = sbr.rel (0) target = $region13
  $region12: #{transformer_forward.32} parent=0 // pred_region
    _
  $region13: #{transformer_forward.32} parent=0 // pred_fallthru
    _
  %p15 = scmp.eq.s32.totalorder 0, 0
  // Predicated region
  $region14: #{transformer_forward.32} parent=0 // pred_check
    %p16 = pneg %p15
  $region15: #{transformer_forward.32} parent=0 // pred_check_branch
    %18 = sbr.rel (%p16) target = $region17
  $region16: #{transformer_forward.32} parent=0 // pred_region
    %vm19 = vcmask 523264
    %20 = vst.msk [vmem:[#allocation2] sm:$0xff] %vm19, 0.0
    %21 = vst.msk [vmem:[#allocation2 + $0x8] sm:$0xff] %vm19, 0.0
  $region17: #{transformer_forward.32} parent=0 // pred_fallthru
    _
  %v22 = vld [vmem:[#allocation2] sm:$0xff]
  %v23 = vld [vmem:[#allocation2 + $0x8] sm:$0xff]
  %v24 = vld [vmem:[%s0] sm:$0xf]
  %v25 = vld [vmem:[%s0 + $0x4] sm:$0xf]
  %v26 = vld [vmem:[%s1] sm:$0xf]
  %v27 = vld [vmem:[%s1 + $0x4] sm:$0xf]
  %v28 = vld [vmem:[%s1 + $0x8] sm:$0xf]
  %v29 = vld [vmem:[%s1 + $0xc] sm:$0xf]
  %v32 = vunpack.c.l.b16 %v24
  %v33 = vunpack.c.l.b16 %v25
  %v34 = vpack.c.b16 %v33, %v32
  %v39 = vunpack.c.l.b16 %v26
  %v40 = vunpack.c.l.b16 %v27
  %v41 = vunpack.c.l.b16 %v28
  %v42 = vunpack.c.l.b16 %v29
  %v43 = vpack.c.b16 %v40, %v39
  %v44 = vpack.c.b16 %v42, %v41
  %vm47 = vcmask 261120
  %v49 = vsel %vm47, %v34, 0
  %51 = vmatprep.subr.bf16.mxu0 0
  %52 = vmatpush1.bf16.msra.mxu0 0
  %53 = vmatprep.subr.bf16.mxu0 0
  %54 = vmatpush1.bf16.msra.mxu0 0
  %55 = vmatprep.subr.bf16.mxu0 0
  %56 = vmatpush1.bf16.msra.mxu0 0
  %57 = vmatprep.subr.bf16.mxu0 0
  %58 = vmatpush1.bf16.msra.mxu0 0
  %59 = vmatprep.subr.bf16.mxu0 0
  %60 = vmatpush1.bf16.msra.mxu0 0
  %61 = vmatprep.subr.bf16.mxu0 0
  %62 = vmatpush1.bf16.msra.mxu0 0
  %63 = vmatprep.subr.bf16.mxu0 0
  %64 = vmatpush1.bf16.msra.mxu0 %v44
  %65 = vmatprep.subr.bf16.mxu0 0
  %66 = vmatpush1.bf16.msra.mxu0 %v43
  %67 = vmatprep.subr.bf16.mxu0 0
  %68 = vmatpush2.bf16.msra.mxu0 0
  %69 = vmatprep.subr.bf16.mxu0 0
  %70 = vmatpush2.bf16.msra.mxu0 0
  %71 = vmatprep.subr.bf16.mxu0 0
  %72 = vmatpush2.bf16.msra.mxu0 0
  %73 = vmatprep.subr.bf16.mxu0 0
  %74 = vmatpush2.bf16.msra.mxu0 0
  %75 = vmatprep.subr.bf16.mxu0 0
  %76 = vmatpush2.bf16.msra.mxu0 0
  %77 = vmatprep.subr.bf16.mxu0 0
  %78 = vmatpush2.bf16.msra.mxu0 0
  %79 = vmatprep.subr.bf16.mxu0 0
  %80 = vmatpush2.bf16.msra.mxu0 0
  %81 = vmatprep.subr.bf16.mxu0 0
  %82 = vmatpush2.bf16.msra.mxu0 0
  %83 = vmatprep.mubr.bf16.mxu0 0
  %84 = vmatmul.mubr.bf16.gmra.mxu0 %v49
  %v85 = vpop.f32.mrf.mxu0
  %v86 = vadd.f32 0.0, %v85
  %v87 = vpop.f32.mrf.mxu0
  %v88 = vpop.f32.mrf.mxu0
  %v89 = vadd.f32 0.0, %v88
  %v90 = vpop.f32.mrf.mxu0
  %91 = vdwg.mxu0
  %v92 = vadd.f32 %v22, %v86
  %v93 = vadd.f32 %v23, %v89
  %vm94 = vcmask 523264
  %95 = vst.msk [vmem:[#allocation2] sm:$0xff] %vm94, %v92
  %96 = vst.msk [vmem:[#allocation2 + $0x8] sm:$0xff] %vm94, %v93
  // Predicated region
  $region18: #{transformer_forward.32} parent=0 // pred_check
    %p97 = pneg %p15
  $region19: #{transformer_forward.32} parent=0 // pred_check_branch
    %99 = sbr.rel (%p97) target = $region21
  $region20: #{transformer_forward.32} parent=0 // pred_region
    %v100 = vld [vmem:[#allocation2] sm:$0xff]
    %v101 = vld [vmem:[#allocation2 + $0x8] sm:$0xff]
    %v102 = vld [vmem:[%s2] sm:$0x1]
    %v104 = vlaneseq
    %v105 = vshrl.u32 %v104, 7
    %v106 = vsub.s32 0, %v105
    %v107 = vrot.slane %v102, %v106
    %v109 = vadd.f32 %v100, %v107
    %v110 = vadd.f32 %v101, %v107
    %v111 = vmax.f32 %v109, 0.0
    %v112 = vmax.f32 %v110, 0.0
    %v113 = vpack.c.bf16 %v112, %v111
    %v115 = vunpack.c.l.b16 %v113
    %v116 = vunpack.c.h.b16 %v113
    %v117 = vpack.c.b16 %v115, %v115
    %v118 = vpack.c.b16 %v116, %v116
    %vm121 = vcmask 519168
    %122 = vst.msk [vmem:[%s3] sm:$0xf] %vm121, %v117
    %123 = vst.msk [vmem:[%s3 + $0x4] sm:$0xf] %vm121, %v118
  $region21: #{transformer_forward.32} parent=0 // pred_fallthru
    _
  // Predicated region
  $region22: #{transformer_forward.32} parent=0 // pred_check
    _
  $region23: #{transformer_forward.32} parent=0 // pred_check_branch
    %125 = sbr.rel (0) target = $region25
  $region24: #{transformer_forward.32} parent=0 // pred_region
    _
  $region25: #{transformer_forward.32} parent=0 // pred_fallthru
    _
  // Predicated region
  $region26: #{transformer_forward.32} parent=0 // pred_check
    _
  $region27: #{transformer_forward.32} parent=0 // pred_check_branch
    %127 = sbr.rel (0) target = $region29
  $region28: #{transformer_forward.32} parent=0 // pred_region
    _
  $region29: #{transformer_forward.32} parent=0 // pred_fallthru
    _

// kernel: transformer_forward.38
$region0: #{transformer_forward.38}
  #allocation0 [shape = 'u32[]', space=smem, size = 0x4, offset = 0x4, fixed_abs, tag = 'smem constant byte address 0x4 - core index']
  #allocation1 [shape = 'u32[144,128]{1,0:T(1,128)}', space=vmem, size = 0x12000, scoped, tag = 'internal scratch']
  #allocation2 [shape = 'f32[16,64]{1,0:T(8,128)}', space=vmem, size = 0x2000, scoped, tag = 'scratch operand']
  %s0 = inlined_call_operand.vmem [shape: bf16[16,32], index: 0, kind: input, shape index: {}]
  %s1 = inlined_call_operand.vmem [shape: bf16[32,64], index: 1, kind: input, shape index: {}]
  %s2 = inlined_call_operand.vmem [shape: f32[1,64], index: 2, kind: input, shape index: {}]
  %s3 = inlined_call_operand.vmem [shape: bf16[16,64], index: 3, kind: output, shape index: {}]
  %s4 = sld [smem:[#allocation0]]
  $region30: #{transformer_forward.38} parent=0
    _
  %s6 = ssub.s32 1, %s4
  %s7 = scalar_select 0, %s6, %s4
  // Predicated region
  $region2: #{transformer_forward.38} parent=0 // pred_check
    _
  $region3: #{transformer_forward.38} parent=0 // pred_check_branch
    %9 = sbr.rel (0) target = $region5
  $region4: #{transformer_forward.38} parent=0 // pred_region
    _
  $region5: #{transformer_forward.38} parent=0 // pred_fallthru
    _
  // Predicated region
  $region6: #{transformer_forward.38} parent=0 // pred_check
    _
  $region7: #{transformer_forward.38} parent=0 // pred_check_branch
    %11 = sbr.rel (0) target = $region9
  $region8: #{transformer_forward.38} parent=0 // pred_region
    _
  $region9: #{transformer_forward.38} parent=0 // pred_fallthru
    _
  // Predicated region
  $region10: #{transformer_forward.38} parent=0 // pred_check
    _
  $region11: #{transformer_forward.38} parent=0 // pred_check_branch
    %13 = sbr.rel (0) target = $region13
  $region12: #{transformer_forward.38} parent=0 // pred_region
    _
  $region13: #{transformer_forward.38} parent=0 // pred_fallthru
    _
  %p15 = scmp.eq.s32.totalorder 0, 0
  // Predicated region
  $region14: #{transformer_forward.38} parent=0 // pred_check
    %p16 = pneg %p15
  $region15: #{transformer_forward.38} parent=0 // pred_check_branch
    %18 = sbr.rel (%p16) target = $region17
  $region16: #{transformer_forward.38} parent=0 // pred_region
    %vm19 = vcmask 523264
    %20 = vst.msk [vmem:[#allocation2] sm:$0xff] %vm19, 0.0
    %21 = vst.msk [vmem:[#allocation2 + $0x8] sm:$0xff] %vm19, 0.0
  $region17: #{transformer_forward.38} parent=0 // pred_fallthru
    _
  %v22 = vld [vmem:[#allocation2] sm:$0xff]
  %v23 = vld [vmem:[#allocation2 + $0x8] sm:$0xff]
  %v24 = vld [vmem:[%s0] sm:$0xf]
  %v25 = vld [vmem:[%s0 + $0x4] sm:$0xf]
  %v26 = vld [vmem:[%s1] sm:$0xf]
  %v27 = vld [vmem:[%s1 + $0x4] sm:$0xf]
  %v28 = vld [vmem:[%s1 + $0x8] sm:$0xf]
  %v29 = vld [vmem:[%s1 + $0xc] sm:$0xf]
  %v32 = vunpack.c.l.b16 %v24
  %v33 = vunpack.c.l.b16 %v25
  %v34 = vpack.c.b16 %v33, %v32
  %v39 = vunpack.c.l.b16 %v26
  %v40 = vunpack.c.l.b16 %v27
  %v41 = vunpack.c.l.b16 %v28
  %v42 = vunpack.c.l.b16 %v29
  %v43 = vpack.c.b16 %v40, %v39
  %v44 = vpack.c.b16 %v42, %v41
  %vm47 = vcmask 261120
  %v49 = vsel %vm47, %v34, 0
  %51 = vmatprep.subr.bf16.mxu0 0
  %52 = vmatpush1.bf16.msra.mxu0 0
  %53 = vmatprep.subr.bf16.mxu0 0
  %54 = vmatpush1.bf16.msra.mxu0 0
  %55 = vmatprep.subr.bf16.mxu0 0
  %56 = vmatpush1.bf16.msra.mxu0 0
  %57 = vmatprep.subr.bf16.mxu0 0
  %58 = vmatpush1.bf16.msra.mxu0 0
  %59 = vmatprep.subr.bf16.mxu0 0
  %60 = vmatpush1.bf16.msra.mxu0 0
  %61 = vmatprep.subr.bf16.mxu0 0
  %62 = vmatpush1.bf16.msra.mxu0 0
  %63 = vmatprep.subr.bf16.mxu0 0
  %64 = vmatpush1.bf16.msra.mxu0 %v44
  %65 = vmatprep.subr.bf16.mxu0 0
  %66 = vmatpush1.bf16.msra.mxu0 %v43
  %67 = vmatprep.subr.bf16.mxu0 0
  %68 = vmatpush2.bf16.msra.mxu0 0
  %69 = vmatprep.subr.bf16.mxu0 0
  %70 = vmatpush2.bf16.msra.mxu0 0
  %71 = vmatprep.subr.bf16.mxu0 0
  %72 = vmatpush2.bf16.msra.mxu0 0
  %73 = vmatprep.subr.bf16.mxu0 0
  %74 = vmatpush2.bf16.msra.mxu0 0
  %75 = vmatprep.subr.bf16.mxu0 0
  %76 = vmatpush2.bf16.msra.mxu0 0
  %77 = vmatprep.subr.bf16.mxu0 0
  %78 = vmatpush2.bf16.msra.mxu0 0
  %79 = vmatprep.subr.bf16.mxu0 0
  %80 = vmatpush2.bf16.msra.mxu0 0
  %81 = vmatprep.subr.bf16.mxu0 0
  %82 = vmatpush2.bf16.msra.mxu0 0
  %83 = vmatprep.mubr.bf16.mxu0 0
  %84 = vmatmul.mubr.bf16.gmra.mxu0 %v49
  %v85 = vpop.f32.mrf.mxu0
  %v86 = vadd.f32 0.0, %v85
  %v87 = vpop.f32.mrf.mxu0
  %v88 = vpop.f32.mrf.mxu0
  %v89 = vadd.f32 0.0, %v88
  %v90 = vpop.f32.mrf.mxu0
  %91 = vdwg.mxu0
  %v92 = vadd.f32 %v22, %v86
  %v93 = vadd.f32 %v23, %v89
  %vm94 = vcmask 523264
  %95 = vst.msk [vmem:[#allocation2] sm:$0xff] %vm94, %v92
  %96 = vst.msk [vmem:[#allocation2 + $0x8] sm:$0xff] %vm94, %v93
  // Predicated region
  $region18: #{transformer_forward.38} parent=0 // pred_check
    %p97 = pneg %p15
  $region19: #{transformer_forward.38} parent=0 // pred_check_branch
    %99 = sbr.rel (%p97) target = $region21
  $region20: #{transformer_forward.38} parent=0 // pred_region
    %v100 = vld [vmem:[#allocation2] sm:$0xff]
    %v101 = vld [vmem:[#allocation2 + $0x8] sm:$0xff]
    %v102 = vld [vmem:[%s2] sm:$0x1]
    %v104 = vlaneseq
    %v105 = vshrl.u32 %v104, 7
    %v106 = vsub.s32 0, %v105
    %v107 = vrot.slane %v102, %v106
    %v109 = vadd.f32 %v100, %v107
    %v110 = vadd.f32 %v101, %v107
    %v111 = vpack.c.bf16 %v110, %v109
    %v113 = vunpack.c.l.b16 %v111
    %v114 = vunpack.c.h.b16 %v111
    %v115 = vpack.c.b16 %v113, %v113
    %v116 = vpack.c.b16 %v114, %v114
    %vm119 = vcmask 519168
    %120 = vst.msk [vmem:[%s3] sm:$0xf] %vm119, %v115
    %121 = vst.msk [vmem:[%s3 + $0x4] sm:$0xf] %vm119, %v116
  $region21: #{transformer_forward.38} parent=0 // pred_fallthru
    _
  // Predicated region
  $region22: #{transformer_forward.38} parent=0 // pred_check
    _
  $region23: #{transformer_forward.38} parent=0 // pred_check_branch
    %123 = sbr.rel (0) target = $region25
  $region24: #{transformer_forward.38} parent=0 // pred_region
    _
  $region25: #{transformer_forward.38} parent=0 // pred_fallthru
    _
  // Predicated region
  $region26: #{transformer_forward.38} parent=0 // pred_check
    _
  $region27: #{transformer_forward.38} parent=0 // pred_check_branch
    %125 = sbr.rel (0) target = $region29
  $region28: #{transformer_forward.38} parent=0 // pred_region
    _
  $region29: #{transformer_forward.38} parent=0 // pred_fallthru
    _

// kernel: transformer_forward.33
$region0: #{transformer_forward.33}
  #allocation0 [shape = 'u32[]', space=smem, size = 0x4, offset = 0x4, fixed_abs, tag = 'smem constant byte address 0x4 - core index']
  #allocation1 [shape = 'u32[144,128]{1,0:T(1,128)}', space=vmem, size = 0x12000, scoped, tag = 'internal scratch']
  #allocation2 [shape = 'f32[16,32]{1,0:T(8,128)}', space=vmem, size = 0x2000, scoped, tag = 'scratch operand']
  %s0 = inlined_call_operand.vmem [shape: bf16[16,64], index: 0, kind: input, shape index: {}]
  %s1 = inlined_call_operand.vmem [shape: bf16[64,32], index: 1, kind: input, shape index: {}]
  %s2 = inlined_call_operand.vmem [shape: f32[1,32], index: 2, kind: input, shape index: {}]
  %s3 = inlined_call_operand.vmem [shape: bf16[16,32], index: 3, kind: input, shape index: {}]
  %s4 = inlined_call_operand.vmem [shape: f32[1,32], index: 4, kind: input, shape index: {}]
  %s5 = inlined_call_operand.vmem [shape: f32[1,32], index: 5, kind: input, shape index: {}]
  %s6 = inlined_call_operand.vmem [shape: bf16[16,32], index: 6, kind: output, shape index: {}]
  %s7 = sld [smem:[#allocation0]]
  $region42: #{transformer_forward.33} parent=0
    _
  %s9 = ssub.s32 1, %s7
  %s10 = scalar_select 0, %s9, %s7
  // Predicated region
  $region2: #{transformer_forward.33} parent=0 // pred_check
    _
  $region3: #{transformer_forward.33} parent=0 // pred_check_branch
    %12 = sbr.rel (0) target = $region5
  $region4: #{transformer_forward.33} parent=0 // pred_region
    _
  $region5: #{transformer_forward.33} parent=0 // pred_fallthru
    _
  // Predicated region
  $region6: #{transformer_forward.33} parent=0 // pred_check
    _
  $region7: #{transformer_forward.33} parent=0 // pred_check_branch
    %14 = sbr.rel (0) target = $region9
  $region8: #{transformer_forward.33} parent=0 // pred_region
    _
  $region9: #{transformer_forward.33} parent=0 // pred_fallthru
    _
  // Predicated region
  $region10: #{transformer_forward.33} parent=0 // pred_check
    _
  $region11: #{transformer_forward.33} parent=0 // pred_check_branch
    %16 = sbr.rel (0) target = $region13
  $region12: #{transformer_forward.33} parent=0 // pred_region
    _
  $region13: #{transformer_forward.33} parent=0 // pred_fallthru
    _
  // Predicated region
  $region14: #{transformer_forward.33} parent=0 // pred_check
    _
  $region15: #{transformer_forward.33} parent=0 // pred_check_branch
    %18 = sbr.rel (0) target = $region17
  $region16: #{transformer_forward.33} parent=0 // pred_region
    _
  $region17: #{transformer_forward.33} parent=0 // pred_fallthru
    _
  // Predicated region
  $region18: #{transformer_forward.33} parent=0 // pred_check
    _
  $region19: #{transformer_forward.33} parent=0 // pred_check_branch
    %20 = sbr.rel (0) target = $region21
  $region20: #{transformer_forward.33} parent=0 // pred_region
    _
  $region21: #{transformer_forward.33} parent=0 // pred_fallthru
    _
  // Predicated region
  $region22: #{transformer_forward.33} parent=0 // pred_check
    _
  $region23: #{transformer_forward.33} parent=0 // pred_check_branch
    %22 = sbr.rel (0) target = $region25
  $region24: #{transformer_forward.33} parent=0 // pred_region
    _
  $region25: #{transformer_forward.33} parent=0 // pred_fallthru
    _
  %p24 = scmp.eq.s32.totalorder 0, 0
  // Predicated region
  $region26: #{transformer_forward.33} parent=0 // pred_check
    %p25 = pneg %p24
  $region27: #{transformer_forward.33} parent=0 // pred_check_branch
    %27 = sbr.rel (%p25) target = $region29
  $region28: #{transformer_forward.33} parent=0 // pred_region
    %vm28 = vcmask 261120
    %29 = vst.msk [vmem:[#allocation2] sm:$0xff] %vm28, 0.0
    %30 = vst.msk [vmem:[#allocation2 + $0x8] sm:$0xff] %vm28, 0.0
  $region29: #{transformer_forward.33} parent=0 // pred_fallthru
    _
  %v31 = vld [vmem:[#allocation2] sm:$0xff]
  %v32 = vld [vmem:[#allocation2 + $0x8] sm:$0xff]
  %v33 = vld [vmem:[%s0] sm:$0xf]
  %v34 = vld [vmem:[%s0 + $0x4] sm:$0xf]
  %v35 = vld [vmem:[%s1] sm:$0xf]
  %v36 = vld [vmem:[%s1 + $0x4] sm:$0xf]
  %v37 = vld [vmem:[%s1 + $0x8] sm:$0xf]
  %v38 = vld [vmem:[%s1 + $0xc] sm:$0xf]
  %v39 = vld [vmem:[%s1 + $0x10] sm:$0xf]
  %v40 = vld [vmem:[%s1 + $0x14] sm:$0xf]
  %v41 = vld [vmem:[%s1 + $0x18] sm:$0xf]
  %v42 = vld [vmem:[%s1 + $0x1c] sm:$0xf]
  %v45 = vunpack.c.l.b16 %v33
  %v46 = vunpack.c.l.b16 %v34
  %v47 = vpack.c.b16 %v46, %v45
  %v56 = vunpack.c.l.b16 %v35
  %v57 = vunpack.c.l.b16 %v36
  %v58 = vunpack.c.l.b16 %v37
  %v59 = vunpack.c.l.b16 %v38
  %v60 = vunpack.c.l.b16 %v39
  %v61 = vunpack.c.l.b16 %v40
  %v62 = vunpack.c.l.b16 %v41
  %v63 = vunpack.c.l.b16 %v42
  %v64 = vpack.c.b16 %v57, %v56
  %v65 = vpack.c.b16 %v59, %v58
  %v66 = vpack.c.b16 %v61, %v60
  %v67 = vpack.c.b16 %v63, %v62
  %vm72 = vcmask 523264
  %v74 = vsel %vm72, %v47, 0
  %76 = vmatprep.subr.bf16.mxu0 0
  %77 = vmatpush1.bf16.msra.mxu0 0
  %78 = vmatprep.subr.bf16.mxu0 0
  %79 = vmatpush1.bf16.msra.mxu0 0
  %80 = vmatprep.subr.bf16.mxu0 0
  %81 = vmatpush1.bf16.msra.mxu0 0
  %82 = vmatprep.subr.bf16.mxu0 0
  %83 = vmatpush1.bf16.msra.mxu0 0
  %84 = vmatprep.subr.bf16.mxu0 0
  %85 = vmatpush1.bf16.msra.mxu0 %v67
  %86 = vmatprep.subr.bf16.mxu0 0
  %87 = vmatpush1.bf16.msra.mxu0 %v66
  %88 = vmatprep.subr.bf16.mxu0 0
  %89 = vmatpush1.bf16.msra.mxu0 %v65
  %90 = vmatprep.subr.bf16.mxu0 0
  %91 = vmatpush1.bf16.msra.mxu0 %v64
  %92 = vmatprep.subr.bf16.mxu0 0
  %93 = vmatpush2.bf16.msra.mxu0 0
  %94 = vmatprep.subr.bf16.mxu0 0
  %95 = vmatpush2.bf16.msra.mxu0 0
  %96 = vmatprep.subr.bf16.mxu0 0
  %97 = vmatpush2.bf16.msra.mxu0 0
  %98 = vmatprep.subr.bf16.mxu0 0
  %99 = vmatpush2.bf16.msra.mxu0 0
  %100 = vmatprep.subr.bf16.mxu0 0
  %101 = vmatpush2.bf16.msra.mxu0 0
  %102 = vmatprep.subr.bf16.mxu0 0
  %103 = vmatpush2.bf16.msra.mxu0 0
  %104 = vmatprep.subr.bf16.mxu0 0
  %105 = vmatpush2.bf16.msra.mxu0 0
  %106 = vmatprep.subr.bf16.mxu0 0
  %107 = vmatpush2.bf16.msra.mxu0 0
  %108 = vmatprep.mubr.bf16.mxu0 0
  %109 = vmatmul.mubr.bf16.gmra.mxu0 %v74
  %v110 = vpop.f32.mrf.mxu0
  %v111 = vadd.f32 0.0, %v110
  %v112 = vpop.f32.mrf.mxu0
  %v113 = vpop.f32.mrf.mxu0
  %v114 = vadd.f32 0.0, %v113
  %v115 = vpop.f32.mrf.mxu0
  %116 = vdwg.mxu0
  %v117 = vadd.f32 %v31, %v111
  %v118 = vadd.f32 %v32, %v114
  %vm119 = vcmask 261120
  %120 = vst.msk [vmem:[#allocation2] sm:$0xff] %vm119, %v117
  %121 = vst.msk [vmem:[#allocation2 + $0x8] sm:$0xff] %vm119, %v118
  // Predicated region
  $region30: #{transformer_forward.33} parent=0 // pred_check
    %p122 = pneg %p24
  $region31: #{transformer_forward.33} parent=0 // pred_check_branch
    %124 = sbr.rel (%p122) target = $region33
  $region32: #{transformer_forward.33} parent=0 // pred_region
    %v125 = vld [vmem:[#allocation2] sm:$0xff]
    %v126 = vld [vmem:[#allocation2 + $0x8] sm:$0xff]
    %v127 = vld [vmem:[%s2] sm:$0x1]
    %v129 = vlaneseq
    %v130 = vshrl.u32 %v129, 7
    %v131 = vsub.s32 0, %v130
    %v132 = vrot.slane %v127, %v131
    %v134 = vadd.f32 %v125, %v132
    %v135 = vadd.f32 %v126, %v132
    %v136 = vld [vmem:[%s3] sm:$0xf]
    %v137 = vld [vmem:[%s3 + $0x4] sm:$0xf]
    %v138 = vunpack.c.l.bf16 %v136
    %v139 = vunpack.c.l.bf16 %v137
    %v140 = vadd.f32 %v134, %v138
    %v141 = vadd.f32 %v135, %v139
    %v142 = vsel %vm119, %v140, 0.0
    %143 = vadd.xlane.f32.xlu0 %v142
    %v144 = vpop.xlane.xlu0 %143
    %v145 = vsel %vm119, %v141, 0.0
    %146 = vadd.xlane.f32.xlu0 %v145
    %v147 = vpop.xlane.xlu0 %146
    %v148 = vrcp.pop 32.0
    %v149 = vmul.f32 %v144, %v148
    %v150 = vmul.f32 %v147, %v148
    %v151 = vsub.f32 %v140, %v149
    %v152 = vsub.f32 %v141, %v150
    %v153 = vmul.f32 %v151, %v151
    %v154 = vmul.f32 %v152, %v152
    %v155 = vsel %vm119, %v153, 0.0
    %156 = vadd.xlane.f32.xlu0 %v155
    %v157 = vpop.xlane.xlu0 %156
    %v158 = vsel %vm119, %v154, 0.0
    %159 = vadd.xlane.f32.xlu0 %v158
    %v160 = vpop.xlane.xlu0 %159
    %v161 = vmul.f32 %v157, %v148
    %v162 = vmul.f32 %v160, %v148
    %v163 = vadd.f32 %v161, 1e-12
    %v164 = vadd.f32 %v162, 1e-12
    %v165 = vrsqrt.pop %v163
    %v166 = vrsqrt.pop %v164
    %v167 = vmul.f32 %v151, %v165
    %v168 = vmul.f32 %v152, %v166
    %v169 = vld [vmem:[%s4] sm:$0x1]
    %v171 = vlaneseq
    %v172 = vshrl.u32 %v171, 7
    %v173 = vsub.s32 0, %v172
    %v174 = vrot.slane %v169, %v173
    %v176 = vmul.f32 %v167, %v174
    %v177 = vmul.f32 %v168, %v174
    %v178 = vld [vmem:[%s5] sm:$0x1]
    %v180 = vlaneseq
    %v181 = vshrl.u32 %v180, 7
    %v182 = vsub.s32 0, %v181
    %v183 = vrot.slane %v178, %v182
    %v185 = vadd.f32 %v176, %v183
    %v186 = vadd.f32 %v177, %v183
    %v187 = vpack.c.bf16 %v186, %v185
    %v189 = vunpack.c.l.b16 %v187
    %v190 = vunpack.c.h.b16 %v187
    %v191 = vpack.c.b16 %v189, %v189
    %v192 = vpack.c.b16 %v190, %v190
    %vm195 = vcmask 257024
    %196 = vst.msk [vmem:[%s6] sm:$0xf] %vm195, %v191
    %197 = vst.msk [vmem:[%s6 + $0x4] sm:$0xf] %vm195, %v192
  $region33: #{transformer_forward.33} parent=0 // pred_fallthru
    _
  // Predicated region
  $region34: #{transformer_forward.33} parent=0 // pred_check
    _
  $region35: #{transformer_forward.33} parent=0 // pred_check_branch
    %199 = sbr.rel (0) target = $region37
  $region36: #{transformer_forward.33} parent=0 // pred_region
    _
  $region37: #{transformer_forward.33} parent=0 // pred_fallthru
    _
  // Predicated region
  $region38: #{transformer_forward.33} parent=0 // pred_check
    _
  $region39: #{transformer_forward.33} parent=0 // pred_check_branch
    %201 = sbr.rel (0) target = $region41
  $region40: #{transformer_forward.33} parent=0 // pred_region
    _
  $region41: #{transformer_forward.33} parent=0 // pred_fallthru
    _

// kernel: transformer_forward.30
$region0: #{transformer_forward.30}
  #allocation0 [shape = 'u32[]', space=smem, size = 0x4, offset = 0x4, fixed_abs, tag = 'smem constant byte address 0x4 - core index']
  #allocation1 [shape = 'u32[144,128]{1,0:T(1,128)}', space=vmem, size = 0x12000, scoped, tag = 'internal scratch']
  #allocation2 [shape = 'f32[8,1]{1,0:T(8,128)}', space=vmem, size = 0x1000, scoped, tag = 'scratch operand']
  #allocation3 [shape = 'f32[8,1]{1,0:T(8,128)}', space=vmem, size = 0x1000, scoped, tag = 'scratch operand']
  #allocation4 [shape = 'f32[8,8]{1,0:T(8,128)}', space=vmem, size = 0x1000, scoped, tag = 'scratch operand']
  %s0 = inlined_call_operand.vmem [shape: bf16[2,4,8,8], index: 0, kind: input, shape index: {}]
  %s1 = inlined_call_operand.vmem [shape: bf16[2,4,8,8], index: 1, kind: input, shape index: {}]
  %s2 = inlined_call_operand.vmem [shape: bf16[2,4,8,8], index: 2, kind: input, shape index: {}]
  %s3 = inlined_call_operand.vmem [shape: f32[2,8,1], index: 3, kind: input, shape index: {}]
  %s4 = inlined_call_operand.vmem [shape: f32[2,1,8], index: 4, kind: input, shape index: {}]
  %s5 = inlined_call_operand.vmem [shape: bf16[2,4,8,8], index: 5, kind: output, shape index: {}]
  %s6 = sld [smem:[#allocation0]]
  $region61: #{transformer_forward.30} parent=0
    _
  %s8 = ssub.s32 1, %s6
  %s9 = scalar_select 0, %s8, %s6
  loop: start=0, step=1, limit=10
  $region2: #{transformer_forward.30} parent=0 // loop_pre_header
    _
  $region3: #{transformer_forward.30} parent=0 // loop_header
    %s11 = sphi 0, %s15
    %p12 = scmp.ge.s32.totalorder %s11, 10
    %s18 = sphi 0, %s44
    %s19 = sphi 0, %s40
    %s20 = sphi 0, %s36
    %s21 = sphi 0, %s32
    %s22 = sphi 0, %s18
    %s23 = sphi 0, %s19
    %s24 = sphi 0, %s20
    %s25 = sphi 0, %s21
    %s26 = sphi 0, %s22
    %s27 = sphi 0, %s23
    %s28 = sphi 0, %s24
    %s29 = sphi 0, %s25
    %s51 = sphi 0, %s53
    %s54 = sphi 0, %s51
    %s55 = sphi 0, %s54
    %s71 = sphi 0, %s55
    %s81 = sphi 0, %s83
    %s84 = sphi 0, %s81
    %s85 = sphi 0, %s84
    %s101 = sphi 0, %s85
    %s111 = sphi 0, %s113
    %s114 = sphi 0, %s111
    %s115 = sphi 0, %s114
    %s131 = sphi 0, %s115
    %s139 = sphi 0, %s141
    %s142 = sphi 0, %s139
    %s143 = sphi 0, %s142
    %s159 = sphi 0, %s143
    %s167 = sphi 0, %s169
    %s170 = sphi 0, %s167
    %s171 = sphi 0, %s170
    %s187 = sphi 0, %s171
    %s197 = sphi 0, %s199
    %s200 = sphi 0, %s197
    %s201 = sphi 0, %s200
    %s217 = sphi 0, %s201
  $region4: #{transformer_forward.30} parent=0 // loop_header_branch
    %14 = sbr.rel (%p12) target = $region8
  $region5: #{transformer_forward.30} parent=0 // loop_body
    %s16 = ssub.s32 %s11, 1
    %s17 = ssub.s32 %s11, 2
    %s30 = sadd.s32 1, %s21
    %p31 = scmp.ge.s32.totalorder %s30, 1
    %s32 = scalar_select %p31, 0, %s30
    %s33 = sadd.s32 1, %s20
    %s34 = scalar_select %p31, %s33, %s20
    %p35 = scmp.ge.s32.totalorder %s34, 1
    %s36 = scalar_select %p35, 0, %s34
    %s37 = sadd.s32 1, %s19
    %s38 = scalar_select %p35, %s37, %s19
    %p39 = scmp.ge.s32.totalorder %s38, 4
    %s40 = scalar_select %p39, 0, %s38
    %s41 = sadd.s32 1, %s18
    %s42 = scalar_select %p39, %s41, %s18
    %p43 = scmp.ge.s32.totalorder %s42, 2
    %s44 = scalar_select %p43, 0, %s42
    %s45 = ssub.s32 %s18, %s44
    %s46 = ssub.s32 %s19, %s40
    %s47 = sor.u32 %s45, %s46
    %s48 = ssub.s32 %s20, %s36
    %s49 = sor.u32 %s47, %s48
    %p50 = scmp.eq.s32.totalorder %s49, 0
    %s52 = sadd.s32 %s51, 1
    %s53 = scalar_select %p50, %s51, %s52
    %p56 = pneg %p50
    %p57 = scmp.eq.s32.totalorder %s11, 7
    %p58 = por %p56, %p57
    %p59 = scmp.ne.s32.totalorder %s51, %s54
    %p60 = scmp.eq.s32.totalorder %s11, 0
    %p61 = por %p59, %p60
    %p62 = scmp.ne.s32.totalorder %s51, %s54
    %p63 = scmp.eq.s32.totalorder %s16, 7
    %p64 = por %p62, %p63
    %p65 = scmp.ne.s32.totalorder %s54, %s55
    %p66 = scmp.eq.s32.totalorder %s16, 0
    %p67 = por %p65, %p66
    %p68 = scmp.ne.s32.totalorder %s54, %s55
    %p69 = scmp.eq.s32.totalorder %s17, 7
    %p70 = por %p68, %p69
    %p72 = scmp.ne.s32.totalorder %s55, %s71
    %p73 = scmp.eq.s32.totalorder %s17, 0
    %p74 = por %p72, %p73
    %s75 = ssub.s32 %s18, %s44
    %s76 = ssub.s32 %s19, %s40
    %s77 = sor.u32 %s75, %s76
    %s78 = ssub.s32 %s21, %s32
    %s79 = sor.u32 %s77, %s78
    %p80 = scmp.eq.s32.totalorder %s79, 0
    %s82 = sadd.s32 %s81, 1
    %s83 = scalar_select %p80, %s81, %s82
    %p86 = pneg %p80
    %p87 = scmp.eq.s32.totalorder %s11, 7
    %p88 = por %p86, %p87
    %p89 = scmp.ne.s32.totalorder %s81, %s84
    %p90 = scmp.eq.s32.totalorder %s11, 0
    %p91 = por %p89, %p90
    %p92 = scmp.ne.s32.totalorder %s81, %s84
    %p93 = scmp.eq.s32.totalorder %s16, 7
    %p94 = por %p92, %p93
    %p95 = scmp.ne.s32.totalorder %s84, %s85
    %p96 = scmp.eq.s32.totalorder %s16, 0
    %p97 = por %p95, %p96
    %p98 = scmp.ne.s32.totalorder %s84, %s85
    %p99 = scmp.eq.s32.totalorder %s17, 7
    %p100 = por %p98, %p99
    %p102 = scmp.ne.s32.totalorder %s85, %s101
    %p103 = scmp.eq.s32.totalorder %s17, 0
    %p104 = por %p102, %p103
    %s105 = ssub.s32 %s18, %s44
    %s106 = ssub.s32 %s19, %s40
    %s107 = sor.u32 %s105, %s106
    %s108 = ssub.s32 %s21, %s32
    %s109 = sor.u32 %s107, %s108
    %p110 = scmp.eq.s32.totalorder %s109, 0
    %s112 = sadd.s32 %s111, 1
    %s113 = scalar_select %p110, %s111, %s112
    %p116 = pneg %p110
    %p117 = scmp.eq.s32.totalorder %s11, 7
    %p118 = por %p116, %p117
    %p119 = scmp.ne.s32.totalorder %s111, %s114
    %p120 = scmp.eq.s32.totalorder %s11, 0
    %p121 = por %p119, %p120
    %p122 = scmp.ne.s32.totalorder %s111, %s114
    %p123 = scmp.eq.s32.totalorder %s16, 7
    %p124 = por %p122, %p123
    %p125 = scmp.ne.s32.totalorder %s114, %s115
    %p126 = scmp.eq.s32.totalorder %s16, 0
    %p127 = por %p125, %p126
    %p128 = scmp.ne.s32.totalorder %s114, %s115
    %p129 = scmp.eq.s32.totalorder %s17, 7
    %p130 = por %p128, %p129
    %p132 = scmp.ne.s32.totalorder %s115, %s131
    %p133 = scmp.eq.s32.totalorder %s17, 0
    %p134 = por %p132, %p133
    %s135 = ssub.s32 %s18, %s44
    %s136 = ssub.s32 %s20, %s36
    %s137 = sor.u32 %s135, %s136
    %p138 = scmp.eq.s32.totalorder %s137, 0
    %s140 = sadd.s32 %s139, 1
    %s141 = scalar_select %p138, %s139, %s140
    %p144 = pneg %p138
    %p145 = scmp.eq.s32.totalorder %s11, 7
    %p146 = por %p144, %p145
    %p147 = scmp.ne.s32.totalorder %s139, %s142
    %p148 = scmp.eq.s32.totalorder %s11, 0
    %p149 = por %p147, %p148
    %p150 = scmp.ne.s32.totalorder %s139, %s142
    %p151 = scmp.eq.s32.totalorder %s16, 7
    %p152 = por %p150, %p151
    %p153 = scmp.ne.s32.totalorder %s142, %s143
    %p154 = scmp.eq.s32.totalorder %s16, 0
    %p155 = por %p153, %p154
    %p156 = scmp.ne.s32.totalorder %s142, %s143
    %p157 = scmp.eq.s32.totalorder %s17, 7
    %p158 = por %p156, %p157
    %p160 = scmp.ne.s32.totalorder %s143, %s159
    %p161 = scmp.eq.s32.totalorder %s17, 0
    %p162 = por %p160, %p161
    %s163 = ssub.s32 %s18, %s44
    %s164 = ssub.s32 %s21, %s32
    %s165 = sor.u32 %s163, %s164
    %p166 = scmp.eq.s32.totalorder %s165, 0
    %s168 = sadd.s32 %s167, 1
    %s169 = scalar_select %p166, %s167, %s168
    %p172 = pneg %p166
    %p173 = scmp.eq.s32.totalorder %s11, 7
    %p174 = por %p172, %p173
    %p175 = scmp.ne.s32.totalorder %s167, %s170
    %p176 = scmp.eq.s32.totalorder %s11, 0
    %p177 = por %p175, %p176
    %p178 = scmp.ne.s32.totalorder %s167, %s170
    %p179 = scmp.eq.s32.totalorder %s16, 7
    %p180 = por %p178, %p179
    %p181 = scmp.ne.s32.totalorder %s170, %s171
    %p182 = scmp.eq.s32.totalorder %s16, 0
    %p183 = por %p181, %p182
    %p184 = scmp.ne.s32.totalorder %s170, %s171
    %p185 = scmp.eq.s32.totalorder %s17, 7
    %p186 = por %p184, %p185
    %p188 = scmp.ne.s32.totalorder %s171, %s187
    %p189 = scmp.eq.s32.totalorder %s17, 0
    %p190 = por %p188, %p189
    %s191 = ssub.s32 %s18, %s44
    %s192 = ssub.s32 %s19, %s40
    %s193 = sor.u32 %s191, %s192
    %s194 = ssub.s32 %s20, %s36
    %s195 = sor.u32 %s193, %s194
    %p196 = scmp.eq.s32.totalorder %s195, 0
    %s198 = sadd.s32 %s197, 1
    %s199 = scalar_select %p196, %s197, %s198
    %p202 = pneg %p196
    %p203 = scmp.eq.s32.totalorder %s11, 7
    %p204 = por %p202, %p203
    %p205 = scmp.ne.s32.totalorder %s197, %s200
    %p206 = scmp.eq.s32.totalorder %s11, 0
    %p207 = por %p205, %p206
    %p208 = scmp.ne.s32.totalorder %s197, %s200
    %p209 = scmp.eq.s32.totalorder %s16, 7
    %p210 = por %p208, %p209
    %p211 = scmp.ne.s32.totalorder %s200, %s201
    %p212 = scmp.eq.s32.totalorder %s16, 0
    %p213 = por %p211, %p212
    %p214 = scmp.ne.s32.totalorder %s200, %s201
    %p215 = scmp.eq.s32.totalorder %s17, 7
    %p216 = por %p214, %p215
    %p218 = scmp.ne.s32.totalorder %s201, %s217
    %p219 = scmp.eq.s32.totalorder %s17, 0
    %p220 = por %p218, %p219
    %p221 = scmp.le.s32.totalorder 1, %s11
    %p222 = scmp.lt.s32.totalorder %s11, 9
    %p223 = pnand %p221, %p222
    %p224 = pneg %p223
    // Predicated region
    $region9: #{transformer_forward.30} parent=5 // pred_check
      _
    $region10: #{transformer_forward.30} parent=5 // pred_check_branch
      %226 = sbr.rel (%p223) target = $region12
    $region11: #{transformer_forward.30} parent=5 // pred_region
      %s227 = ssub.s32 %s11, 1
    $region12: #{transformer_forward.30} parent=5 // pred_fallthru
      _
    %p228 = scmp.lt.s32.totalorder %s11, 8
    // Predicated region
    $region13: #{transformer_forward.30} parent=5 // pred_check
      %p229 = pneg %p228
    $region14: #{transformer_forward.30} parent=5 // pred_check_branch
      %231 = sbr.rel (%p229) target = $region16
    $region15: #{transformer_forward.30} parent=5 // pred_region
      // Predicated region
      $region17: #{transformer_forward.30} parent=15 // pred_check
        %p232 = pneg %p61
      $region18: #{transformer_forward.30} parent=15 // pred_check_branch
        %234 = sbr.rel (%p232) target = $region20
      $region19: #{transformer_forward.30} parent=15 // pred_region
        %p235 = scmp.lt.s32.totalorder %s18, 1
        %s236 = scalar_select %p235, %s18, 1
        %p237 = scmp.lt.s32.totalorder %s19, 3
        %s238 = scalar_select %p237, %s19, 3
        %p239 = scmp.lt.s32.totalorder %s20, 0
        %s240 = scalar_select %p239, %s20, 0
        %s241 = sadd.s32 %s240, %s238
        %s242 = smul.addr %s236, 4
        %s243 = sadd.s32 %s241, %s242
        %s244 = smul.addr %s243, 4
        %s245 = scalar_lea.vmem %s0, %s244
      $region20: #{transformer_forward.30} parent=15 // pred_fallthru
        _
      // Predicated region
      $region21: #{transformer_forward.30} parent=15 // pred_check
        %p246 = pneg %p91
      $region22: #{transformer_forward.30} parent=15 // pred_check_branch
        %248 = sbr.rel (%p246) target = $region24
      $region23: #{transformer_forward.30} parent=15 // pred_region
        %p249 = scmp.lt.s32.totalorder %s18, 1
        %s250 = scalar_select %p249, %s18, 1
        %p251 = scmp.lt.s32.totalorder %s19, 3
        %s252 = scalar_select %p251, %s19, 3
        %p253 = scmp.lt.s32.totalorder %s21, 0
        %s254 = scalar_select %p253, %s21, 0
        %s255 = sadd.s32 %s254, %s252
        %s256 = smul.addr %s250, 4
        %s257 = sadd.s32 %s255, %s256
        %s258 = smul.addr %s257, 4
        %s259 = scalar_lea.vmem %s1, %s258
      $region24: #{transformer_forward.30} parent=15 // pred_fallthru
        _
      // Predicated region
      $region25: #{transformer_forward.30} parent=15 // pred_check
        %p260 = pneg %p121
      $region26: #{transformer_forward.30} parent=15 // pred_check_branch
        %262 = sbr.rel (%p260) target = $region28
      $region27: #{transformer_forward.30} parent=15 // pred_region
        %p263 = scmp.lt.s32.totalorder %s18, 1
        %s264 = scalar_select %p263, %s18, 1
        %p265 = scmp.lt.s32.totalorder %s19, 3
        %s266 = scalar_select %p265, %s19, 3
        %p267 = scmp.lt.s32.totalorder %s21, 0
        %s268 = scalar_select %p267, %s21, 0
        %s269 = sadd.s32 %s268, %s266
        %s270 = smul.addr %s264, 4
        %s271 = sadd.s32 %s269, %s270
        %s272 = smul.addr %s271, 4
        %s273 = scalar_lea.vmem %s2, %s272
      $region28: #{transformer_forward.30} parent=15 // pred_fallthru
        _
      // Predicated region
      $region29: #{transformer_forward.30} parent=15 // pred_check
        %p274 = pneg %p149
      $region30: #{transformer_forward.30} parent=15 // pred_check_branch
        %276 = sbr.rel (%p274) target = $region32
      $region31: #{transformer_forward.30} parent=15 // pred_region
        %p277 = scmp.lt.s32.totalorder %s18, 1
        %s278 = scalar_select %p277, %s18, 1
        %p279 = scmp.lt.s32.totalorder %s20, 0
        %s280 = scalar_select %p279, %s20, 0
        %s281 = sadd.s32 %s280, %s278
        %s282 = smul.addr %s281, 8
        %s283 = scalar_lea.vmem %s3, %s282
      $region32: #{transformer_forward.30} parent=15 // pred_fallthru
        _
      // Predicated region
      $region33: #{transformer_forward.30} parent=15 // pred_check
        %p284 = pneg %p177
      $region34: #{transformer_forward.30} parent=15 // pred_check_branch
        %286 = sbr.rel (%p284) target = $region36
      $region35: #{transformer_forward.30} parent=15 // pred_region
        %p287 = scmp.lt.s32.totalorder %s18, 1
        %s288 = scalar_select %p287, %s18, 1
        %p289 = scmp.lt.s32.totalorder %s21, 0
        %s290 = scalar_select %p289, %s21, 0
        %s291 = sadd.s32 %s290, %s288
        %s292 = scalar_lea.vmem %s4, %s291
      $region36: #{transformer_forward.30} parent=15 // pred_fallthru
        _
    $region16: #{transformer_forward.30} parent=5 // pred_fallthru
      _
    %p293 = scmp.le.s32.totalorder 1, %s11
    %p294 = scmp.lt.s32.totalorder %s11, 9
    %p295 = pnand %p293, %p294
    %p296 = pneg %p295
    // Predicated region
    $region37: #{transformer_forward.30} parent=5 // pred_check
      _
    $region38: #{transformer_forward.30} parent=5 // pred_check_branch
      %298 = sbr.rel (%p295) target = $region40
    $region39: #{transformer_forward.30} parent=5 // pred_region
      %s299 = ssub.s32 %s11, 1
      %p300 = scmp.lt.s32.totalorder %s22, 1
      %s301 = scalar_select %p300, %s22, 1
      %p302 = scmp.lt.s32.totalorder %s23, 3
      %s303 = scalar_select %p302, %s23, 3
      %p304 = scmp.lt.s32.totalorder %s24, 0
      %s305 = scalar_select %p304, %s24, 0
      %s306 = sadd.s32 %s305, %s303
      %s307 = smul.addr %s301, 4
      %s308 = sadd.s32 %s306, %s307
      %s309 = smul.addr %s308, 4
      %s310 = scalar_lea.vmem %s0, %s309
      %p311 = pneg %p67
      %p312 = pneg %p64
      %p313 = scmp.lt.s32.totalorder %s22, 1
      %s314 = scalar_select %p313, %s22, 1
      %p315 = scmp.lt.s32.totalorder %s23, 3
      %s316 = scalar_select %p315, %s23, 3
      %p317 = scmp.lt.s32.totalorder %s25, 0
      %s318 = scalar_select %p317, %s25, 0
      %s319 = sadd.s32 %s318, %s316
      %s320 = smul.addr %s314, 4
      %s321 = sadd.s32 %s319, %s320
      %s322 = smul.addr %s321, 4
      %s323 = scalar_lea.vmem %s1, %s322
      %p324 = pneg %p97
      %p325 = pneg %p94
      %p326 = scmp.lt.s32.totalorder %s22, 1
      %s327 = scalar_select %p326, %s22, 1
      %p328 = scmp.lt.s32.totalorder %s23, 3
      %s329 = scalar_select %p328, %s23, 3
      %p330 = scmp.lt.s32.totalorder %s25, 0
      %s331 = scalar_select %p330, %s25, 0
      %s332 = sadd.s32 %s331, %s329
      %s333 = smul.addr %s327, 4
      %s334 = sadd.s32 %s332, %s333
      %s335 = smul.addr %s334, 4
      %s336 = scalar_lea.vmem %s2, %s335
      %p337 = pneg %p127
      %p338 = pneg %p124
      %p339 = scmp.lt.s32.totalorder %s22, 1
      %s340 = scalar_select %p339, %s22, 1
      %p341 = scmp.lt.s32.totalorder %s24, 0
      %s342 = scalar_select %p341, %s24, 0
      %s343 = sadd.s32 %s342, %s340
      %s344 = smul.addr %s343, 8
      %s345 = scalar_lea.vmem %s3, %s344
      %p346 = pneg %p155
      %p347 = pneg %p152
      %p348 = scmp.lt.s32.totalorder %s22, 1
      %s349 = scalar_select %p348, %s22, 1
      %p350 = scmp.lt.s32.totalorder %s25, 0
      %s351 = scalar_select %p350, %s25, 0
      %s352 = sadd.s32 %s351, %s349
      %s353 = scalar_lea.vmem %s4, %s352
      %p354 = pneg %p183
      %p355 = pneg %p180
      %p356 = pneg %p213
      %p357 = pneg %p210
      %p358 = scmp.lt.s32.totalorder %s22, 1
      %s359 = scalar_select %p358, %s22, 1
      %p360 = scmp.lt.s32.totalorder %s23, 3
      %s361 = scalar_select %p360, %s23, 3
      %p362 = scmp.lt.s32.totalorder %s24, 0
      %s363 = scalar_select %p362, %s24, 0
      %s364 = sadd.s32 %s363, %s361
      %s365 = smul.addr %s359, 4
      %s366 = sadd.s32 %s364, %s365
      %s367 = smul.addr %s366, 4
      %s368 = scalar_lea.vmem %s5, %s367
      %p369 = scmp.lt.s32.totalorder %s22, 1
      %s370 = scalar_select %p369, %s22, 1
      %p371 = scmp.lt.s32.totalorder %s23, 3
      %s372 = scalar_select %p371, %s23, 3
      %p373 = scmp.lt.s32.totalorder %s24, 0
      %s374 = scalar_select %p373, %s24, 0
      %s375 = sadd.s32 %s374, %s372
      %s376 = smul.addr %s370, 4
      %s377 = sadd.s32 %s375, %s376
      %s378 = smul.addr %s377, 4
      %s379 = scalar_lea.vmem %s0, %s378
      %p380 = scmp.lt.s32.totalorder %s22, 1
      %s381 = scalar_select %p380, %s22, 1
      %p382 = scmp.lt.s32.totalorder %s23, 3
      %s383 = scalar_select %p382, %s23, 3
      %p384 = scmp.lt.s32.totalorder %s25, 0
      %s385 = scalar_select %p384, %s25, 0
      %s386 = sadd.s32 %s385, %s383
      %s387 = smul.addr %s381, 4
      %s388 = sadd.s32 %s386, %s387
      %s389 = smul.addr %s388, 4
      %s390 = scalar_lea.vmem %s1, %s389
      %p391 = scmp.lt.s32.totalorder %s22, 1
      %s392 = scalar_select %p391, %s22, 1
      %p393 = scmp.lt.s32.totalorder %s23, 3
      %s394 = scalar_select %p393, %s23, 3
      %p395 = scmp.lt.s32.totalorder %s25, 0
      %s396 = scalar_select %p395, %s25, 0
      %s397 = sadd.s32 %s396, %s394
      %s398 = smul.addr %s392, 4
      %s399 = sadd.s32 %s397, %s398
      %s400 = smul.addr %s399, 4
      %s401 = scalar_lea.vmem %s2, %s400
      %p402 = scmp.lt.s32.totalorder %s22, 1
      %s403 = scalar_select %p402, %s22, 1
      %p404 = scmp.lt.s32.totalorder %s24, 0
      %s405 = scalar_select %p404, %s24, 0
      %s406 = sadd.s32 %s405, %s403
      %s407 = smul.addr %s406, 8
      %s408 = scalar_lea.vmem %s3, %s407
      %p409 = scmp.lt.s32.totalorder %s22, 1
      %s410 = scalar_select %p409, %s22, 1
      %p411 = scmp.lt.s32.totalorder %s25, 0
      %s412 = scalar_select %p411, %s25, 0
      %s413 = sadd.s32 %s412, %s410
      %s414 = scalar_lea.vmem %s4, %s413
      %p415 = scmp.lt.s32.totalorder %s22, 1
      %s416 = scalar_select %p415, %s22, 1
      %p417 = scmp.lt.s32.totalorder %s23, 3
      %s418 = scalar_select %p417, %s23, 3
      %p419 = scmp.lt.s32.totalorder %s24, 0
      %s420 = scalar_select %p419, %s24, 0
      %s421 = sadd.s32 %s420, %s418
      %s422 = smul.addr %s416, 4
      %s423 = sadd.s32 %s421, %s422
      %s424 = smul.addr %s423, 4
      %s425 = scalar_lea.vmem %s5, %s424
      %p427 = scmp.eq.s32.totalorder %s25, 0
      // Predicated region
      $region41: #{transformer_forward.30} parent=39 // pred_check
        %p428 = pneg %p427
      $region42: #{transformer_forward.30} parent=39 // pred_check_branch
        %430 = sbr.rel (%p428) target = $region44
      $region43: #{transformer_forward.30} parent=39 // pred_region
        %vm431 = vcmask 7168
        %432 = vst.msk [vmem:[#allocation2] sm:$0xff] %vm431, -1e+30
        %433 = vst.msk [vmem:[#allocation3] sm:$0xff] %vm431, 0.0
        %vm434 = vcmask 64512
        %435 = vst.msk [vmem:[#allocation4] sm:$0xff] %vm434, 0.0
      $region44: #{transformer_forward.30} parent=39 // pred_fallthru
        _
      %v436 = vld [vmem:[%s379] sm:$0xf]
      %v437 = vld [vmem:[%s390] sm:$0xf]
      %v438 = vld [vmem:[%s401] sm:$0xf]
      %vm439 = vcmask 64512
      %v441 = vsel %vm439, %v436, 0
      %v444 = vsel %vm439, %v437, 0
      %446 = vmatprep.subr.bf16.mxu0 0
      %447 = vmatpush1.bf16.xpose.msra.mxu0 0
      %448 = vmatprep.subr.bf16.mxu0 0
      %449 = vmatpush1.bf16.xpose.msra.mxu0 0
      %450 = vmatprep.subr.bf16.mxu0 0
      %451 = vmatpush1.bf16.xpose.msra.mxu0 0
      %452 = vmatprep.subr.bf16.mxu0 0
      %453 = vmatpush1.bf16.xpose.msra.mxu0 0
      %454 = vmatprep.subr.bf16.mxu0 0
      %455 = vmatpush1.bf16.xpose.msra.mxu0 0
      %456 = vmatprep.subr.bf16.mxu0 0
      %457 = vmatpush1.bf16.xpose.msra.mxu0 0
      %458 = vmatprep.subr.bf16.mxu0 0
      %459 = vmatpush1.bf16.xpose.msra.mxu0 0
      %460 = vmatprep.subr.bf16.mxu0 0
      %461 = vmatpush1.bf16.xpose.msra.mxu0 %v444
      %462 = vmatprep.subr.bf16.mxu0 0
      %463 = vmatpush2.bf16.xpose.msra.mxu0 0
      %464 = vmatprep.subr.bf16.mxu0 0
      %465 = vmatpush2.bf16.xpose.msra.mxu0 0
      %466 = vmatprep.subr.bf16.mxu0 0
      %467 = vmatpush2.bf16.xpose.msra.mxu0 0
      %468 = vmatprep.subr.bf16.mxu0 0
      %469 = vmatpush2.bf16.xpose.msra.mxu0 0
      %470 = vmatprep.subr.bf16.mxu0 0
      %471 = vmatpush2.bf16.xpose.msra.mxu0 0
      %472 = vmatprep.subr.bf16.mxu0 0
      %473 = vmatpush2.bf16.xpose.msra.mxu0 0
      %474 = vmatprep.subr.bf16.mxu0 0
      %475 = vmatpush2.bf16.xpose.msra.mxu0 0
      %476 = vmatprep.subr.bf16.mxu0 0
      %477 = vmatpush2.bf16.xpose.msra.mxu0 0
      %478 = vmatprep.mubr.bf16.mxu0 0
      %479 = vmatmul.mubr.bf16.gmra.mxu0 %v441
      %v480 = vpop.f32.mrf.mxu0
      %v481 = vadd.f32 0.0, %v480
      %v482 = vpop.f32.mrf.mxu0
      %v483 = vpop.f32.mrf.mxu0
      %v484 = vpop.f32.mrf.mxu0
      %485 = vdwg.mxu0
      %v486 = vmul.f32 %v481, 0.35355338
      %v487 = vld [vmem:[%s408] sm:$0xff]
      %v488 = vld [vmem:[%s414] sm:$0x1]
      %490 = vset.pattern.permute.xlu0 0
      %491 = vperm.xlu0 %490, %v487
      %v492 = vpop.permute.xlu0 %491
      %v495 = vlaneseq
      %v496 = vshrl.u32 %v495, 7
      %v497 = vsub.s32 0, %v496
      %v498 = vrot.slane %v488, %v497
      %v500 = vmul.f32 %v492, %v498
      %vm501 = vcmp.gt.f32.partialorder %v500, 0.0
      %v502 = vsel %vm501, %v486, -10000.0
      %v503 = vld [vmem:[#allocation2] sm:$0xff]
      %v504 = vsel %vm439, %v502, -inf
      %505 = vmax.xlane.f32.xlu0 %v504
      %v506 = vpop.xlane.xlu0 %505
      %v507 = vmax.f32 %v503, %v506
      %v508 = vsub.f32 %v503, %v507
      %v509 = vmul.f32 %v508, 1.442695
      %v510 = vpow.pop %v509
      %512 = vset.pattern.permute.xlu0 0
      %513 = vperm.xlu0 %512, %v507
      %v514 = vpop.permute.xlu0 %513
      %v516 = vsub.f32 %v502, %v514
      %v517 = vmul.f32 %v516, 1.442695
      %v518 = vpow.pop %v517
      %v519 = vld [vmem:[#allocation3] sm:$0xff]
      %v520 = vmul.f32 %v510, %v519
      %v521 = vsel %vm439, %v518, 0.0
      %522 = vadd.xlane.f32.xlu0 %v521
      %v523 = vpop.xlane.xlu0 %522
      %v524 = vadd.f32 %v520, %v523
      %vm525 = vcmask 7168
      %526 = vst.msk [vmem:[#allocation3] sm:$0xff] %vm525, %v524
      %v527 = vld [vmem:[#allocation4] sm:$0xff]
      %529 = vset.pattern.permute.xlu0 0
      %530 = vperm.xlu0 %529, %v510
      %v531 = vpop.permute.xlu0 %530
      %v533 = vmul.f32 %v531, %v527
      %v534 = vpack.c.bf16 %v518, %v518
      %v536 = vsel %vm439, %v534, 0
      %vm538 = vcmask 1043456
      %v540 = vsel %vm538, %v438, 0
      %542 = vmatprep.subr.bf16.mxu0 0
      %543 = vmatpush1.bf16.msra.mxu0 0
      %544 = vmatprep.subr.bf16.mxu0 0
      %545 = vmatpush1.bf16.msra.mxu0 0
      %546 = vmatprep.subr.bf16.mxu0 0
      %547 = vmatpush1.bf16.msra.mxu0 0
      %548 = vmatprep.subr.bf16.mxu0 0
      %549 = vmatpush1.bf16.msra.mxu0 0
      %550 = vmatprep.subr.bf16.mxu0 0
      %551 = vmatpush1.bf16.msra.mxu0 0
      %552 = vmatprep.subr.bf16.mxu0 0
      %553 = vmatpush1.bf16.msra.mxu0 0
      %554 = vmatprep.subr.bf16.mxu0 0
      %555 = vmatpush1.bf16.msra.mxu0 0
      %556 = vmatprep.subr.bf16.mxu0 0
      %557 = vmatpush1.bf16.msra.mxu0 %v540
      %558 = vmatprep.subr.bf16.mxu0 0
      %559 = vmatpush2.bf16.msra.mxu0 0
      %560 = vmatprep.subr.bf16.mxu0 0
      %561 = vmatpush2.bf16.msra.mxu0 0
      %562 = vmatprep.subr.bf16.mxu0 0
      %563 = vmatpush2.bf16.msra.mxu0 0
      %564 = vmatprep.subr.bf16.mxu0 0
      %565 = vmatpush2.bf16.msra.mxu0 0
      %566 = vmatprep.subr.bf16.mxu0 0
      %567 = vmatpush2.bf16.msra.mxu0 0
      %568 = vmatprep.subr.bf16.mxu0 0
      %569 = vmatpush2.bf16.msra.mxu0 0
      %570 = vmatprep.subr.bf16.mxu0 0
      %571 = vmatpush2.bf16.msra.mxu0 0
      %572 = vmatprep.subr.bf16.mxu0 0
      %573 = vmatpush2.bf16.msra.mxu0 0
      %574 = vmatprep.mubr.bf16.mxu0 0
      %575 = vmatmul.mubr.bf16.gmra.mxu0 %v536
      %v576 = vpop.f32.mrf.mxu0
      %v577 = vadd.f32 0.0, %v576
      %v578 = vpop.f32.mrf.mxu0
      %v579 = vpop.f32.mrf.mxu0
      %v580 = vpop.f32.mrf.mxu0
      %581 = vdwg.mxu0
      %v582 = vadd.f32 %v533, %v577
      %583 = vst.msk [vmem:[#allocation4] sm:$0xff] %vm439, %v582
      %584 = vst.msk [vmem:[#allocation2] sm:$0xff] %vm525, %v507
      // Predicated region
      $region45: #{transformer_forward.30} parent=39 // pred_check
        %p585 = pneg %p427
      $region46: #{transformer_forward.30} parent=39 // pred_check_branch
        %587 = sbr.rel (%p585) target = $region48
      $region47: #{transformer_forward.30} parent=39 // pred_region
        %v588 = vld [vmem:[#allocation4] sm:$0xff]
        %v589 = vld [vmem:[#allocation3] sm:$0xff]
        %591 = vset.pattern.permute.xlu0 0
        %592 = vperm.xlu0 %591, %v589
        %v593 = vpop.permute.xlu0 %592
        %v595 = vrcp.pop %v593
        %v596 = vmul.f32 %v588, %v595
        %v597 = vpack.c.bf16 %v596, %v596
        %vm598 = vcmask 60416
        %599 = vst.msk [vmem:[%s425] sm:$0xf] %vm598, %v597
      $region48: #{transformer_forward.30} parent=39 // pred_fallthru
        _
      %p600 = scmp.lt.s32.totalorder %s22, 1
      %s601 = scalar_select %p600, %s22, 1
      %p602 = scmp.lt.s32.totalorder %s23, 3
      %s603 = scalar_select %p602, %s23, 3
      %p604 = scmp.lt.s32.totalorder %s24, 0
      %s605 = scalar_select %p604, %s24, 0
      %s606 = sadd.s32 %s605, %s603
      %s607 = smul.addr %s601, 4
      %s608 = sadd.s32 %s606, %s607
      %s609 = smul.addr %s608, 4
      %s610 = scalar_lea.vmem %s5, %s609
      // Predicated region
      $region49: #{transformer_forward.30} parent=39 // pred_check
        %p611 = pneg %p210
      $region50: #{transformer_forward.30} parent=39 // pred_check_branch
        %613 = sbr.rel (%p611) target = $region52
      $region51: #{transformer_forward.30} parent=39 // pred_region
        _
      $region52: #{transformer_forward.30} parent=39 // pred_fallthru
        _
    $region40: #{transformer_forward.30} parent=5 // pred_fallthru
      _
    %p614 = scmp.le.s32.totalorder 2, %s11
    // Predicated region
    $region53: #{transformer_forward.30} parent=5 // pred_check
      %p615 = pneg %p614
    $region54: #{transformer_forward.30} parent=5 // pred_check_branch
      %617 = sbr.rel (%p615) target = $region56
    $region55: #{transformer_forward.30} parent=5 // pred_region
      %s618 = ssub.s32 %s11, 2
      // Predicated region
      $region57: #{transformer_forward.30} parent=55 // pred_check
        %p619 = pneg %p216
      $region58: #{transformer_forward.30} parent=55 // pred_check_branch
        %621 = sbr.rel (%p619) target = $region60
      $region59: #{transformer_forward.30} parent=55 // pred_region
        %p622 = scmp.lt.s32.totalorder %s26, 1
        %s623 = scalar_select %p622, %s26, 1
        %p624 = scmp.lt.s32.totalorder %s27, 3
        %s625 = scalar_select %p624, %s27, 3
        %p626 = scmp.lt.s32.totalorder %s28, 0
        %s627 = scalar_select %p626, %s28, 0
        %s628 = sadd.s32 %s627, %s625
        %s629 = smul.addr %s623, 4
        %s630 = sadd.s32 %s628, %s629
        %s631 = smul.addr %s630, 4
        %s632 = scalar_lea.vmem %s5, %s631
      $region60: #{transformer_forward.30} parent=55 // pred_fallthru
        _
    $region56: #{transformer_forward.30} parent=5 // pred_fallthru
      _
  $region6: #{transformer_forward.30} parent=0 // loop_footer
    %s15 = sadd.s32 1, %s11
  $region7: #{transformer_forward.30} parent=0 // loop_footer_branch
    %10 = sbr.rel target = $region3
  $region8: #{transformer_forward.30} parent=0 // loop_exit
    _

// kernel: transformer_forward.57
$region0: #{transformer_forward.57}
  #allocation0 [shape = 'u32[]', space=smem, size = 0x4, offset = 0x4, fixed_abs, tag = 'smem constant byte address 0x4 - core index']
  #allocation1 [shape = 'u32[144,128]{1,0:T(1,128)}', space=vmem, size = 0x12000, scoped, tag = 'internal scratch']
  #allocation2 [shape = 'f32[16,16]{1,0:T(8,128)}', space=vmem, size = 0x2000, scoped, tag = 'scratch operand']
  %s0 = inlined_call_operand.vmem [shape: bf16[16,32], index: 0, kind: input, shape index: {}]
  %s1 = inlined_call_operand.vmem [shape: bf16[32,16], index: 1, kind: input, shape index: {}]
  %s2 = inlined_call_operand.vmem [shape: f32[1,16], index: 2, kind: input, shape index: {}]
  %s3 = inlined_call_operand.hbm [shape: f32[16,16], index: 3, kind: output, shape index: {}]
  %s4 = sld [smem:[#allocation0]]
  $region30: #{transformer_forward.57} parent=0
    _
  %s6 = ssub.s32 1, %s4
  %s7 = scalar_select 0, %s6, %s4
  $region1: #{transformer_forward.57} parent=0
    #allocation3 [shape = 'u8[8192]{0}', space=vmem, size = 0x2000, scoped, tag = 'output window, operand 0, single buffered']
    #allocation4 [shape = 's32[1]{0}', space=sflag, size = 0x4, scoped, tag = 'scoped memory for transformer_forward.57']
    %8 = vsyncpa [#allocation4], 0
    // Predicated region
    $region2: #{transformer_forward.57} parent=1 // pred_check
      _
    $region3: #{transformer_forward.57} parent=1 // pred_check_branch
      %10 = sbr.rel (0) target = $region5
    $region4: #{transformer_forward.57} parent=1 // pred_region
      _
    $region5: #{transformer_forward.57} parent=1 // pred_fallthru
      _
    // Predicated region
    $region6: #{transformer_forward.57} parent=1 // pred_check
      _
    $region7: #{transformer_forward.57} parent=1 // pred_check_branch
      %12 = sbr.rel (0) target = $region9
    $region8: #{transformer_forward.57} parent=1 // pred_region
      _
    $region9: #{transformer_forward.57} parent=1 // pred_fallthru
      _
    // Predicated region
    $region10: #{transformer_forward.57} parent=1 // pred_check
      _
    $region11: #{transformer_forward.57} parent=1 // pred_check_branch
      %14 = sbr.rel (0) target = $region13
    $region12: #{transformer_forward.57} parent=1 // pred_region
      _
    $region13: #{transformer_forward.57} parent=1 // pred_fallthru
      _
    %p16 = scmp.eq.s32.totalorder 0, 0
    // Predicated region
    $region14: #{transformer_forward.57} parent=1 // pred_check
      %p17 = pneg %p16
    $region15: #{transformer_forward.57} parent=1 // pred_check_branch
      %19 = sbr.rel (%p17) target = $region17
    $region16: #{transformer_forward.57} parent=1 // pred_region
      %vm20 = vcmask 130048
      %21 = vst.msk [vmem:[#allocation2] sm:$0xff] %vm20, 0.0
      %22 = vst.msk [vmem:[#allocation2 + $0x8] sm:$0xff] %vm20, 0.0
    $region17: #{transformer_forward.57} parent=1 // pred_fallthru
      _
    %v23 = vld [vmem:[#allocation2] sm:$0xff]
    %v24 = vld [vmem:[#allocation2 + $0x8] sm:$0xff]
    %v25 = vld [vmem:[%s0] sm:$0xf]
    %v26 = vld [vmem:[%s0 + $0x4] sm:$0xf]
    %v27 = vld [vmem:[%s1] sm:$0xf]
    %v28 = vld [vmem:[%s1 + $0x4] sm:$0xf]
    %v29 = vld [vmem:[%s1 + $0x8] sm:$0xf]
    %v30 = vld [vmem:[%s1 + $0xc] sm:$0xf]
    %v33 = vunpack.c.l.b16 %v25
    %v34 = vunpack.c.l.b16 %v26
    %v35 = vpack.c.b16 %v34, %v33
    %v40 = vunpack.c.l.b16 %v27
    %v41 = vunpack.c.l.b16 %v28
    %v42 = vunpack.c.l.b16 %v29
    %v43 = vunpack.c.l.b16 %v30
    %v44 = vpack.c.b16 %v41, %v40
    %v45 = vpack.c.b16 %v43, %v42
    %vm48 = vcmask 261120
    %v50 = vsel %vm48, %v35, 0
    %52 = vmatprep.subr.bf16.mxu0 0
    %53 = vmatpush1.bf16.msra.mxu0 0
    %54 = vmatprep.subr.bf16.mxu0 0
    %55 = vmatpush1.bf16.msra.mxu0 0
    %56 = vmatprep.subr.bf16.mxu0 0
    %57 = vmatpush1.bf16.msra.mxu0 0
    %58 = vmatprep.subr.bf16.mxu0 0
    %59 = vmatpush1.bf16.msra.mxu0 0
    %60 = vmatprep.subr.bf16.mxu0 0
    %61 = vmatpush1.bf16.msra.mxu0 0
    %62 = vmatprep.subr.bf16.mxu0 0
    %63 = vmatpush1.bf16.msra.mxu0 0
    %64 = vmatprep.subr.bf16.mxu0 0
    %65 = vmatpush1.bf16.msra.mxu0 %v45
    %66 = vmatprep.subr.bf16.mxu0 0
    %67 = vmatpush1.bf16.msra.mxu0 %v44
    %68 = vmatprep.subr.bf16.mxu0 0
    %69 = vmatpush2.bf16.msra.mxu0 0
    %70 = vmatprep.subr.bf16.mxu0 0
    %71 = vmatpush2.bf16.msra.mxu0 0
    %72 = vmatprep.subr.bf16.mxu0 0
    %73 = vmatpush2.bf16.msra.mxu0 0
    %74 = vmatprep.subr.bf16.mxu0 0
    %75 = vmatpush2.bf16.msra.mxu0 0
    %76 = vmatprep.subr.bf16.mxu0 0
    %77 = vmatpush2.bf16.msra.mxu0 0
    %78 = vmatprep.subr.bf16.mxu0 0
    %79 = vmatpush2.bf16.msra.mxu0 0
    %80 = vmatprep.subr.bf16.mxu0 0
    %81 = vmatpush2.bf16.msra.mxu0 0
    %82 = vmatprep.subr.bf16.mxu0 0
    %83 = vmatpush2.bf16.msra.mxu0 0
    %84 = vmatprep.mubr.bf16.mxu0 0
    %85 = vmatmul.mubr.bf16.gmra.mxu0 %v50
    %v86 = vpop.f32.mrf.mxu0
    %v87 = vadd.f32 0.0, %v86
    %v88 = vpop.f32.mrf.mxu0
    %v89 = vpop.f32.mrf.mxu0
    %v90 = vadd.f32 0.0, %v89
    %v91 = vpop.f32.mrf.mxu0
    %92 = vdwg.mxu0
    %v93 = vadd.f32 %v23, %v87
    %v94 = vadd.f32 %v24, %v90
    %vm95 = vcmask 130048
    %96 = vst.msk [vmem:[#allocation2] sm:$0xff] %vm95, %v93
    %97 = vst.msk [vmem:[#allocation2 + $0x8] sm:$0xff] %vm95, %v94
    // Predicated region
    $region18: #{transformer_forward.57} parent=1 // pred_check
      %p98 = pneg %p16
    $region19: #{transformer_forward.57} parent=1 // pred_check_branch
      %100 = sbr.rel (%p98) target = $region21
    $region20: #{transformer_forward.57} parent=1 // pred_region
      %v101 = vld [vmem:[#allocation2] sm:$0xff]
      %v102 = vld [vmem:[#allocation2 + $0x8] sm:$0xff]
      %v103 = vld [vmem:[%s2] sm:$0x1]
      %v105 = vlaneseq
      %v106 = vshrl.u32 %v105, 7
      %v107 = vsub.s32 0, %v106
      %v108 = vrot.slane %v103, %v107
      %v110 = vadd.f32 %v101, %v108
      %v111 = vadd.f32 %v102, %v108
      %112 = vst.msk [vmem:[#allocation3] sm:$0xff] %vm95, %v110
      %113 = vst.msk [vmem:[#allocation3 + $0x8] sm:$0xff] %vm95, %v111
    $region21: #{transformer_forward.57} parent=1 // pred_fallthru
      _
    // Predicated region
    $region22: #{transformer_forward.57} parent=1 // pred_check
      _
    $region23: #{transformer_forward.57} parent=1 // pred_check_branch
      %115 = sbr.rel (0) target = $region25
    $region24: #{transformer_forward.57} parent=1 // pred_region
      %s117 = ssub.s32 256, 256
      %118 = vsyncadd [#allocation4], %s117
      %s119 = sshll.u32 [#allocation3], 4
      %s120 = int_to_ptr.vmem [resolvable:$true] %s119
      %125 = dma.vmem_to_hbm [thread:$0]  %s120, 256, %s3, [#allocation4], 128, 128, 8
    $region25: #{transformer_forward.57} parent=1 // pred_fallthru
      _
    // Predicated region
    $region26: #{transformer_forward.57} parent=1 // pred_check
      _
    $region27: #{transformer_forward.57} parent=1 // pred_check_branch
      %127 = sbr.rel (0) target = $region29
    $region28: #{transformer_forward.57} parent=1 // pred_region
      %128 = dma.done [#allocation4], 256
    $region29: #{transformer_forward.57} parent=1 // pred_fallthru
      _
    %129 = vsyncpa [#allocation4], 1

</llo_original>
